<compile_context>
chip_gen: v6e
topology: v6e:2x2x1
jax: 0.10.0
libtpu: 0.0.40
codegen_flags: <defaults>
</compile_context>

<pallas_src>
import functools

import jax
import jax.numpy as jnp
from jax.experimental import pallas as pl
from jax.experimental.pallas import tpu as pltpu

# ----------------------------- config (small) -------------------------------
B = 2            # batch
S = 8            # sequence length
H = 128          # hidden size          (MiniLM: 384)
NH = 4           # attention heads      (MiniLM: 12)
DH = H // NH     # head dim = 32        (MiniLM: 32)
FF = 512         # intermediate size    (MiniLM: 1536)
NUM_LAYERS = 2   # encoder layers       (MiniLM: 12)
VOCAB = 128      # vocab size           (MiniLM: 30522)
MAX_POS = 16     # max position embeddings
TYPE_VOCAB = 2
NUM_LABELS = 2
LN_EPS = 1e-12   # BERT LayerNorm eps


def _gelu(x):
    # TODO(synk): HF "gelu" is the exact erf-based GELU; tanh approximation is
    # used here since lax.erf lowering inside Mosaic is not guaranteed.
    c = jnp.sqrt(2.0 / jnp.pi).astype(x.dtype)
    return 0.5 * x * (1.0 + jnp.tanh(c * (x + 0.044715 * x * x * x)))


def _layernorm(h, g, b):
    mu = jnp.mean(h, axis=-1, keepdims=True)
    var = jnp.mean(jnp.square(h - mu), axis=-1, keepdims=True)
    return (h - mu) * jax.lax.rsqrt(var + LN_EPS) * g + b


def _pick_tile(m, cap=512):
    """Largest row tile <= cap that divides m (multiple of 8 when tiling)."""
    if m <= cap:
        return m
    tm = cap - (cap % 8) if cap % 8 else cap
    while tm > 8 and m % tm != 0:
        tm -= 8
    return tm if m % tm == 0 else m


# ------------------------------ Pallas kernels ------------------------------
def add_ln_kernel(x_ref, r_ref, g_ref, b_ref, o_ref):
    """LayerNorm(x + r) * gamma + beta (embedding path)."""
    o_ref[...] = _layernorm(x_ref[...] + r_ref[...], g_ref[...], b_ref[...])


def add_layernorm(x, res, gamma, beta):
    M, Hd = x.shape
    tm = _pick_tile(M)
    return pl.pallas_call(
        add_ln_kernel,
        out_shape=jax.ShapeDtypeStruct((M, Hd), jnp.float32),
        grid=(M // tm,),
        in_specs=[
            pl.BlockSpec((tm, Hd), lambda i: (i, 0)),
            pl.BlockSpec((tm, Hd), lambda i: (i, 0)),
            pl.BlockSpec((1, Hd), lambda i: (0, 0)),
            pl.BlockSpec((1, Hd), lambda i: (0, 0)),
        ],
        out_specs=pl.BlockSpec((tm, Hd), lambda i: (i, 0)),
        compiler_params=pltpu.CompilerParams(dimension_semantics=("parallel",)),
    )(x, res, gamma.reshape(1, Hd), beta.reshape(1, Hd))


def encoder_layer_kernel(x_ref, qkvw_ref, qkvb_ref, ow_ref, ob_ref,
                         g1_ref, b1_ref, w1_ref, fb1_ref, w2_ref, fb2_ref,
                         g2_ref, b2_ref, o_ref, *, scale):
    """One whole BERT encoder layer, fused.

    One grid step == one batch element's S rows of the [B*S, H] activation.
    QKV projection -> per-head softmax attention -> output projection ->
    residual + LayerNorm -> FFN (gelu) -> residual + LayerNorm.  All
    intermediates (including the [S, FF] FFN hidden) stay in VMEM/vregs.
    """
    x = x_ref[...]                                            # (S, H) f32
    x_bf = x.astype(jnp.bfloat16)

    # Fused QKV projection (bf16 MXU, f32 accumulate).
    qkv = jnp.dot(x_bf, qkvw_ref[...],
                  preferred_element_type=jnp.float32) + qkvb_ref[...]  # (S, 3H)
    q = qkv[:, 0 * H:1 * H]
    k = qkv[:, 1 * H:2 * H]
    v = qkv[:, 2 * H:3 * H]

    # Per-head scaled dot-product attention; attention_mask is all-ones so the
    # additive mask is identically 0. Heads handled with static lane slices
    # (no JAX-side transposes / HBM copies).  NH is a compile-time constant,
    # so this Python loop fully unrolls.
    ctx_heads = []
    for h in range(NH):
        qh = q[:, h * DH:(h + 1) * DH].astype(jnp.bfloat16)
        kh = k[:, h * DH:(h + 1) * DH].astype(jnp.bfloat16)
        vh = v[:, h * DH:(h + 1) * DH].astype(jnp.bfloat16)
        # scores = qh @ kh^T (contract over head dim), f32.
        s = jax.lax.dot_general(qh, kh, (((1,), (1,)), ((), ())),
                                preferred_element_type=jnp.float32) * scale
        m = jnp.max(s, axis=-1, keepdims=True)
        p = jnp.exp(s - m)
        p = p * pl.reciprocal(jnp.sum(p, axis=-1, keepdims=True), approx=True)
        ctx_heads.append(jnp.dot(p.astype(jnp.bfloat16), vh,
                                 preferred_element_type=jnp.float32))
    ctx = jnp.concatenate(ctx_heads, axis=-1)                 # (S, H) f32

    # Output projection + residual + LayerNorm.
    attn = jnp.dot(ctx.astype(jnp.bfloat16), ow_ref[...],
                   preferred_element_type=jnp.float32) + ob_ref[...]
    h1 = _layernorm(attn + x, g1_ref[...], b1_ref[...])       # (S, H) f32

    # FFN: gelu(h1@W1+b1)@W2+b2, residual, LayerNorm.  [S, FF] stays on-chip.
    f = jnp.dot(h1.astype(jnp.bfloat16), w1_ref[...],
                preferred_element_type=jnp.float32) + fb1_ref[...]
    f = _gelu(f)
    f = jnp.dot(f.astype(jnp.bfloat16), w2_ref[...],
                preferred_element_type=jnp.float32) + fb2_ref[...]
    o_ref[...] = _layernorm(f + h1, g2_ref[...], b2_ref[...])


def encoder_layer(x, lyr, batch, seq):
    M, Hd = x.shape
    scale = 1.0 / float(DH) ** 0.5
    # NOTE: when scaling to real MiniLM dims (S up to 512, FF=1536) on v5e,
    # raise pltpu.CompilerParams(vmem_limit_bytes=...) (16 MiB scoped default).
    return pl.pallas_call(
        functools.partial(encoder_layer_kernel, scale=scale),
        out_shape=jax.ShapeDtypeStruct((M, Hd), jnp.float32),
        grid=(batch,),
        in_specs=[
            pl.BlockSpec((seq, Hd), lambda b: (b, 0)),        # x rows of this batch
            pl.BlockSpec((Hd, 3 * Hd), lambda b: (0, 0)),     # fused QKV weight (resident)
            pl.BlockSpec((1, 3 * Hd), lambda b: (0, 0)),      # fused QKV bias
            pl.BlockSpec((Hd, Hd), lambda b: (0, 0)),         # output proj weight
            pl.BlockSpec((1, Hd), lambda b: (0, 0)),          # output proj bias
            pl.BlockSpec((1, Hd), lambda b: (0, 0)),          # attn LN gamma
            pl.BlockSpec((1, Hd), lambda b: (0, 0)),          # attn LN beta
            pl.BlockSpec((Hd, FF), lambda b: (0, 0)),         # FFN W1
            pl.BlockSpec((1, FF), lambda b: (0, 0)),          # FFN b1
            pl.BlockSpec((FF, Hd), lambda b: (0, 0)),         # FFN W2
            pl.BlockSpec((1, Hd), lambda b: (0, 0)),          # FFN b2
            pl.BlockSpec((1, Hd), lambda b: (0, 0)),          # FFN LN gamma
            pl.BlockSpec((1, Hd), lambda b: (0, 0)),          # FFN LN beta
        ],
        out_specs=pl.BlockSpec((seq, Hd), lambda b: (b, 0)),
        compiler_params=pltpu.CompilerParams(dimension_semantics=("parallel",)),
    )(x, lyr["qkv_w"], lyr["qkv_b"].reshape(1, 3 * Hd),
      lyr["o_w"], lyr["o_b"].reshape(1, Hd),
      lyr["attn_ln_g"].reshape(1, Hd), lyr["attn_ln_b"].reshape(1, Hd),
      lyr["ffn_w1"], lyr["ffn_b1"].reshape(1, FF),
      lyr["ffn_w2"], lyr["ffn_b2"].reshape(1, Hd),
      lyr["ffn_ln_g"].reshape(1, Hd), lyr["ffn_ln_b"].reshape(1, Hd))


def head_kernel(x_ref, pw_ref, pb_ref, cw_ref, cb_ref, o_ref):
    """Fused pooler (dense+tanh on [CLS]) + classifier dense."""
    pooled = jnp.tanh(jnp.dot(x_ref[...].astype(jnp.bfloat16), pw_ref[...],
                              preferred_element_type=jnp.float32) + pb_ref[...])
    o_ref[...] = jnp.dot(pooled.astype(jnp.bfloat16), cw_ref[...],
                         preferred_element_type=jnp.float32) + cb_ref[...]


def pooler_classifier(first_tok, pw, pb, cw, cb):
    Bb, Hd = first_tok.shape
    return pl.pallas_call(
        head_kernel,
        out_shape=jax.ShapeDtypeStruct((Bb, NUM_LABELS), jnp.float32),
        grid=(1,),
        in_specs=[
            pl.BlockSpec((Bb, Hd), lambda i: (0, 0)),
            pl.BlockSpec((Hd, Hd), lambda i: (0, 0)),
            pl.BlockSpec((1, Hd), lambda i: (0, 0)),
            pl.BlockSpec((Hd, NUM_LABELS), lambda i: (0, 0)),
            pl.BlockSpec((1, NUM_LABELS), lambda i: (0, 0)),
        ],
        out_specs=pl.BlockSpec((Bb, NUM_LABELS), lambda i: (0, 0)),
    )(first_tok, pw, pb.reshape(1, Hd), cw, cb.reshape(1, NUM_LABELS))


# ------------------------------ parameters ----------------------------------
def init_params(key):
    keys = iter(jax.random.split(key, 256))

    def w(din, dout, dtype=jnp.bfloat16):
        # Matmul weights stored bf16 (MXU operands); biases/LN/embeddings f32.
        return (jax.random.normal(next(keys), (din, dout), jnp.float32) * 0.02).astype(dtype)

    def emb(n, d):
        return jax.random.normal(next(keys), (n, d), jnp.float32) * 0.02

    params = {
        "word_emb": emb(VOCAB, H),
        "pos_emb": emb(MAX_POS, H),
        "type_emb": emb(TYPE_VOCAB, H),
        "emb_ln_g": jnp.ones((H,), jnp.float32),
        "emb_ln_b": jnp.zeros((H,), jnp.float32),
        "pool_w": w(H, H),
        "pool_b": jnp.zeros((H,), jnp.float32),
        "cls_w": w(H, NUM_LABELS),
        "cls_b": jnp.zeros((NUM_LABELS,), jnp.float32),
        "layers": [],
    }
    for _ in range(NUM_LAYERS):
        q_w, k_w, v_w = w(H, H), w(H, H), w(H, H)
        params["layers"].append({
            # Fused QKV weight [H, 3H] and bias [3H].
            "qkv_w": jnp.concatenate([q_w, k_w, v_w], axis=1),
            "qkv_b": jnp.zeros((3 * H,), jnp.float32),
            "o_w": w(H, H), "o_b": jnp.zeros((H,), jnp.float32),
            "attn_ln_g": jnp.ones((H,), jnp.float32),
            "attn_ln_b": jnp.zeros((H,), jnp.float32),
            "ffn_w1": w(H, FF), "ffn_b1": jnp.zeros((FF,), jnp.float32),
            "ffn_w2": w(FF, H), "ffn_b2": jnp.zeros((H,), jnp.float32),
            "ffn_ln_g": jnp.ones((H,), jnp.float32),
            "ffn_ln_b": jnp.zeros((H,), jnp.float32),
        })
    return params


# ------------------------------ forward pass ---------------------------------
def forward(params, tokens):
    """Returns classification logits [B, NUM_LABELS] (== model.forward(tokens)[0])."""
    Bb, Ss = tokens.shape
    M = Bb * Ss

    # Embeddings: word + position + token_type (token_type_ids default to 0,
    # attention_mask defaults to all-ones -> additive mask is identically 0).
    we = params["word_emb"][tokens].reshape(M, H)              # gather (glue)
    pos_type = params["pos_emb"][:Ss] + params["type_emb"][0][None, :]
    pos_type = jnp.broadcast_to(pos_type[None], (Bb, Ss, H)).reshape(M, H)
    x = add_layernorm(we, pos_type, params["emb_ln_g"], params["emb_ln_b"])
    # TODO(synk): dropout layers treated as identity (no RNG-matching with torch).

    for lyr in params["layers"]:
        x = encoder_layer(x, lyr, Bb, Ss)   # attn + out-proj + LN + FFN + LN (1 launch)

    # Pooler (tanh(dense(hidden[:, 0]))) + classifier, fused into one kernel.
    first_tok = x.reshape(Bb, Ss, H)[:, 0, :]                   # [B, H]
    logits = pooler_classifier(first_tok, params["pool_w"], params["pool_b"],
                               params["cls_w"], params["cls_b"])
    return logits


# ---------------------------------- main -------------------------------------
if __name__ == "__main__":
    key = jax.random.PRNGKey(0)
    kp, kt = jax.random.split(key)
    params = init_params(kp)
    tokens = jax.random.randint(kt, (B, S), 0, VOCAB, dtype=jnp.int32)

    logits = jax.jit(forward)(params, tokens)
    jax.block_until_ready(logits)

    assert logits.shape == (B, NUM_LABELS), logits.shape
    assert logits.dtype == jnp.float32
    print("KERNEL_OK")
</pallas_src>

<mosaic_0001>
module attributes {stable_mosaic.version = 11 : i64} {
  func.func @head_kernel(%arg0: i32, %arg1: memref<2x128xf32, #tpu.memory_space<vmem>>, %arg2: memref<128x128xbf16, #tpu.memory_space<vmem>>, %arg3: memref<1x128xf32, #tpu.memory_space<vmem>>, %arg4: memref<128x2xbf16, #tpu.memory_space<vmem>>, %arg5: memref<1x2xf32, #tpu.memory_space<vmem>>, %arg6: memref<2x2xf32, #tpu.memory_space<vmem>>) attributes {dimension_semantics = [#tpu.dimension_semantics<arbitrary>], iteration_bounds = array<i64: 1>, scalar_prefetch = 0 : i64, scratch_operands = 0 : i64, tpu.core_type = #tpu.core_type<tc>, window_params = [{pipeline_mode = #tpu.pipeline_mode<synchronous>, transform_indices = @transform_0, window_bounds = array<i64: 2, 128>}, {pipeline_mode = #tpu.pipeline_mode<synchronous>, transform_indices = @transform_1, window_bounds = array<i64: 128, 128>}, {pipeline_mode = #tpu.pipeline_mode<synchronous>, transform_indices = @transform_2, window_bounds = array<i64: 1, 128>}, {pipeline_mode = #tpu.pipeline_mode<synchronous>, transform_indices = @transform_3, window_bounds = array<i64: 128, 2>}, {pipeline_mode = #tpu.pipeline_mode<synchronous>, transform_indices = @transform_4, window_bounds = array<i64: 1, 2>}, {pipeline_mode = #tpu.pipeline_mode<synchronous>, transform_indices = @transform_5, window_bounds = array<i64: 2, 2>}]} {
    %c0 = arith.constant 0 : index
    %c0_0 = arith.constant 0 : index
    %0 = vector.load %arg1[%c0, %c0_0] : memref<2x128xf32, #tpu.memory_space<vmem>>, vector<2x128xf32>
    %1 = arith.truncf %0 : vector<2x128xf32> to vector<2x128xbf16>
    %c0_1 = arith.constant 0 : index
    %c0_2 = arith.constant 0 : index
    %2 = vector.load %arg2[%c0_1, %c0_2] : memref<128x128xbf16, #tpu.memory_space<vmem>>, vector<128x128xbf16>
    %cst = arith.constant dense<0.000000e+00> : vector<2x128xf32>
    %3 = tpu.matmul %1, %2, %cst {dimension_numbers = #tpu.dot_dimension_numbers<[1], [0], [0], [1], [0, 0, 1, 1], [], []>} : vector<2x128xbf16>, vector<128x128xbf16>, vector<2x128xf32> -> vector<2x128xf32>
    %c0_3 = arith.constant 0 : index
    %c0_4 = arith.constant 0 : index
    %4 = vector.load %arg3[%c0_3, %c0_4] : memref<1x128xf32, #tpu.memory_space<vmem>>, vector<1x128xf32>
    %5 = vector.broadcast %4 : vector<1x128xf32> to vector<2x128xf32>
    %6 = arith.addf %3, %5 : vector<2x128xf32>
    %7 = math.tanh %6 : vector<2x128xf32>
    %8 = arith.truncf %7 : vector<2x128xf32> to vector<2x128xbf16>
    %c0_5 = arith.constant 0 : index
    %c0_6 = arith.constant 0 : index
    %9 = vector.load %arg4[%c0_5, %c0_6] : memref<128x2xbf16, #tpu.memory_space<vmem>>, vector<128x2xbf16>
    %cst_7 = arith.constant dense<0.000000e+00> : vector<2x2xf32>
    %10 = tpu.matmul %8, %9, %cst_7 {dimension_numbers = #tpu.dot_dimension_numbers<[1], [0], [0], [1], [0, 0, 1, 1], [], []>} : vector<2x128xbf16>, vector<128x2xbf16>, vector<2x2xf32> -> vector<2x2xf32>
    %c0_8 = arith.constant 0 : index
    %c0_9 = arith.constant 0 : index
    %11 = vector.load %arg5[%c0_8, %c0_9] : memref<1x2xf32, #tpu.memory_space<vmem>>, vector<1x2xf32>
    %12 = vector.broadcast %11 : vector<1x2xf32> to vector<2x2xf32>
    %13 = arith.addf %10, %12 : vector<2x2xf32>
    %c0_10 = arith.constant 0 : index
    %c0_11 = arith.constant 0 : index
    %14 = vector.load %arg6[%c0_10, %c0_11] : memref<2x2xf32, #tpu.memory_space<vmem>>, vector<2x2xf32>
    tpu.vector_store %arg6[%c0_10, %c0_11], %13 {strides = array<i32>} : memref<2x2xf32, #tpu.memory_space<vmem>>, vector<2x2xf32>,
    return
  }
  func.func @transform_0(%arg0: i32) -> (i32, i32) {
    %c0_i32 = arith.constant 0 : i32
    %c0_i32_0 = arith.constant 0 : i32
    %c0_i32_1 = arith.constant 0 : i32
    return %c0_i32, %c0_i32_0 : i32, i32
  }
  func.func @transform_1(%arg0: i32) -> (i32, i32) {
    %c0_i32 = arith.constant 0 : i32
    %c0_i32_0 = arith.constant 0 : i32
    %c0_i32_1 = arith.constant 0 : i32
    return %c0_i32, %c0_i32_0 : i32, i32
  }
  func.func @transform_2(%arg0: i32) -> (i32, i32) {
    %c0_i32 = arith.constant 0 : i32
    %c0_i32_0 = arith.constant 0 : i32
    %c0_i32_1 = arith.constant 0 : i32
    return %c0_i32, %c0_i32_0 : i32, i32
  }
  func.func @transform_3(%arg0: i32) -> (i32, i32) {
    %c0_i32 = arith.constant 0 : i32
    %c0_i32_0 = arith.constant 0 : i32
    %c0_i32_1 = arith.constant 0 : i32
    return %c0_i32, %c0_i32_0 : i32, i32
  }
  func.func @transform_4(%arg0: i32) -> (i32, i32) {
    %c0_i32 = arith.constant 0 : i32
    %c0_i32_0 = arith.constant 0 : i32
    %c0_i32_1 = arith.constant 0 : i32
    return %c0_i32, %c0_i32_0 : i32, i32
  }
  func.func @transform_5(%arg0: i32) -> (i32, i32) {
    %c0_i32 = arith.constant 0 : i32
    %c0_i32_0 = arith.constant 0 : i32
    %c0_i32_1 = arith.constant 0 : i32
    return %c0_i32, %c0_i32_0 : i32, i32
  }
}

module attributes {stable_mosaic.version = 11 : i64} {
  func.func @add_ln_kernel(%arg0: i32, %arg1: memref<16x128xf32, #tpu.memory_space<vmem>>, %arg2: memref<16x128xf32, #tpu.memory_space<vmem>>, %arg3: memref<1x128xf32, #tpu.memory_space<vmem>>, %arg4: memref<1x128xf32, #tpu.memory_space<vmem>>, %arg5: memref<16x128xf32, #tpu.memory_space<vmem>>) attributes {dimension_semantics = [#tpu.dimension_semantics<parallel>], iteration_bounds = array<i64: 1>, scalar_prefetch = 0 : i64, scratch_operands = 0 : i64, tpu.core_type = #tpu.core_type<tc>, window_params = [{transform_indices = @transform_0, window_bounds = array<i64: 16, 128>}, {transform_indices = @transform_1, window_bounds = array<i64: 16, 128>}, {pipeline_mode = #tpu.pipeline_mode<synchronous>, transform_indices = @transform_2, window_bounds = array<i64: 1, 128>}, {pipeline_mode = #tpu.pipeline_mode<synchronous>, transform_indices = @transform_3, window_bounds = array<i64: 1, 128>}, {transform_indices = @transform_4, window_bounds = array<i64: 16, 128>}]} {
    %c0 = arith.constant 0 : index
    %c0_0 = arith.constant 0 : index
    %0 = vector.load %arg1[%c0, %c0_0] : memref<16x128xf32, #tpu.memory_space<vmem>>, vector<16x128xf32>
    %c0_1 = arith.constant 0 : index
    %c0_2 = arith.constant 0 : index
    %1 = vector.load %arg2[%c0_1, %c0_2] : memref<16x128xf32, #tpu.memory_space<vmem>>, vector<16x128xf32>
    %2 = arith.addf %0, %1 : vector<16x128xf32>
    %c0_3 = arith.constant 0 : index
    %c0_4 = arith.constant 0 : index
    %3 = vector.load %arg3[%c0_3, %c0_4] : memref<1x128xf32, #tpu.memory_space<vmem>>, vector<1x128xf32>
    %c0_5 = arith.constant 0 : index
    %c0_6 = arith.constant 0 : index
    %4 = vector.load %arg4[%c0_5, %c0_6] : memref<1x128xf32, #tpu.memory_space<vmem>>, vector<1x128xf32>
    %cst = arith.constant dense<0.000000e+00> : vector<16xf32>
    %5 = vector.multi_reduction <add>, %2, %cst [1] : vector<16x128xf32> to vector<16xf32>
    %6 = vector.shape_cast %5 : vector<16xf32> to vector<16x1xf32>
    %cst_7 = arith.constant 1.280000e+02 : f32
    %7 = vector.broadcast %cst_7 : f32 to vector<16x1xf32>
    %8 = arith.divf %6, %7 : vector<16x1xf32>
    %9 = vector.broadcast %8 : vector<16x1xf32> to vector<16x128xf32>
    %10 = arith.subf %2, %9 : vector<16x128xf32>
    %11 = arith.mulf %10, %10 : vector<16x128xf32>
    %cst_8 = arith.constant dense<0.000000e+00> : vector<16xf32>
    %12 = vector.multi_reduction <add>, %11, %cst_8 [1] : vector<16x128xf32> to vector<16xf32>
    %13 = vector.shape_cast %12 : vector<16xf32> to vector<16x1xf32>
    %cst_9 = arith.constant 1.280000e+02 : f32
    %14 = vector.broadcast %cst_9 : f32 to vector<16x1xf32>
    %15 = arith.divf %13, %14 : vector<16x1xf32>
    %16 = vector.broadcast %8 : vector<16x1xf32> to vector<16x128xf32>
    %17 = arith.subf %2, %16 : vector<16x128xf32>
    %cst_10 = arith.constant 9.99999996E-13 : f32
    %18 = vector.broadcast %cst_10 : f32 to vector<16x1xf32>
    %19 = arith.addf %15, %18 : vector<16x1xf32>
    %20 = math.rsqrt %19 : vector<16x1xf32>
    %21 = vector.broadcast %20 : vector<16x1xf32> to vector<16x128xf32>
    %22 = arith.mulf %17, %21 : vector<16x128xf32>
    %23 = vector.broadcast %3 : vector<1x128xf32> to vector<16x128xf32>
    %24 = arith.mulf %22, %23 : vector<16x128xf32>
    %25 = vector.broadcast %4 : vector<1x128xf32> to vector<16x128xf32>
    %26 = arith.addf %24, %25 : vector<16x128xf32>
    %c0_11 = arith.constant 0 : index
    %c0_12 = arith.constant 0 : index
    %27 = vector.load %arg5[%c0_11, %c0_12] : memref<16x128xf32, #tpu.memory_space<vmem>>, vector<16x128xf32>
    tpu.vector_store %arg5[%c0_11, %c0_12], %26 {strides = array<i32>} : memref<16x128xf32, #tpu.memory_space<vmem>>, vector<16x128xf32>,
    return
  }
  func.func @transform_0(%arg0: i32) -> (i32, i32) {
    %c0_i32 = arith.constant 0 : i32
    %c0_i32_0 = arith.constant 0 : i32
    return %arg0, %c0_i32 : i32, i32
  }
  func.func @transform_1(%arg0: i32) -> (i32, i32) {
    %c0_i32 = arith.constant 0 : i32
    %c0_i32_0 = arith.constant 0 : i32
    return %arg0, %c0_i32 : i32, i32
  }
  func.func @transform_2(%arg0: i32) -> (i32, i32) {
    %c0_i32 = arith.constant 0 : i32
    %c0_i32_0 = arith.constant 0 : i32
    %c0_i32_1 = arith.constant 0 : i32
    return %c0_i32, %c0_i32_0 : i32, i32
  }
  func.func @transform_3(%arg0: i32) -> (i32, i32) {
    %c0_i32 = arith.constant 0 : i32
    %c0_i32_0 = arith.constant 0 : i32
    %c0_i32_1 = arith.constant 0 : i32
    return %c0_i32, %c0_i32_0 : i32, i32
  }
  func.func @transform_4(%arg0: i32) -> (i32, i32) {
    %c0_i32 = arith.constant 0 : i32
    %c0_i32_0 = arith.constant 0 : i32
    return %arg0, %c0_i32 : i32, i32
  }
}

module attributes {stable_mosaic.version = 11 : i64} {
  func.func @encoder_layer_kernel(%arg0: i32, %arg1: memref<8x128xf32, #tpu.memory_space<vmem>>, %arg2: memref<128x384xbf16, #tpu.memory_space<vmem>>, %arg3: memref<1x384xf32, #tpu.memory_space<vmem>>, %arg4: memref<128x128xbf16, #tpu.memory_space<vmem>>, %arg5: memref<1x128xf32, #tpu.memory_space<vmem>>, %arg6: memref<1x128xf32, #tpu.memory_space<vmem>>, %arg7: memref<1x128xf32, #tpu.memory_space<vmem>>, %arg8: memref<128x512xbf16, #tpu.memory_space<vmem>>, %arg9: memref<1x512xf32, #tpu.memory_space<vmem>>, %arg10: memref<512x128xbf16, #tpu.memory_space<vmem>>, %arg11: memref<1x128xf32, #tpu.memory_space<vmem>>, %arg12: memref<1x128xf32, #tpu.memory_space<vmem>>, %arg13: memref<1x128xf32, #tpu.memory_space<vmem>>, %arg14: memref<8x128xf32, #tpu.memory_space<vmem>>) attributes {dimension_semantics = [#tpu.dimension_semantics<parallel>], iteration_bounds = array<i64: 2>, scalar_prefetch = 0 : i64, scratch_operands = 0 : i64, tpu.core_type = #tpu.core_type<tc>, window_params = [{transform_indices = @transform_0, window_bounds = array<i64: 8, 128>}, {pipeline_mode = #tpu.pipeline_mode<synchronous>, transform_indices = @transform_1, window_bounds = array<i64: 128, 384>}, {pipeline_mode = #tpu.pipeline_mode<synchronous>, transform_indices = @transform_2, window_bounds = array<i64: 1, 384>}, {pipeline_mode = #tpu.pipeline_mode<synchronous>, transform_indices = @transform_3, window_bounds = array<i64: 128, 128>}, {pipeline_mode = #tpu.pipeline_mode<synchronous>, transform_indices = @transform_4, window_bounds = array<i64: 1, 128>}, {pipeline_mode = #tpu.pipeline_mode<synchronous>, transform_indices = @transform_5, window_bounds = array<i64: 1, 128>}, {pipeline_mode = #tpu.pipeline_mode<synchronous>, transform_indices = @transform_6, window_bounds = array<i64: 1, 128>}, {pipeline_mode = #tpu.pipeline_mode<synchronous>, transform_indices = @transform_7, window_bounds = array<i64: 128, 512>}, {pipeline_mode = #tpu.pipeline_mode<synchronous>, transform_indices = @transform_8, window_bounds = array<i64: 1, 512>}, {pipeline_mode = #tpu.pipeline_mode<synchronous>, transform_indices = @transform_9, window_bounds = array<i64: 512, 128>}, {pipeline_mode = #tpu.pipeline_mode<synchronous>, transform_indices = @transform_10, window_bounds = array<i64: 1, 128>}, {pipeline_mode = #tpu.pipeline_mode<synchronous>, transform_indices = @transform_11, window_bounds = array<i64: 1, 128>}, {pipeline_mode = #tpu.pipeline_mode<synchronous>, transform_indices = @transform_12, window_bounds = array<i64: 1, 128>}, {transform_indices = @transform_13, window_bounds = array<i64: 8, 128>}]} {
    %c0 = arith.constant 0 : index
    %c0_0 = arith.constant 0 : index
    %0 = vector.load %arg1[%c0, %c0_0] : memref<8x128xf32, #tpu.memory_space<vmem>>, vector<8x128xf32>
    %1 = arith.truncf %0 : vector<8x128xf32> to vector<8x128xbf16>
    %c0_1 = arith.constant 0 : index
    %c0_2 = arith.constant 0 : index
    %2 = vector.load %arg2[%c0_1, %c0_2] : memref<128x384xbf16, #tpu.memory_space<vmem>>, vector<128x384xbf16>
    %cst = arith.constant dense<0.000000e+00> : vector<8x384xf32>
    %3 = tpu.matmul %1, %2, %cst {dimension_numbers = #tpu.dot_dimension_numbers<[1], [0], [0], [1], [0, 0, 1, 1], [], []>} : vector<8x128xbf16>, vector<128x384xbf16>, vector<8x384xf32> -> vector<8x384xf32>
    %c0_3 = arith.constant 0 : index
    %c0_4 = arith.constant 0 : index
    %4 = vector.load %arg3[%c0_3, %c0_4] : memref<1x384xf32, #tpu.memory_space<vmem>>, vector<1x384xf32>
    %5 = vector.broadcast %4 : vector<1x384xf32> to vector<8x384xf32>
    %6 = arith.addf %3, %5 : vector<8x384xf32>
    %7 = vector.extract_strided_slice %6 {offsets = [0, 0], sizes = [8, 128], strides = [1, 1]} : vector<8x384xf32> to vector<8x128xf32>
    %8 = vector.extract_strided_slice %6 {offsets = [0, 128], sizes = [8, 128], strides = [1, 1]} : vector<8x384xf32> to vector<8x128xf32>
    %9 = vector.extract_strided_slice %6 {offsets = [0, 256], sizes = [8, 128], strides = [1, 1]} : vector<8x384xf32> to vector<8x128xf32>
    %10 = vector.extract_strided_slice %7 {offsets = [0, 0], sizes = [8, 32], strides = [1, 1]} : vector<8x128xf32> to vector<8x32xf32>
    %11 = arith.truncf %10 : vector<8x32xf32> to vector<8x32xbf16>
    %12 = vector.extract_strided_slice %8 {offsets = [0, 0], sizes = [8, 32], strides = [1, 1]} : vector<8x128xf32> to vector<8x32xf32>
    %13 = arith.truncf %12 : vector<8x32xf32> to vector<8x32xbf16>
    %14 = vector.extract_strided_slice %9 {offsets = [0, 0], sizes = [8, 32], strides = [1, 1]} : vector<8x128xf32> to vector<8x32xf32>
    %15 = arith.truncf %14 : vector<8x32xf32> to vector<8x32xbf16>
    %cst_5 = arith.constant dense<0.000000e+00> : vector<8x8xf32>
    %16 = tpu.matmul %11, %13, %cst_5 {dimension_numbers = #tpu.dot_dimension_numbers<[1], [1], [0], [0], [0, 0, 1, 0], [], []>} : vector<8x32xbf16>, vector<8x32xbf16>, vector<8x8xf32> -> vector<8x8xf32>
    %cst_6 = arith.constant 0.176776692 : f32
    %17 = vector.broadcast %cst_6 : f32 to vector<8x8xf32>
    %18 = arith.mulf %16, %17 : vector<8x8xf32>
    %cst_7 = arith.constant dense<0xFF800000> : vector<8xf32>
    %19 = vector.multi_reduction <maximumf>, %18, %cst_7 [1] : vector<8x8xf32> to vector<8xf32>
    %20 = vector.shape_cast %19 : vector<8xf32> to vector<8x1xf32>
    %21 = vector.broadcast %20 : vector<8x1xf32> to vector<8x8xf32>
    %22 = arith.subf %18, %21 : vector<8x8xf32>
    %23 = math.exp %22 : vector<8x8xf32>
    %cst_8 = arith.constant dense<0.000000e+00> : vector<8xf32>
    %24 = vector.multi_reduction <add>, %23, %cst_8 [1] : vector<8x8xf32> to vector<8xf32>
    %25 = vector.shape_cast %24 : vector<8xf32> to vector<8x1xf32>
    %26 = tpu.reciprocal %25 {approx = true} : vector<8x1xf32> -> vector<8x1xf32>
    %27 = vector.broadcast %26 : vector<8x1xf32> to vector<8x8xf32>
    %28 = arith.mulf %23, %27 : vector<8x8xf32>
    %29 = arith.truncf %28 : vector<8x8xf32> to vector<8x8xbf16>
    %cst_9 = arith.constant dense<0.000000e+00> : vector<8x32xf32>
    %30 = tpu.matmul %29, %15, %cst_9 {dimension_numbers = #tpu.dot_dimension_numbers<[1], [0], [0], [1], [0, 0, 1, 1], [], []>} : vector<8x8xbf16>, vector<8x32xbf16>, vector<8x32xf32> -> vector<8x32xf32>
    %31 = vector.extract_strided_slice %7 {offsets = [0, 32], sizes = [8, 32], strides = [1, 1]} : vector<8x128xf32> to vector<8x32xf32>
    %32 = arith.truncf %31 : vector<8x32xf32> to vector<8x32xbf16>
    %33 = vector.extract_strided_slice %8 {offsets = [0, 32], sizes = [8, 32], strides = [1, 1]} : vector<8x128xf32> to vector<8x32xf32>
    %34 = arith.truncf %33 : vector<8x32xf32> to vector<8x32xbf16>
    %35 = vector.extract_strided_slice %9 {offsets = [0, 32], sizes = [8, 32], strides = [1, 1]} : vector<8x128xf32> to vector<8x32xf32>
    %36 = arith.truncf %35 : vector<8x32xf32> to vector<8x32xbf16>
    %cst_10 = arith.constant dense<0.000000e+00> : vector<8x8xf32>
    %37 = tpu.matmul %32, %34, %cst_10 {dimension_numbers = #tpu.dot_dimension_numbers<[1], [1], [0], [0], [0, 0, 1, 0], [], []>} : vector<8x32xbf16>, vector<8x32xbf16>, vector<8x8xf32> -> vector<8x8xf32>
    %cst_11 = arith.constant 0.176776692 : f32
    %38 = vector.broadcast %cst_11 : f32 to vector<8x8xf32>
    %39 = arith.mulf %37, %38 : vector<8x8xf32>
    %cst_12 = arith.constant dense<0xFF800000> : vector<8xf32>
    %40 = vector.multi_reduction <maximumf>, %39, %cst_12 [1] : vector<8x8xf32> to vector<8xf32>
    %41 = vector.shape_cast %40 : vector<8xf32> to vector<8x1xf32>
    %42 = vector.broadcast %41 : vector<8x1xf32> to vector<8x8xf32>
    %43 = arith.subf %39, %42 : vector<8x8xf32>
    %44 = math.exp %43 : vector<8x8xf32>
    %cst_13 = arith.constant dense<0.000000e+00> : vector<8xf32>
    %45 = vector.multi_reduction <add>, %44, %cst_13 [1] : vector<8x8xf32> to vector<8xf32>
    %46 = vector.shape_cast %45 : vector<8xf32> to vector<8x1xf32>
    %47 = tpu.reciprocal %46 {approx = true} : vector<8x1xf32> -> vector<8x1xf32>
    %48 = vector.broadcast %47 : vector<8x1xf32> to vector<8x8xf32>
    %49 = arith.mulf %44, %48 : vector<8x8xf32>
    %50 = arith.truncf %49 : vector<8x8xf32> to vector<8x8xbf16>
    %cst_14 = arith.constant dense<0.000000e+00> : vector<8x32xf32>
    %51 = tpu.matmul %50, %36, %cst_14 {dimension_numbers = #tpu.dot_dimension_numbers<[1], [0], [0], [1], [0, 0, 1, 1], [], []>} : vector<8x8xbf16>, vector<8x32xbf16>, vector<8x32xf32> -> vector<8x32xf32>
    %52 = vector.extract_strided_slice %7 {offsets = [0, 64], sizes = [8, 32], strides = [1, 1]} : vector<8x128xf32> to vector<8x32xf32>
    %53 = arith.truncf %52 : vector<8x32xf32> to vector<8x32xbf16>
    %54 = vector.extract_strided_slice %8 {offsets = [0, 64], sizes = [8, 32], strides = [1, 1]} : vector<8x128xf32> to vector<8x32xf32>
    %55 = arith.truncf %54 : vector<8x32xf32> to vector<8x32xbf16>
    %56 = vector.extract_strided_slice %9 {offsets = [0, 64], sizes = [8, 32], strides = [1, 1]} : vector<8x128xf32> to vector<8x32xf32>
    %57 = arith.truncf %56 : vector<8x32xf32> to vector<8x32xbf16>
    %cst_15 = arith.constant dense<0.000000e+00> : vector<8x8xf32>
    %58 = tpu.matmul %53, %55, %cst_15 {dimension_numbers = #tpu.dot_dimension_numbers<[1], [1], [0], [0], [0, 0, 1, 0], [], []>} : vector<8x32xbf16>, vector<8x32xbf16>, vector<8x8xf32> -> vector<8x8xf32>
    %cst_16 = arith.constant 0.176776692 : f32
    %59 = vector.broadcast %cst_16 : f32 to vector<8x8xf32>
    %60 = arith.mulf %58, %59 : vector<8x8xf32>
    %cst_17 = arith.constant dense<0xFF800000> : vector<8xf32>
    %61 = vector.multi_reduction <maximumf>, %60, %cst_17 [1] : vector<8x8xf32> to vector<8xf32>
    %62 = vector.shape_cast %61 : vector<8xf32> to vector<8x1xf32>
    %63 = vector.broadcast %62 : vector<8x1xf32> to vector<8x8xf32>
    %64 = arith.subf %60, %63 : vector<8x8xf32>
    %65 = math.exp %64 : vector<8x8xf32>
    %cst_18 = arith.constant dense<0.000000e+00> : vector<8xf32>
    %66 = vector.multi_reduction <add>, %65, %cst_18 [1] : vector<8x8xf32> to vector<8xf32>
    %67 = vector.shape_cast %66 : vector<8xf32> to vector<8x1xf32>
    %68 = tpu.reciprocal %67 {approx = true} : vector<8x1xf32> -> vector<8x1xf32>
    %69 = vector.broadcast %68 : vector<8x1xf32> to vector<8x8xf32>
    %70 = arith.mulf %65, %69 : vector<8x8xf32>
    %71 = arith.truncf %70 : vector<8x8xf32> to vector<8x8xbf16>
    %cst_19 = arith.constant dense<0.000000e+00> : vector<8x32xf32>
    %72 = tpu.matmul %71, %57, %cst_19 {dimension_numbers = #tpu.dot_dimension_numbers<[1], [0], [0], [1], [0, 0, 1, 1], [], []>} : vector<8x8xbf16>, vector<8x32xbf16>, vector<8x32xf32> -> vector<8x32xf32>
    %73 = vector.extract_strided_slice %7 {offsets = [0, 96], sizes = [8, 32], strides = [1, 1]} : vector<8x128xf32> to vector<8x32xf32>
    %74 = arith.truncf %73 : vector<8x32xf32> to vector<8x32xbf16>
    %75 = vector.extract_strided_slice %8 {offsets = [0, 96], sizes = [8, 32], strides = [1, 1]} : vector<8x128xf32> to vector<8x32xf32>
    %76 = arith.truncf %75 : vector<8x32xf32> to vector<8x32xbf16>
    %77 = vector.extract_strided_slice %9 {offsets = [0, 96], sizes = [8, 32], strides = [1, 1]} : vector<8x128xf32> to vector<8x32xf32>
    %78 = arith.truncf %77 : vector<8x32xf32> to vector<8x32xbf16>
    %cst_20 = arith.constant dense<0.000000e+00> : vector<8x8xf32>
    %79 = tpu.matmul %74, %76, %cst_20 {dimension_numbers = #tpu.dot_dimension_numbers<[1], [1], [0], [0], [0, 0, 1, 0], [], []>} : vector<8x32xbf16>, vector<8x32xbf16>, vector<8x8xf32> -> vector<8x8xf32>
    %cst_21 = arith.constant 0.176776692 : f32
    %80 = vector.broadcast %cst_21 : f32 to vector<8x8xf32>
    %81 = arith.mulf %79, %80 : vector<8x8xf32>
    %cst_22 = arith.constant dense<0xFF800000> : vector<8xf32>
    %82 = vector.multi_reduction <maximumf>, %81, %cst_22 [1] : vector<8x8xf32> to vector<8xf32>
    %83 = vector.shape_cast %82 : vector<8xf32> to vector<8x1xf32>
    %84 = vector.broadcast %83 : vector<8x1xf32> to vector<8x8xf32>
    %85 = arith.subf %81, %84 : vector<8x8xf32>
    %86 = math.exp %85 : vector<8x8xf32>
    %cst_23 = arith.constant dense<0.000000e+00> : vector<8xf32>
    %87 = vector.multi_reduction <add>, %86, %cst_23 [1] : vector<8x8xf32> to vector<8xf32>
    %88 = vector.shape_cast %87 : vector<8xf32> to vector<8x1xf32>
    %89 = tpu.reciprocal %88 {approx = true} : vector<8x1xf32> -> vector<8x1xf32>
    %90 = vector.broadcast %89 : vector<8x1xf32> to vector<8x8xf32>
    %91 = arith.mulf %86, %90 : vector<8x8xf32>
    %92 = arith.truncf %91 : vector<8x8xf32> to vector<8x8xbf16>
    %cst_24 = arith.constant dense<0.000000e+00> : vector<8x32xf32>
    %93 = tpu.matmul %92, %78, %cst_24 {dimension_numbers = #tpu.dot_dimension_numbers<[1], [0], [0], [1], [0, 0, 1, 1], [], []>} : vector<8x8xbf16>, vector<8x32xbf16>, vector<8x32xf32> -> vector<8x32xf32>
    %94 = tpu.concatenate %30, %51, %72, %93 in 1 : vector<8x32xf32>, vector<8x32xf32>, vector<8x32xf32>, vector<8x32xf32> -> vector<8x128xf32>
    %95 = arith.truncf %94 : vector<8x128xf32> to vector<8x128xbf16>
    %c0_25 = arith.constant 0 : index
    %c0_26 = arith.constant 0 : index
    %96 = vector.load %arg4[%c0_25, %c0_26] : memref<128x128xbf16, #tpu.memory_space<vmem>>, vector<128x128xbf16>
    %cst_27 = arith.constant dense<0.000000e+00> : vector<8x128xf32>
    %97 = tpu.matmul %95, %96, %cst_27 {dimension_numbers = #tpu.dot_dimension_numbers<[1], [0], [0], [1], [0, 0, 1, 1], [], []>} : vector<8x128xbf16>, vector<128x128xbf16>, vector<8x128xf32> -> vector<8x128xf32>
    %c0_28 = arith.constant 0 : index
    %c0_29 = arith.constant 0 : index
    %98 = vector.load %arg5[%c0_28, %c0_29] : memref<1x128xf32, #tpu.memory_space<vmem>>, vector<1x128xf32>
    %99 = vector.broadcast %98 : vector<1x128xf32> to vector<8x128xf32>
    %100 = arith.addf %97, %99 : vector<8x128xf32>
    %101 = arith.addf %100, %0 : vector<8x128xf32>
    %c0_30 = arith.constant 0 : index
    %c0_31 = arith.constant 0 : index
    %102 = vector.load %arg6[%c0_30, %c0_31] : memref<1x128xf32, #tpu.memory_space<vmem>>, vector<1x128xf32>
    %c0_32 = arith.constant 0 : index
    %c0_33 = arith.constant 0 : index
    %103 = vector.load %arg7[%c0_32, %c0_33] : memref<1x128xf32, #tpu.memory_space<vmem>>, vector<1x128xf32>
    %cst_34 = arith.constant dense<0.000000e+00> : vector<8xf32>
    %104 = vector.multi_reduction <add>, %101, %cst_34 [1] : vector<8x128xf32> to vector<8xf32>
    %105 = vector.shape_cast %104 : vector<8xf32> to vector<8x1xf32>
    %cst_35 = arith.constant 1.280000e+02 : f32
    %106 = vector.broadcast %cst_35 : f32 to vector<8x1xf32>
    %107 = arith.divf %105, %106 : vector<8x1xf32>
    %108 = vector.broadcast %107 : vector<8x1xf32> to vector<8x128xf32>
    %109 = arith.subf %101, %108 : vector<8x128xf32>
    %110 = arith.mulf %109, %109 : vector<8x128xf32>
    %cst_36 = arith.constant dense<0.000000e+00> : vector<8xf32>
    %111 = vector.multi_reduction <add>, %110, %cst_36 [1] : vector<8x128xf32> to vector<8xf32>
    %112 = vector.shape_cast %111 : vector<8xf32> to vector<8x1xf32>
    %cst_37 = arith.constant 1.280000e+02 : f32
    %113 = vector.broadcast %cst_37 : f32 to vector<8x1xf32>
    %114 = arith.divf %112, %113 : vector<8x1xf32>
    %115 = vector.broadcast %107 : vector<8x1xf32> to vector<8x128xf32>
    %116 = arith.subf %101, %115 : vector<8x128xf32>
    %cst_38 = arith.constant 9.99999996E-13 : f32
    %117 = vector.broadcast %cst_38 : f32 to vector<8x1xf32>
    %118 = arith.addf %114, %117 : vector<8x1xf32>
    %119 = math.rsqrt %118 : vector<8x1xf32>
    %120 = vector.broadcast %119 : vector<8x1xf32> to vector<8x128xf32>
    %121 = arith.mulf %116, %120 : vector<8x128xf32>
    %122 = vector.broadcast %102 : vector<1x128xf32> to vector<8x128xf32>
    %123 = arith.mulf %121, %122 : vector<8x128xf32>
    %124 = vector.broadcast %103 : vector<1x128xf32> to vector<8x128xf32>
    %125 = arith.addf %123, %124 : vector<8x128xf32>
    %126 = arith.truncf %125 : vector<8x128xf32> to vector<8x128xbf16>
    %c0_39 = arith.constant 0 : index
    %c0_40 = arith.constant 0 : index
    %127 = vector.load %arg8[%c0_39, %c0_40] : memref<128x512xbf16, #tpu.memory_space<vmem>>, vector<128x512xbf16>
    %cst_41 = arith.constant dense<0.000000e+00> : vector<8x512xf32>
    %128 = tpu.matmul %126, %127, %cst_41 {dimension_numbers = #tpu.dot_dimension_numbers<[1], [0], [0], [1], [0, 0, 1, 1], [], []>} : vector<8x128xbf16>, vector<128x512xbf16>, vector<8x512xf32> -> vector<8x512xf32>
    %c0_42 = arith.constant 0 : index
    %c0_43 = arith.constant 0 : index
    %129 = vector.load %arg9[%c0_42, %c0_43] : memref<1x512xf32, #tpu.memory_space<vmem>>, vector<1x512xf32>
    %130 = vector.broadcast %129 : vector<1x512xf32> to vector<8x512xf32>
    %131 = arith.addf %128, %130 : vector<8x512xf32>
    %cst_44 = arith.constant 0.636619746 : f32
    %132 = math.sqrt %cst_44 : f32
    %cst_45 = arith.constant 5.000000e-01 : f32
    %133 = vector.broadcast %cst_45 : f32 to vector<8x512xf32>
    %134 = arith.mulf %133, %131 : vector<8x512xf32>
    %cst_46 = arith.constant 4.471500e-02 : f32
    %135 = vector.broadcast %cst_46 : f32 to vector<8x512xf32>
    %136 = arith.mulf %135, %131 : vector<8x512xf32>
    %137 = arith.mulf %136, %131 : vector<8x512xf32>
    %138 = arith.mulf %137, %131 : vector<8x512xf32>
    %139 = arith.addf %131, %138 : vector<8x512xf32>
    %140 = vector.broadcast %132 : f32 to vector<8x512xf32>
    %141 = arith.mulf %140, %139 : vector<8x512xf32>
    %142 = math.tanh %141 : vector<8x512xf32>
    %cst_47 = arith.constant 1.000000e+00 : f32
    %143 = vector.broadcast %cst_47 : f32 to vector<8x512xf32>
    %144 = arith.addf %143, %142 : vector<8x512xf32>
    %145 = arith.mulf %134, %144 : vector<8x512xf32>
    %146 = arith.truncf %145 : vector<8x512xf32> to vector<8x512xbf16>
    %c0_48 = arith.constant 0 : index
    %c0_49 = arith.constant 0 : index
    %147 = vector.load %arg10[%c0_48, %c0_49] : memref<512x128xbf16, #tpu.memory_space<vmem>>, vector<512x128xbf16>
    %cst_50 = arith.constant dense<0.000000e+00> : vector<8x128xf32>
    %148 = tpu.matmul %146, %147, %cst_50 {dimension_numbers = #tpu.dot_dimension_numbers<[1], [0], [0], [1], [0, 0, 1, 1], [], []>} : vector<8x512xbf16>, vector<512x128xbf16>, vector<8x128xf32> -> vector<8x128xf32>
    %c0_51 = arith.constant 0 : index
    %c0_52 = arith.constant 0 : index
    %149 = vector.load %arg11[%c0_51, %c0_52] : memref<1x128xf32, #tpu.memory_space<vmem>>, vector<1x128xf32>
    %150 = vector.broadcast %149 : vector<1x128xf32> to vector<8x128xf32>
    %151 = arith.addf %148, %150 : vector<8x128xf32>
    %152 = arith.addf %151, %125 : vector<8x128xf32>
    %c0_53 = arith.constant 0 : index
    %c0_54 = arith.constant 0 : index
    %153 = vector.load %arg12[%c0_53, %c0_54] : memref<1x128xf32, #tpu.memory_space<vmem>>, vector<1x128xf32>
    %c0_55 = arith.constant 0 : index
    %c0_56 = arith.constant 0 : index
    %154 = vector.load %arg13[%c0_55, %c0_56] : memref<1x128xf32, #tpu.memory_space<vmem>>, vector<1x128xf32>
    %cst_57 = arith.constant dense<0.000000e+00> : vector<8xf32>
    %155 = vector.multi_reduction <add>, %152, %cst_57 [1] : vector<8x128xf32> to vector<8xf32>
    %156 = vector.shape_cast %155 : vector<8xf32> to vector<8x1xf32>
    %cst_58 = arith.constant 1.280000e+02 : f32
    %157 = vector.broadcast %cst_58 : f32 to vector<8x1xf32>
    %158 = arith.divf %156, %157 : vector<8x1xf32>
    %159 = vector.broadcast %158 : vector<8x1xf32> to vector<8x128xf32>
    %160 = arith.subf %152, %159 : vector<8x128xf32>
    %161 = arith.mulf %160, %160 : vector<8x128xf32>
    %cst_59 = arith.constant dense<0.000000e+00> : vector<8xf32>
    %162 = vector.multi_reduction <add>, %161, %cst_59 [1] : vector<8x128xf32> to vector<8xf32>
    %163 = vector.shape_cast %162 : vector<8xf32> to vector<8x1xf32>
    %cst_60 = arith.constant 1.280000e+02 : f32
    %164 = vector.broadcast %cst_60 : f32 to vector<8x1xf32>
    %165 = arith.divf %163, %164 : vector<8x1xf32>
    %166 = vector.broadcast %158 : vector<8x1xf32> to vector<8x128xf32>
    %167 = arith.subf %152, %166 : vector<8x128xf32>
    %cst_61 = arith.constant 9.99999996E-13 : f32
    %168 = vector.broadcast %cst_61 : f32 to vector<8x1xf32>
    %169 = arith.addf %165, %168 : vector<8x1xf32>
    %170 = math.rsqrt %169 : vector<8x1xf32>
    %171 = vector.broadcast %170 : vector<8x1xf32> to vector<8x128xf32>
    %172 = arith.mulf %167, %171 : vector<8x128xf32>
    %173 = vector.broadcast %153 : vector<1x128xf32> to vector<8x128xf32>
    %174 = arith.mulf %172, %173 : vector<8x128xf32>
    %175 = vector.broadcast %154 : vector<1x128xf32> to vector<8x128xf32>
    %176 = arith.addf %174, %175 : vector<8x128xf32>
    %c0_62 = arith.constant 0 : index
    %c0_63 = arith.constant 0 : index
    %177 = vector.load %arg14[%c0_62, %c0_63] : memref<8x128xf32, #tpu.memory_space<vmem>>, vector<8x128xf32>
    tpu.vector_store %arg14[%c0_62, %c0_63], %176 {strides = array<i32>} : memref<8x128xf32, #tpu.memory_space<vmem>>, vector<8x128xf32>,
    return
  }
  func.func @transform_0(%arg0: i32) -> (i32, i32) {
    %c0_i32 = arith.constant 0 : i32
    %c0_i32_0 = arith.constant 0 : i32
    return %arg0, %c0_i32 : i32, i32
  }
  func.func @transform_1(%arg0: i32) -> (i32, i32) {
    %c0_i32 = arith.constant 0 : i32
    %c0_i32_0 = arith.constant 0 : i32
    %c0_i32_1 = arith.constant 0 : i32
    return %c0_i32, %c0_i32_0 : i32, i32
  }
  func.func @transform_2(%arg0: i32) -> (i32, i32) {
    %c0_i32 = arith.constant 0 : i32
    %c0_i32_0 = arith.constant 0 : i32
    %c0_i32_1 = arith.constant 0 : i32
    return %c0_i32, %c0_i32_0 : i32, i32
  }
  func.func @transform_3(%arg0: i32) -> (i32, i32) {
    %c0_i32 = arith.constant 0 : i32
    %c0_i32_0 = arith.constant 0 : i32
    %c0_i32_1 = arith.constant 0 : i32
    return %c0_i32, %c0_i32_0 : i32, i32
  }
  func.func @transform_4(%arg0: i32) -> (i32, i32) {
    %c0_i32 = arith.constant 0 : i32
    %c0_i32_0 = arith.constant 0 : i32
    %c0_i32_1 = arith.constant 0 : i32
    return %c0_i32, %c0_i32_0 : i32, i32
  }
  func.func @transform_5(%arg0: i32) -> (i32, i32) {
    %c0_i32 = arith.constant 0 : i32
    %c0_i32_0 = arith.constant 0 : i32
    %c0_i32_1 = arith.constant 0 : i32
    return %c0_i32, %c0_i32_0 : i32, i32
  }
  func.func @transform_6(%arg0: i32) -> (i32, i32) {
    %c0_i32 = arith.constant 0 : i32
    %c0_i32_0 = arith.constant 0 : i32
    %c0_i32_1 = arith.constant 0 : i32
    return %c0_i32, %c0_i32_0 : i32, i32
  }
  func.func @transform_7(%arg0: i32) -> (i32, i32) {
    %c0_i32 = arith.constant 0 : i32
    %c0_i32_0 = arith.constant 0 : i32
    %c0_i32_1 = arith.constant 0 : i32
    return %c0_i32, %c0_i32_0 : i32, i32
  }
  func.func @transform_8(%arg0: i32) -> (i32, i32) {
    %c0_i32 = arith.constant 0 : i32
    %c0_i32_0 = arith.constant 0 : i32
    %c0_i32_1 = arith.constant 0 : i32
    return %c0_i32, %c0_i32_0 : i32, i32
  }
  func.func @transform_9(%arg0: i32) -> (i32, i32) {
    %c0_i32 = arith.constant 0 : i32
    %c0_i32_0 = arith.constant 0 : i32
    %c0_i32_1 = arith.constant 0 : i32
    return %c0_i32, %c0_i32_0 : i32, i32
  }
  func.func @transform_10(%arg0: i32) -> (i32, i32) {
    %c0_i32 = arith.constant 0 : i32
    %c0_i32_0 = arith.constant 0 : i32
    %c0_i32_1 = arith.constant 0 : i32
    return %c0_i32, %c0_i32_0 : i32, i32
  }
  func.func @transform_11(%arg0: i32) -> (i32, i32) {
    %c0_i32 = arith.constant 0 : i32
    %c0_i32_0 = arith.constant 0 : i32
    %c0_i32_1 = arith.constant 0 : i32
    return %c0_i32, %c0_i32_0 : i32, i32
  }
  func.func @transform_12(%arg0: i32) -> (i32, i32) {
    %c0_i32 = arith.constant 0 : i32
    %c0_i32_0 = arith.constant 0 : i32
    %c0_i32_1 = arith.constant 0 : i32
    return %c0_i32, %c0_i32_0 : i32, i32
  }
  func.func @transform_13(%arg0: i32) -> (i32, i32) {
    %c0_i32 = arith.constant 0 : i32
    %c0_i32_0 = arith.constant 0 : i32
    return %arg0, %c0_i32 : i32, i32
  }
}

module attributes {stable_mosaic.version = 11 : i64} {
  func.func @encoder_layer_kernel(%arg0: i32, %arg1: memref<8x128xf32, #tpu.memory_space<vmem>>, %arg2: memref<128x384xbf16, #tpu.memory_space<vmem>>, %arg3: memref<1x384xf32, #tpu.memory_space<vmem>>, %arg4: memref<128x128xbf16, #tpu.memory_space<vmem>>, %arg5: memref<1x128xf32, #tpu.memory_space<vmem>>, %arg6: memref<1x128xf32, #tpu.memory_space<vmem>>, %arg7: memref<1x128xf32, #tpu.memory_space<vmem>>, %arg8: memref<128x512xbf16, #tpu.memory_space<vmem>>, %arg9: memref<1x512xf32, #tpu.memory_space<vmem>>, %arg10: memref<512x128xbf16, #tpu.memory_space<vmem>>, %arg11: memref<1x128xf32, #tpu.memory_space<vmem>>, %arg12: memref<1x128xf32, #tpu.memory_space<vmem>>, %arg13: memref<1x128xf32, #tpu.memory_space<vmem>>, %arg14: memref<8x128xf32, #tpu.memory_space<vmem>>) attributes {dimension_semantics = [#tpu.dimension_semantics<parallel>], iteration_bounds = array<i64: 2>, scalar_prefetch = 0 : i64, scratch_operands = 0 : i64, tpu.core_type = #tpu.core_type<tc>, window_params = [{transform_indices = @transform_0, window_bounds = array<i64: 8, 128>}, {pipeline_mode = #tpu.pipeline_mode<synchronous>, transform_indices = @transform_1, window_bounds = array<i64: 128, 384>}, {pipeline_mode = #tpu.pipeline_mode<synchronous>, transform_indices = @transform_2, window_bounds = array<i64: 1, 384>}, {pipeline_mode = #tpu.pipeline_mode<synchronous>, transform_indices = @transform_3, window_bounds = array<i64: 128, 128>}, {pipeline_mode = #tpu.pipeline_mode<synchronous>, transform_indices = @transform_4, window_bounds = array<i64: 1, 128>}, {pipeline_mode = #tpu.pipeline_mode<synchronous>, transform_indices = @transform_5, window_bounds = array<i64: 1, 128>}, {pipeline_mode = #tpu.pipeline_mode<synchronous>, transform_indices = @transform_6, window_bounds = array<i64: 1, 128>}, {pipeline_mode = #tpu.pipeline_mode<synchronous>, transform_indices = @transform_7, window_bounds = array<i64: 128, 512>}, {pipeline_mode = #tpu.pipeline_mode<synchronous>, transform_indices = @transform_8, window_bounds = array<i64: 1, 512>}, {pipeline_mode = #tpu.pipeline_mode<synchronous>, transform_indices = @transform_9, window_bounds = array<i64: 512, 128>}, {pipeline_mode = #tpu.pipeline_mode<synchronous>, transform_indices = @transform_10, window_bounds = array<i64: 1, 128>}, {pipeline_mode = #tpu.pipeline_mode<synchronous>, transform_indices = @transform_11, window_bounds = array<i64: 1, 128>}, {pipeline_mode = #tpu.pipeline_mode<synchronous>, transform_indices = @transform_12, window_bounds = array<i64: 1, 128>}, {transform_indices = @transform_13, window_bounds = array<i64: 8, 128>}]} {
    %c0 = arith.constant 0 : index
    %c0_0 = arith.constant 0 : index
    %0 = vector.load %arg1[%c0, %c0_0] : memref<8x128xf32, #tpu.memory_space<vmem>>, vector<8x128xf32>
    %1 = arith.truncf %0 : vector<8x128xf32> to vector<8x128xbf16>
    %c0_1 = arith.constant 0 : index
    %c0_2 = arith.constant 0 : index
    %2 = vector.load %arg2[%c0_1, %c0_2] : memref<128x384xbf16, #tpu.memory_space<vmem>>, vector<128x384xbf16>
    %cst = arith.constant dense<0.000000e+00> : vector<8x384xf32>
    %3 = tpu.matmul %1, %2, %cst {dimension_numbers = #tpu.dot_dimension_numbers<[1], [0], [0], [1], [0, 0, 1, 1], [], []>} : vector<8x128xbf16>, vector<128x384xbf16>, vector<8x384xf32> -> vector<8x384xf32>
    %c0_3 = arith.constant 0 : index
    %c0_4 = arith.constant 0 : index
    %4 = vector.load %arg3[%c0_3, %c0_4] : memref<1x384xf32, #tpu.memory_space<vmem>>, vector<1x384xf32>
    %5 = vector.broadcast %4 : vector<1x384xf32> to vector<8x384xf32>
    %6 = arith.addf %3, %5 : vector<8x384xf32>
    %7 = vector.extract_strided_slice %6 {offsets = [0, 0], sizes = [8, 128], strides = [1, 1]} : vector<8x384xf32> to vector<8x128xf32>
    %8 = vector.extract_strided_slice %6 {offsets = [0, 128], sizes = [8, 128], strides = [1, 1]} : vector<8x384xf32> to vector<8x128xf32>
    %9 = vector.extract_strided_slice %6 {offsets = [0, 256], sizes = [8, 128], strides = [1, 1]} : vector<8x384xf32> to vector<8x128xf32>
    %10 = vector.extract_strided_slice %7 {offsets = [0, 0], sizes = [8, 32], strides = [1, 1]} : vector<8x128xf32> to vector<8x32xf32>
    %11 = arith.truncf %10 : vector<8x32xf32> to vector<8x32xbf16>
    %12 = vector.extract_strided_slice %8 {offsets = [0, 0], sizes = [8, 32], strides = [1, 1]} : vector<8x128xf32> to vector<8x32xf32>
    %13 = arith.truncf %12 : vector<8x32xf32> to vector<8x32xbf16>
    %14 = vector.extract_strided_slice %9 {offsets = [0, 0], sizes = [8, 32], strides = [1, 1]} : vector<8x128xf32> to vector<8x32xf32>
    %15 = arith.truncf %14 : vector<8x32xf32> to vector<8x32xbf16>
    %cst_5 = arith.constant dense<0.000000e+00> : vector<8x8xf32>
    %16 = tpu.matmul %11, %13, %cst_5 {dimension_numbers = #tpu.dot_dimension_numbers<[1], [1], [0], [0], [0, 0, 1, 0], [], []>} : vector<8x32xbf16>, vector<8x32xbf16>, vector<8x8xf32> -> vector<8x8xf32>
    %cst_6 = arith.constant 0.176776692 : f32
    %17 = vector.broadcast %cst_6 : f32 to vector<8x8xf32>
    %18 = arith.mulf %16, %17 : vector<8x8xf32>
    %cst_7 = arith.constant dense<0xFF800000> : vector<8xf32>
    %19 = vector.multi_reduction <maximumf>, %18, %cst_7 [1] : vector<8x8xf32> to vector<8xf32>
    %20 = vector.shape_cast %19 : vector<8xf32> to vector<8x1xf32>
    %21 = vector.broadcast %20 : vector<8x1xf32> to vector<8x8xf32>
    %22 = arith.subf %18, %21 : vector<8x8xf32>
    %23 = math.exp %22 : vector<8x8xf32>
    %cst_8 = arith.constant dense<0.000000e+00> : vector<8xf32>
    %24 = vector.multi_reduction <add>, %23, %cst_8 [1] : vector<8x8xf32> to vector<8xf32>
    %25 = vector.shape_cast %24 : vector<8xf32> to vector<8x1xf32>
    %26 = tpu.reciprocal %25 {approx = true} : vector<8x1xf32> -> vector<8x1xf32>
    %27 = vector.broadcast %26 : vector<8x1xf32> to vector<8x8xf32>
    %28 = arith.mulf %23, %27 : vector<8x8xf32>
    %29 = arith.truncf %28 : vector<8x8xf32> to vector<8x8xbf16>
    %cst_9 = arith.constant dense<0.000000e+00> : vector<8x32xf32>
    %30 = tpu.matmul %29, %15, %cst_9 {dimension_numbers = #tpu.dot_dimension_numbers<[1], [0], [0], [1], [0, 0, 1, 1], [], []>} : vector<8x8xbf16>, vector<8x32xbf16>, vector<8x32xf32> -> vector<8x32xf32>
    %31 = vector.extract_strided_slice %7 {offsets = [0, 32], sizes = [8, 32], strides = [1, 1]} : vector<8x128xf32> to vector<8x32xf32>
    %32 = arith.truncf %31 : vector<8x32xf32> to vector<8x32xbf16>
    %33 = vector.extract_strided_slice %8 {offsets = [0, 32], sizes = [8, 32], strides = [1, 1]} : vector<8x128xf32> to vector<8x32xf32>
    %34 = arith.truncf %33 : vector<8x32xf32> to vector<8x32xbf16>
    %35 = vector.extract_strided_slice %9 {offsets = [0, 32], sizes = [8, 32], strides = [1, 1]} : vector<8x128xf32> to vector<8x32xf32>
    %36 = arith.truncf %35 : vector<8x32xf32> to vector<8x32xbf16>
    %cst_10 = arith.constant dense<0.000000e+00> : vector<8x8xf32>
    %37 = tpu.matmul %32, %34, %cst_10 {dimension_numbers = #tpu.dot_dimension_numbers<[1], [1], [0], [0], [0, 0, 1, 0], [], []>} : vector<8x32xbf16>, vector<8x32xbf16>, vector<8x8xf32> -> vector<8x8xf32>
    %cst_11 = arith.constant 0.176776692 : f32
    %38 = vector.broadcast %cst_11 : f32 to vector<8x8xf32>
    %39 = arith.mulf %37, %38 : vector<8x8xf32>
    %cst_12 = arith.constant dense<0xFF800000> : vector<8xf32>
    %40 = vector.multi_reduction <maximumf>, %39, %cst_12 [1] : vector<8x8xf32> to vector<8xf32>
    %41 = vector.shape_cast %40 : vector<8xf32> to vector<8x1xf32>
    %42 = vector.broadcast %41 : vector<8x1xf32> to vector<8x8xf32>
    %43 = arith.subf %39, %42 : vector<8x8xf32>
    %44 = math.exp %43 : vector<8x8xf32>
    %cst_13 = arith.constant dense<0.000000e+00> : vector<8xf32>
    %45 = vector.multi_reduction <add>, %44, %cst_13 [1] : vector<8x8xf32> to vector<8xf32>
    %46 = vector.shape_cast %45 : vector<8xf32> to vector<8x1xf32>
    %47 = tpu.reciprocal %46 {approx = true} : vector<8x1xf32> -> vector<8x1xf32>
    %48 = vector.broadcast %47 : vector<8x1xf32> to vector<8x8xf32>
    %49 = arith.mulf %44, %48 : vector<8x8xf32>
    %50 = arith.truncf %49 : vector<8x8xf32> to vector<8x8xbf16>
    %cst_14 = arith.constant dense<0.000000e+00> : vector<8x32xf32>
    %51 = tpu.matmul %50, %36, %cst_14 {dimension_numbers = #tpu.dot_dimension_numbers<[1], [0], [0], [1], [0, 0, 1, 1], [], []>} : vector<8x8xbf16>, vector<8x32xbf16>, vector<8x32xf32> -> vector<8x32xf32>
    %52 = vector.extract_strided_slice %7 {offsets = [0, 64], sizes = [8, 32], strides = [1, 1]} : vector<8x128xf32> to vector<8x32xf32>
    %53 = arith.truncf %52 : vector<8x32xf32> to vector<8x32xbf16>
    %54 = vector.extract_strided_slice %8 {offsets = [0, 64], sizes = [8, 32], strides = [1, 1]} : vector<8x128xf32> to vector<8x32xf32>
    %55 = arith.truncf %54 : vector<8x32xf32> to vector<8x32xbf16>
    %56 = vector.extract_strided_slice %9 {offsets = [0, 64], sizes = [8, 32], strides = [1, 1]} : vector<8x128xf32> to vector<8x32xf32>
    %57 = arith.truncf %56 : vector<8x32xf32> to vector<8x32xbf16>
    %cst_15 = arith.constant dense<0.000000e+00> : vector<8x8xf32>
    %58 = tpu.matmul %53, %55, %cst_15 {dimension_numbers = #tpu.dot_dimension_numbers<[1], [1], [0], [0], [0, 0, 1, 0], [], []>} : vector<8x32xbf16>, vector<8x32xbf16>, vector<8x8xf32> -> vector<8x8xf32>
    %cst_16 = arith.constant 0.176776692 : f32
    %59 = vector.broadcast %cst_16 : f32 to vector<8x8xf32>
    %60 = arith.mulf %58, %59 : vector<8x8xf32>
    %cst_17 = arith.constant dense<0xFF800000> : vector<8xf32>
    %61 = vector.multi_reduction <maximumf>, %60, %cst_17 [1] : vector<8x8xf32> to vector<8xf32>
    %62 = vector.shape_cast %61 : vector<8xf32> to vector<8x1xf32>
    %63 = vector.broadcast %62 : vector<8x1xf32> to vector<8x8xf32>
    %64 = arith.subf %60, %63 : vector<8x8xf32>
    %65 = math.exp %64 : vector<8x8xf32>
    %cst_18 = arith.constant dense<0.000000e+00> : vector<8xf32>
    %66 = vector.multi_reduction <add>, %65, %cst_18 [1] : vector<8x8xf32> to vector<8xf32>
    %67 = vector.shape_cast %66 : vector<8xf32> to vector<8x1xf32>
    %68 = tpu.reciprocal %67 {approx = true} : vector<8x1xf32> -> vector<8x1xf32>
    %69 = vector.broadcast %68 : vector<8x1xf32> to vector<8x8xf32>
    %70 = arith.mulf %65, %69 : vector<8x8xf32>
    %71 = arith.truncf %70 : vector<8x8xf32> to vector<8x8xbf16>
    %cst_19 = arith.constant dense<0.000000e+00> : vector<8x32xf32>
    %72 = tpu.matmul %71, %57, %cst_19 {dimension_numbers = #tpu.dot_dimension_numbers<[1], [0], [0], [1], [0, 0, 1, 1], [], []>} : vector<8x8xbf16>, vector<8x32xbf16>, vector<8x32xf32> -> vector<8x32xf32>
    %73 = vector.extract_strided_slice %7 {offsets = [0, 96], sizes = [8, 32], strides = [1, 1]} : vector<8x128xf32> to vector<8x32xf32>
    %74 = arith.truncf %73 : vector<8x32xf32> to vector<8x32xbf16>
    %75 = vector.extract_strided_slice %8 {offsets = [0, 96], sizes = [8, 32], strides = [1, 1]} : vector<8x128xf32> to vector<8x32xf32>
    %76 = arith.truncf %75 : vector<8x32xf32> to vector<8x32xbf16>
    %77 = vector.extract_strided_slice %9 {offsets = [0, 96], sizes = [8, 32], strides = [1, 1]} : vector<8x128xf32> to vector<8x32xf32>
    %78 = arith.truncf %77 : vector<8x32xf32> to vector<8x32xbf16>
    %cst_20 = arith.constant dense<0.000000e+00> : vector<8x8xf32>
    %79 = tpu.matmul %74, %76, %cst_20 {dimension_numbers = #tpu.dot_dimension_numbers<[1], [1], [0], [0], [0, 0, 1, 0], [], []>} : vector<8x32xbf16>, vector<8x32xbf16>, vector<8x8xf32> -> vector<8x8xf32>
    %cst_21 = arith.constant 0.176776692 : f32
    %80 = vector.broadcast %cst_21 : f32 to vector<8x8xf32>
    %81 = arith.mulf %79, %80 : vector<8x8xf32>
    %cst_22 = arith.constant dense<0xFF800000> : vector<8xf32>
    %82 = vector.multi_reduction <maximumf>, %81, %cst_22 [1] : vector<8x8xf32> to vector<8xf32>
    %83 = vector.shape_cast %82 : vector<8xf32> to vector<8x1xf32>
    %84 = vector.broadcast %83 : vector<8x1xf32> to vector<8x8xf32>
    %85 = arith.subf %81, %84 : vector<8x8xf32>
    %86 = math.exp %85 : vector<8x8xf32>
    %cst_23 = arith.constant dense<0.000000e+00> : vector<8xf32>
    %87 = vector.multi_reduction <add>, %86, %cst_23 [1] : vector<8x8xf32> to vector<8xf32>
    %88 = vector.shape_cast %87 : vector<8xf32> to vector<8x1xf32>
    %89 = tpu.reciprocal %88 {approx = true} : vector<8x1xf32> -> vector<8x1xf32>
    %90 = vector.broadcast %89 : vector<8x1xf32> to vector<8x8xf32>
    %91 = arith.mulf %86, %90 : vector<8x8xf32>
    %92 = arith.truncf %91 : vector<8x8xf32> to vector<8x8xbf16>
    %cst_24 = arith.constant dense<0.000000e+00> : vector<8x32xf32>
    %93 = tpu.matmul %92, %78, %cst_24 {dimension_numbers = #tpu.dot_dimension_numbers<[1], [0], [0], [1], [0, 0, 1, 1], [], []>} : vector<8x8xbf16>, vector<8x32xbf16>, vector<8x32xf32> -> vector<8x32xf32>
    %94 = tpu.concatenate %30, %51, %72, %93 in 1 : vector<8x32xf32>, vector<8x32xf32>, vector<8x32xf32>, vector<8x32xf32> -> vector<8x128xf32>
    %95 = arith.truncf %94 : vector<8x128xf32> to vector<8x128xbf16>
    %c0_25 = arith.constant 0 : index
    %c0_26 = arith.constant 0 : index
    %96 = vector.load %arg4[%c0_25, %c0_26] : memref<128x128xbf16, #tpu.memory_space<vmem>>, vector<128x128xbf16>
    %cst_27 = arith.constant dense<0.000000e+00> : vector<8x128xf32>
    %97 = tpu.matmul %95, %96, %cst_27 {dimension_numbers = #tpu.dot_dimension_numbers<[1], [0], [0], [1], [0, 0, 1, 1], [], []>} : vector<8x128xbf16>, vector<128x128xbf16>, vector<8x128xf32> -> vector<8x128xf32>
    %c0_28 = arith.constant 0 : index
    %c0_29 = arith.constant 0 : index
    %98 = vector.load %arg5[%c0_28, %c0_29] : memref<1x128xf32, #tpu.memory_space<vmem>>, vector<1x128xf32>
    %99 = vector.broadcast %98 : vector<1x128xf32> to vector<8x128xf32>
    %100 = arith.addf %97, %99 : vector<8x128xf32>
    %101 = arith.addf %100, %0 : vector<8x128xf32>
    %c0_30 = arith.constant 0 : index
    %c0_31 = arith.constant 0 : index
    %102 = vector.load %arg6[%c0_30, %c0_31] : memref<1x128xf32, #tpu.memory_space<vmem>>, vector<1x128xf32>
    %c0_32 = arith.constant 0 : index
    %c0_33 = arith.constant 0 : index
    %103 = vector.load %arg7[%c0_32, %c0_33] : memref<1x128xf32, #tpu.memory_space<vmem>>, vector<1x128xf32>
    %cst_34 = arith.constant dense<0.000000e+00> : vector<8xf32>
    %104 = vector.multi_reduction <add>, %101, %cst_34 [1] : vector<8x128xf32> to vector<8xf32>
    %105 = vector.shape_cast %104 : vector<8xf32> to vector<8x1xf32>
    %cst_35 = arith.constant 1.280000e+02 : f32
    %106 = vector.broadcast %cst_35 : f32 to vector<8x1xf32>
    %107 = arith.divf %105, %106 : vector<8x1xf32>
    %108 = vector.broadcast %107 : vector<8x1xf32> to vector<8x128xf32>
    %109 = arith.subf %101, %108 : vector<8x128xf32>
    %110 = arith.mulf %109, %109 : vector<8x128xf32>
    %cst_36 = arith.constant dense<0.000000e+00> : vector<8xf32>
    %111 = vector.multi_reduction <add>, %110, %cst_36 [1] : vector<8x128xf32> to vector<8xf32>
    %112 = vector.shape_cast %111 : vector<8xf32> to vector<8x1xf32>
    %cst_37 = arith.constant 1.280000e+02 : f32
    %113 = vector.broadcast %cst_37 : f32 to vector<8x1xf32>
    %114 = arith.divf %112, %113 : vector<8x1xf32>
    %115 = vector.broadcast %107 : vector<8x1xf32> to vector<8x128xf32>
    %116 = arith.subf %101, %115 : vector<8x128xf32>
    %cst_38 = arith.constant 9.99999996E-13 : f32
    %117 = vector.broadcast %cst_38 : f32 to vector<8x1xf32>
    %118 = arith.addf %114, %117 : vector<8x1xf32>
    %119 = math.rsqrt %118 : vector<8x1xf32>
    %120 = vector.broadcast %119 : vector<8x1xf32> to vector<8x128xf32>
    %121 = arith.mulf %116, %120 : vector<8x128xf32>
    %122 = vector.broadcast %102 : vector<1x128xf32> to vector<8x128xf32>
    %123 = arith.mulf %121, %122 : vector<8x128xf32>
    %124 = vector.broadcast %103 : vector<1x128xf32> to vector<8x128xf32>
    %125 = arith.addf %123, %124 : vector<8x128xf32>
    %126 = arith.truncf %125 : vector<8x128xf32> to vector<8x128xbf16>
    %c0_39 = arith.constant 0 : index
    %c0_40 = arith.constant 0 : index
    %127 = vector.load %arg8[%c0_39, %c0_40] : memref<128x512xbf16, #tpu.memory_space<vmem>>, vector<128x512xbf16>
    %cst_41 = arith.constant dense<0.000000e+00> : vector<8x512xf32>
    %128 = tpu.matmul %126, %127, %cst_41 {dimension_numbers = #tpu.dot_dimension_numbers<[1], [0], [0], [1], [0, 0, 1, 1], [], []>} : vector<8x128xbf16>, vector<128x512xbf16>, vector<8x512xf32> -> vector<8x512xf32>
    %c0_42 = arith.constant 0 : index
    %c0_43 = arith.constant 0 : index
    %129 = vector.load %arg9[%c0_42, %c0_43] : memref<1x512xf32, #tpu.memory_space<vmem>>, vector<1x512xf32>
    %130 = vector.broadcast %129 : vector<1x512xf32> to vector<8x512xf32>
    %131 = arith.addf %128, %130 : vector<8x512xf32>
    %cst_44 = arith.constant 0.636619746 : f32
    %132 = math.sqrt %cst_44 : f32
    %cst_45 = arith.constant 5.000000e-01 : f32
    %133 = vector.broadcast %cst_45 : f32 to vector<8x512xf32>
    %134 = arith.mulf %133, %131 : vector<8x512xf32>
    %cst_46 = arith.constant 4.471500e-02 : f32
    %135 = vector.broadcast %cst_46 : f32 to vector<8x512xf32>
    %136 = arith.mulf %135, %131 : vector<8x512xf32>
    %137 = arith.mulf %136, %131 : vector<8x512xf32>
    %138 = arith.mulf %137, %131 : vector<8x512xf32>
    %139 = arith.addf %131, %138 : vector<8x512xf32>
    %140 = vector.broadcast %132 : f32 to vector<8x512xf32>
    %141 = arith.mulf %140, %139 : vector<8x512xf32>
    %142 = math.tanh %141 : vector<8x512xf32>
    %cst_47 = arith.constant 1.000000e+00 : f32
    %143 = vector.broadcast %cst_47 : f32 to vector<8x512xf32>
    %144 = arith.addf %143, %142 : vector<8x512xf32>
    %145 = arith.mulf %134, %144 : vector<8x512xf32>
    %146 = arith.truncf %145 : vector<8x512xf32> to vector<8x512xbf16>
    %c0_48 = arith.constant 0 : index
    %c0_49 = arith.constant 0 : index
    %147 = vector.load %arg10[%c0_48, %c0_49] : memref<512x128xbf16, #tpu.memory_space<vmem>>, vector<512x128xbf16>
    %cst_50 = arith.constant dense<0.000000e+00> : vector<8x128xf32>
    %148 = tpu.matmul %146, %147, %cst_50 {dimension_numbers = #tpu.dot_dimension_numbers<[1], [0], [0], [1], [0, 0, 1, 1], [], []>} : vector<8x512xbf16>, vector<512x128xbf16>, vector<8x128xf32> -> vector<8x128xf32>
    %c0_51 = arith.constant 0 : index
    %c0_52 = arith.constant 0 : index
    %149 = vector.load %arg11[%c0_51, %c0_52] : memref<1x128xf32, #tpu.memory_space<vmem>>, vector<1x128xf32>
    %150 = vector.broadcast %149 : vector<1x128xf32> to vector<8x128xf32>
    %151 = arith.addf %148, %150 : vector<8x128xf32>
    %152 = arith.addf %151, %125 : vector<8x128xf32>
    %c0_53 = arith.constant 0 : index
    %c0_54 = arith.constant 0 : index
    %153 = vector.load %arg12[%c0_53, %c0_54] : memref<1x128xf32, #tpu.memory_space<vmem>>, vector<1x128xf32>
    %c0_55 = arith.constant 0 : index
    %c0_56 = arith.constant 0 : index
    %154 = vector.load %arg13[%c0_55, %c0_56] : memref<1x128xf32, #tpu.memory_space<vmem>>, vector<1x128xf32>
    %cst_57 = arith.constant dense<0.000000e+00> : vector<8xf32>
    %155 = vector.multi_reduction <add>, %152, %cst_57 [1] : vector<8x128xf32> to vector<8xf32>
    %156 = vector.shape_cast %155 : vector<8xf32> to vector<8x1xf32>
    %cst_58 = arith.constant 1.280000e+02 : f32
    %157 = vector.broadcast %cst_58 : f32 to vector<8x1xf32>
    %158 = arith.divf %156, %157 : vector<8x1xf32>
    %159 = vector.broadcast %158 : vector<8x1xf32> to vector<8x128xf32>
    %160 = arith.subf %152, %159 : vector<8x128xf32>
    %161 = arith.mulf %160, %160 : vector<8x128xf32>
    %cst_59 = arith.constant dense<0.000000e+00> : vector<8xf32>
    %162 = vector.multi_reduction <add>, %161, %cst_59 [1] : vector<8x128xf32> to vector<8xf32>
    %163 = vector.shape_cast %162 : vector<8xf32> to vector<8x1xf32>
    %cst_60 = arith.constant 1.280000e+02 : f32
    %164 = vector.broadcast %cst_60 : f32 to vector<8x1xf32>
    %165 = arith.divf %163, %164 : vector<8x1xf32>
    %166 = vector.broadcast %158 : vector<8x1xf32> to vector<8x128xf32>
    %167 = arith.subf %152, %166 : vector<8x128xf32>
    %cst_61 = arith.constant 9.99999996E-13 : f32
    %168 = vector.broadcast %cst_61 : f32 to vector<8x1xf32>
    %169 = arith.addf %165, %168 : vector<8x1xf32>
    %170 = math.rsqrt %169 : vector<8x1xf32>
    %171 = vector.broadcast %170 : vector<8x1xf32> to vector<8x128xf32>
    %172 = arith.mulf %167, %171 : vector<8x128xf32>
    %173 = vector.broadcast %153 : vector<1x128xf32> to vector<8x128xf32>
    %174 = arith.mulf %172, %173 : vector<8x128xf32>
    %175 = vector.broadcast %154 : vector<1x128xf32> to vector<8x128xf32>
    %176 = arith.addf %174, %175 : vector<8x128xf32>
    %c0_62 = arith.constant 0 : index
    %c0_63 = arith.constant 0 : index
    %177 = vector.load %arg14[%c0_62, %c0_63] : memref<8x128xf32, #tpu.memory_space<vmem>>, vector<8x128xf32>
    tpu.vector_store %arg14[%c0_62, %c0_63], %176 {strides = array<i32>} : memref<8x128xf32, #tpu.memory_space<vmem>>, vector<8x128xf32>,
    return
  }
  func.func @transform_0(%arg0: i32) -> (i32, i32) {
    %c0_i32 = arith.constant 0 : i32
    %c0_i32_0 = arith.constant 0 : i32
    return %arg0, %c0_i32 : i32, i32
  }
  func.func @transform_1(%arg0: i32) -> (i32, i32) {
    %c0_i32 = arith.constant 0 : i32
    %c0_i32_0 = arith.constant 0 : i32
    %c0_i32_1 = arith.constant 0 : i32
    return %c0_i32, %c0_i32_0 : i32, i32
  }
  func.func @transform_2(%arg0: i32) -> (i32, i32) {
    %c0_i32 = arith.constant 0 : i32
    %c0_i32_0 = arith.constant 0 : i32
    %c0_i32_1 = arith.constant 0 : i32
    return %c0_i32, %c0_i32_0 : i32, i32
  }
  func.func @transform_3(%arg0: i32) -> (i32, i32) {
    %c0_i32 = arith.constant 0 : i32
    %c0_i32_0 = arith.constant 0 : i32
    %c0_i32_1 = arith.constant 0 : i32
    return %c0_i32, %c0_i32_0 : i32, i32
  }
  func.func @transform_4(%arg0: i32) -> (i32, i32) {
    %c0_i32 = arith.constant 0 : i32
    %c0_i32_0 = arith.constant 0 : i32
    %c0_i32_1 = arith.constant 0 : i32
    return %c0_i32, %c0_i32_0 : i32, i32
  }
  func.func @transform_5(%arg0: i32) -> (i32, i32) {
    %c0_i32 = arith.constant 0 : i32
    %c0_i32_0 = arith.constant 0 : i32
    %c0_i32_1 = arith.constant 0 : i32
    return %c0_i32, %c0_i32_0 : i32, i32
  }
  func.func @transform_6(%arg0: i32) -> (i32, i32) {
    %c0_i32 = arith.constant 0 : i32
    %c0_i32_0 = arith.constant 0 : i32
    %c0_i32_1 = arith.constant 0 : i32
    return %c0_i32, %c0_i32_0 : i32, i32
  }
  func.func @transform_7(%arg0: i32) -> (i32, i32) {
    %c0_i32 = arith.constant 0 : i32
    %c0_i32_0 = arith.constant 0 : i32
    %c0_i32_1 = arith.constant 0 : i32
    return %c0_i32, %c0_i32_0 : i32, i32
  }
  func.func @transform_8(%arg0: i32) -> (i32, i32) {
    %c0_i32 = arith.constant 0 : i32
    %c0_i32_0 = arith.constant 0 : i32
    %c0_i32_1 = arith.constant 0 : i32
    return %c0_i32, %c0_i32_0 : i32, i32
  }
  func.func @transform_9(%arg0: i32) -> (i32, i32) {
    %c0_i32 = arith.constant 0 : i32
    %c0_i32_0 = arith.constant 0 : i32
    %c0_i32_1 = arith.constant 0 : i32
    return %c0_i32, %c0_i32_0 : i32, i32
  }
  func.func @transform_10(%arg0: i32) -> (i32, i32) {
    %c0_i32 = arith.constant 0 : i32
    %c0_i32_0 = arith.constant 0 : i32
    %c0_i32_1 = arith.constant 0 : i32
    return %c0_i32, %c0_i32_0 : i32, i32
  }
  func.func @transform_11(%arg0: i32) -> (i32, i32) {
    %c0_i32 = arith.constant 0 : i32
    %c0_i32_0 = arith.constant 0 : i32
    %c0_i32_1 = arith.constant 0 : i32
    return %c0_i32, %c0_i32_0 : i32, i32
  }
  func.func @transform_12(%arg0: i32) -> (i32, i32) {
    %c0_i32 = arith.constant 0 : i32
    %c0_i32_0 = arith.constant 0 : i32
    %c0_i32_1 = arith.constant 0 : i32
    return %c0_i32, %c0_i32_0 : i32, i32
  }
  func.func @transform_13(%arg0: i32) -> (i32, i32) {
    %c0_i32 = arith.constant 0 : i32
    %c0_i32_0 = arith.constant 0 : i32
    return %arg0, %c0_i32 : i32, i32
  }
}

</mosaic_0001>

<llo_original>
// kernel: forward.4
$region0: #{forward.4}
  #allocation0 [shape = 'u32[]', space=smem, size = 0x4, offset = 0x4, fixed_abs, tag = 'smem constant byte address 0x4 - core index']
  #allocation1 [shape = 'u32[144,128]{1,0:T(1,128)}', space=vmem, size = 0x12000, scoped, tag = 'internal scratch']
  %s0 = inlined_call_operand.vmem [shape: f32[16,128], index: 0, kind: input, shape index: {}]
  %s1 = inlined_call_operand.vmem [shape: f32[16,128], index: 1, kind: input, shape index: {}]
  %s2 = inlined_call_operand.hbm [shape: f32[1,128], index: 2, kind: input, shape index: {}]
  %s3 = inlined_call_operand.hbm [shape: f32[1,128], index: 3, kind: input, shape index: {}]
  %s4 = inlined_call_operand.vmem [shape: f32[16,128], index: 4, kind: output, shape index: {}]
  %s5 = sld [smem:[#allocation0]]
  $region34: #{forward.4} parent=0
    _
  %s7 = ssub.s32 1, %s5
  %s8 = scalar_select 0, %s7, %s5
  $region1: #{forward.4} parent=0
    #allocation2 [shape = 'u8[512]{0}', space=vmem, size = 0x400, scoped, tag = 'input window, operand 2, single buffered']
    #allocation3 [shape = 's32[1]{0}', space=sflag, size = 0x4, scoped, tag = 'scoped memory for forward.4']
    #allocation4 [shape = 'u8[512]{0}', space=vmem, size = 0x400, scoped, tag = 'input window, operand 3, single buffered']
    #allocation5 [shape = 's32[1]{0}', space=sflag, size = 0x4, scoped, tag = 'scoped memory for forward.4']
    %9 = vsyncpa [#allocation3], 0
    %10 = vsyncpa [#allocation5], 0
    // Predicated region
    $region2: #{forward.4} parent=1 // pred_check
      _
    $region3: #{forward.4} parent=1 // pred_check_branch
      %12 = sbr.rel (0) target = $region5
    $region4: #{forward.4} parent=1 // pred_region
      _
    $region5: #{forward.4} parent=1 // pred_fallthru
      _
    // Predicated region
    $region6: #{forward.4} parent=1 // pred_check
      _
    $region7: #{forward.4} parent=1 // pred_check_branch
      %14 = sbr.rel (0) target = $region9
    $region8: #{forward.4} parent=1 // pred_region
      _
    $region9: #{forward.4} parent=1 // pred_fallthru
      _
    // Predicated region
    $region10: #{forward.4} parent=1 // pred_check
      _
    $region11: #{forward.4} parent=1 // pred_check_branch
      %16 = sbr.rel (0) target = $region13
    $region12: #{forward.4} parent=1 // pred_region
      %s18 = ssub.s32 16, 16
      %19 = vsyncadd [#allocation3], %s18
      %s21 = sshll.u32 [#allocation2], 4
      %s22 = int_to_ptr.vmem [resolvable:$true] %s21
      %24 = dma.hbm_to_vmem [thread:$0]  %s2, 16, %s22, [#allocation3]
    $region13: #{forward.4} parent=1 // pred_fallthru
      _
    // Predicated region
    $region14: #{forward.4} parent=1 // pred_check
      _
    $region15: #{forward.4} parent=1 // pred_check_branch
      %26 = sbr.rel (0) target = $region17
    $region16: #{forward.4} parent=1 // pred_region
      %s28 = ssub.s32 16, 16
      %29 = vsyncadd [#allocation5], %s28
      %s31 = sshll.u32 [#allocation4], 4
      %s32 = int_to_ptr.vmem [resolvable:$true] %s31
      %34 = dma.hbm_to_vmem [thread:$0]  %s3, 16, %s32, [#allocation5]
    $region17: #{forward.4} parent=1 // pred_fallthru
      _
    // Predicated region
    $region18: #{forward.4} parent=1 // pred_check
      _
    $region19: #{forward.4} parent=1 // pred_check_branch
      %36 = sbr.rel (0) target = $region21
    $region20: #{forward.4} parent=1 // pred_region
      %37 = dma.done [#allocation3], 16
    $region21: #{forward.4} parent=1 // pred_fallthru
      _
    // Predicated region
    $region22: #{forward.4} parent=1 // pred_check
      _
    $region23: #{forward.4} parent=1 // pred_check_branch
      %39 = sbr.rel (0) target = $region25
    $region24: #{forward.4} parent=1 // pred_region
      %40 = dma.done [#allocation5], 16
    $region25: #{forward.4} parent=1 // pred_fallthru
      _
    %v41 = vld [vmem:[%s0] sm:$0xff]
    %v42 = vld [vmem:[%s0 + $0x8] sm:$0xff]
    %v43 = vld [vmem:[%s1] sm:$0xff]
    %v44 = vld [vmem:[%s1 + $0x8] sm:$0xff]
    %v45 = vadd.f32 %v41, %v43
    %v46 = vadd.f32 %v42, %v44
    %v47 = vld [vmem:[#allocation2] sm:$0x1]
    %v48 = vld [vmem:[#allocation4] sm:$0x1]
    %49 = vadd.xlane.f32.xlu0 %v45
    %v50 = vpop.xlane.xlu0 %49
    %51 = vadd.xlane.f32.xlu0 %v46
    %v52 = vpop.xlane.xlu0 %51
    %v53 = vrcp.pop 128.0
    %v54 = vmul.f32 %v50, %v53
    %v55 = vmul.f32 %v52, %v53
    %v56 = vsub.f32 %v45, %v54
    %v57 = vsub.f32 %v46, %v55
    %v58 = vmul.f32 %v56, %v56
    %v59 = vmul.f32 %v57, %v57
    %60 = vadd.xlane.f32.xlu0 %v58
    %v61 = vpop.xlane.xlu0 %60
    %62 = vadd.xlane.f32.xlu0 %v59
    %v63 = vpop.xlane.xlu0 %62
    %v64 = vmul.f32 %v61, %v53
    %v65 = vmul.f32 %v63, %v53
    %v66 = vadd.f32 %v64, 1e-12
    %v67 = vadd.f32 %v65, 1e-12
    %v68 = vrsqrt.pop %v66
    %v69 = vrsqrt.pop %v67
    %v70 = vmul.f32 %v56, %v68
    %v71 = vmul.f32 %v57, %v69
    %v73 = vlaneseq
    %v74 = vshrl.u32 %v73, 7
    %v75 = vsub.s32 0, %v74
    %v76 = vrot.slane %v47, %v75
    %v78 = vmul.f32 %v70, %v76
    %v79 = vmul.f32 %v71, %v76
    %v81 = vlaneseq
    %v82 = vshrl.u32 %v81, 7
    %v83 = vsub.s32 0, %v82
    %v84 = vrot.slane %v48, %v83
    %v86 = vadd.f32 %v78, %v84
    %v87 = vadd.f32 %v79, %v84
    %88 = vst [vmem:[%s4] sm:$0xff] %v86
    %89 = vst [vmem:[%s4 + $0x8] sm:$0xff] %v87
    // Predicated region
    $region26: #{forward.4} parent=1 // pred_check
      _
    $region27: #{forward.4} parent=1 // pred_check_branch
      %91 = sbr.rel (0) target = $region29
    $region28: #{forward.4} parent=1 // pred_region
      _
    $region29: #{forward.4} parent=1 // pred_fallthru
      _
    // Predicated region
    $region30: #{forward.4} parent=1 // pred_check
      _
    $region31: #{forward.4} parent=1 // pred_check_branch
      %93 = sbr.rel (0) target = $region33
    $region32: #{forward.4} parent=1 // pred_region
      _
    $region33: #{forward.4} parent=1 // pred_fallthru
      _
    %94 = vsyncpa [#allocation3], 1
    %95 = vsyncpa [#allocation5], 1

// kernel: forward.7
$region0: #{forward.7}
  #allocation0 [shape = 'u32[]', space=smem, size = 0x4, offset = 0x4, fixed_abs, tag = 'smem constant byte address 0x4 - core index']
  #allocation1 [shape = 'u32[144,128]{1,0:T(1,128)}', space=vmem, size = 0x12000, scoped, tag = 'internal scratch']
  %s0 = inlined_call_operand.vmem [shape: f32[2,128], index: 0, kind: input, shape index: {}]
  %s1 = inlined_call_operand.vmem [shape: bf16[128,128], index: 1, kind: input, shape index: {}]
  %s2 = inlined_call_operand.vmem [shape: f32[1,128], index: 2, kind: input, shape index: {}]
  %s3 = inlined_call_operand.vmem [shape: bf16[128,2], index: 3, kind: input, shape index: {}]
  %s4 = inlined_call_operand.vmem [shape: f32[1,2], index: 4, kind: input, shape index: {}]
  %s5 = inlined_call_operand.hbm [shape: f32[2,2], index: 5, kind: output, shape index: {}]
  %s6 = sld [smem:[#allocation0]]
  $region30: #{forward.7} parent=0
    _
  %s8 = ssub.s32 1, %s6
  %s9 = scalar_select 0, %s8, %s6
  $region1: #{forward.7} parent=0
    #allocation2 [shape = 'u8[1024]{0}', space=vmem, size = 0x400, scoped, tag = 'output window, operand 0, single buffered']
    #allocation3 [shape = 's32[1]{0}', space=sflag, size = 0x4, scoped, tag = 'scoped memory for forward.7']
    %10 = vsyncpa [#allocation3], 0
    // Predicated region
    $region2: #{forward.7} parent=1 // pred_check
      _
    $region3: #{forward.7} parent=1 // pred_check_branch
      %12 = sbr.rel (0) target = $region5
    $region4: #{forward.7} parent=1 // pred_region
      _
    $region5: #{forward.7} parent=1 // pred_fallthru
      _
    // Predicated region
    $region6: #{forward.7} parent=1 // pred_check
      _
    $region7: #{forward.7} parent=1 // pred_check_branch
      %14 = sbr.rel (0) target = $region9
    $region8: #{forward.7} parent=1 // pred_region
      _
    $region9: #{forward.7} parent=1 // pred_fallthru
      _
    // Predicated region
    $region10: #{forward.7} parent=1 // pred_check
      _
    $region11: #{forward.7} parent=1 // pred_check_branch
      %16 = sbr.rel (0) target = $region13
    $region12: #{forward.7} parent=1 // pred_region
      _
    $region13: #{forward.7} parent=1 // pred_fallthru
      _
    // Predicated region
    $region14: #{forward.7} parent=1 // pred_check
      _
    $region15: #{forward.7} parent=1 // pred_check_branch
      %18 = sbr.rel (0) target = $region17
    $region16: #{forward.7} parent=1 // pred_region
      _
    $region17: #{forward.7} parent=1 // pred_fallthru
      _
    // Predicated region
    $region18: #{forward.7} parent=1 // pred_check
      _
    $region19: #{forward.7} parent=1 // pred_check_branch
      %20 = sbr.rel (0) target = $region21
    $region20: #{forward.7} parent=1 // pred_region
      _
    $region21: #{forward.7} parent=1 // pred_fallthru
      _
    %v22 = vld [vmem:[%s0] sm:$0x3]
    %v23 = vpack.c.bf16 %v22, %v22
    %v24 = vld [vmem:[%s1] sm:$0xf]
    %v25 = vld [vmem:[%s1 + $0x4] sm:$0xf]
    %v26 = vld [vmem:[%s1 + $0x8] sm:$0xf]
    %v27 = vld [vmem:[%s1 + $0xc] sm:$0xf]
    %v28 = vld [vmem:[%s1 + $0x10] sm:$0xf]
    %v29 = vld [vmem:[%s1 + $0x14] sm:$0xf]
    %v30 = vld [vmem:[%s1 + $0x18] sm:$0xf]
    %v31 = vld [vmem:[%s1 + $0x1c] sm:$0xf]
    %v32 = vld [vmem:[%s1 + $0x20] sm:$0xf]
    %v33 = vld [vmem:[%s1 + $0x24] sm:$0xf]
    %v34 = vld [vmem:[%s1 + $0x28] sm:$0xf]
    %v35 = vld [vmem:[%s1 + $0x2c] sm:$0xf]
    %v36 = vld [vmem:[%s1 + $0x30] sm:$0xf]
    %v37 = vld [vmem:[%s1 + $0x34] sm:$0xf]
    %v38 = vld [vmem:[%s1 + $0x38] sm:$0xf]
    %v39 = vld [vmem:[%s1 + $0x3c] sm:$0xf]
    %v40 = vld [vmem:[%s2] sm:$0x1]
    %v42 = vlaneseq
    %v43 = vshrl.u32 %v42, 7
    %v44 = vsub.s32 0, %v43
    %v45 = vrot.slane %v40, %v44
    %v63 = vunpack.c.l.b16 %v24
    %v64 = vunpack.c.l.b16 %v25
    %v65 = vunpack.c.l.b16 %v26
    %v66 = vunpack.c.l.b16 %v27
    %v67 = vunpack.c.l.b16 %v28
    %v68 = vunpack.c.l.b16 %v29
    %v69 = vunpack.c.l.b16 %v30
    %v70 = vunpack.c.l.b16 %v31
    %v71 = vunpack.c.l.b16 %v32
    %v72 = vunpack.c.l.b16 %v33
    %v73 = vunpack.c.l.b16 %v34
    %v74 = vunpack.c.l.b16 %v35
    %v75 = vunpack.c.l.b16 %v36
    %v76 = vunpack.c.l.b16 %v37
    %v77 = vunpack.c.l.b16 %v38
    %v78 = vunpack.c.l.b16 %v39
    %v79 = vpack.c.b16 %v64, %v63
    %v80 = vpack.c.b16 %v66, %v65
    %v81 = vpack.c.b16 %v68, %v67
    %v82 = vpack.c.b16 %v70, %v69
    %v83 = vpack.c.b16 %v72, %v71
    %v84 = vpack.c.b16 %v74, %v73
    %v85 = vpack.c.b16 %v76, %v75
    %v86 = vpack.c.b16 %v78, %v77
    %95 = vmatprep.subr.bf16.mxu0 0
    %96 = vmatpush1.bf16.msra.mxu0 %v86
    %97 = vmatprep.subr.bf16.mxu0 0
    %98 = vmatpush1.bf16.msra.mxu0 %v85
    %99 = vmatprep.subr.bf16.mxu0 0
    %100 = vmatpush1.bf16.msra.mxu0 %v84
    %101 = vmatprep.subr.bf16.mxu0 0
    %102 = vmatpush1.bf16.msra.mxu0 %v83
    %103 = vmatprep.subr.bf16.mxu0 0
    %104 = vmatpush1.bf16.msra.mxu0 %v82
    %105 = vmatprep.subr.bf16.mxu0 0
    %106 = vmatpush1.bf16.msra.mxu0 %v81
    %107 = vmatprep.subr.bf16.mxu0 0
    %108 = vmatpush1.bf16.msra.mxu0 %v80
    %109 = vmatprep.subr.bf16.mxu0 0
    %110 = vmatpush1.bf16.msra.mxu0 %v79
    %111 = vmatprep.subr.bf16.mxu0 0
    %112 = vmatpush2.bf16.msra.mxu0 0
    %113 = vmatprep.subr.bf16.mxu0 0
    %114 = vmatpush2.bf16.msra.mxu0 0
    %115 = vmatprep.subr.bf16.mxu0 0
    %116 = vmatpush2.bf16.msra.mxu0 0
    %117 = vmatprep.subr.bf16.mxu0 0
    %118 = vmatpush2.bf16.msra.mxu0 0
    %119 = vmatprep.subr.bf16.mxu0 0
    %120 = vmatpush2.bf16.msra.mxu0 0
    %121 = vmatprep.subr.bf16.mxu0 0
    %122 = vmatpush2.bf16.msra.mxu0 0
    %123 = vmatprep.subr.bf16.mxu0 0
    %124 = vmatpush2.bf16.msra.mxu0 0
    %125 = vmatprep.subr.bf16.mxu0 0
    %126 = vmatpush2.bf16.msra.mxu0 0
    %127 = vmatprep.mubr.bf16.mxu0 0
    %128 = vmatmul.mubr.bf16.gmra.mxu0 %v23
    %v129 = vpop.f32.mrf.mxu0
    %v130 = vadd.f32 %v45, %v129
    %v131 = vpop.f32.mrf.mxu0
    %v132 = vpop.f32.mrf.mxu0
    %v133 = vpop.f32.mrf.mxu0
    %134 = vdwg.mxu0
    %v135 = vtanh.pop %v130
    %v136 = vpack.c.bf16 %v135, %v135
    %v137 = vld [vmem:[%s3] sm:$0xf]
    %v138 = vld [vmem:[%s3 + $0x4] sm:$0xf]
    %v139 = vld [vmem:[%s3 + $0x8] sm:$0xf]
    %v140 = vld [vmem:[%s3 + $0xc] sm:$0xf]
    %v141 = vld [vmem:[%s3 + $0x10] sm:$0xf]
    %v142 = vld [vmem:[%s3 + $0x14] sm:$0xf]
    %v143 = vld [vmem:[%s3 + $0x18] sm:$0xf]
    %v144 = vld [vmem:[%s3 + $0x1c] sm:$0xf]
    %v145 = vld [vmem:[%s3 + $0x20] sm:$0xf]
    %v146 = vld [vmem:[%s3 + $0x24] sm:$0xf]
    %v147 = vld [vmem:[%s3 + $0x28] sm:$0xf]
    %v148 = vld [vmem:[%s3 + $0x2c] sm:$0xf]
    %v149 = vld [vmem:[%s3 + $0x30] sm:$0xf]
    %v150 = vld [vmem:[%s3 + $0x34] sm:$0xf]
    %v151 = vld [vmem:[%s3 + $0x38] sm:$0xf]
    %v152 = vld [vmem:[%s3 + $0x3c] sm:$0xf]
    %v153 = vld [vmem:[%s4] sm:$0x1]
    %v155 = vlaneseq
    %v156 = vshrl.u32 %v155, 7
    %v157 = vsub.s32 0, %v156
    %v158 = vrot.slane %v153, %v157
    %v176 = vunpack.c.l.b16 %v137
    %v177 = vunpack.c.l.b16 %v138
    %v178 = vunpack.c.l.b16 %v139
    %v179 = vunpack.c.l.b16 %v140
    %v180 = vunpack.c.l.b16 %v141
    %v181 = vunpack.c.l.b16 %v142
    %v182 = vunpack.c.l.b16 %v143
    %v183 = vunpack.c.l.b16 %v144
    %v184 = vunpack.c.l.b16 %v145
    %v185 = vunpack.c.l.b16 %v146
    %v186 = vunpack.c.l.b16 %v147
    %v187 = vunpack.c.l.b16 %v148
    %v188 = vunpack.c.l.b16 %v149
    %v189 = vunpack.c.l.b16 %v150
    %v190 = vunpack.c.l.b16 %v151
    %v191 = vunpack.c.l.b16 %v152
    %v192 = vpack.c.b16 %v177, %v176
    %v193 = vpack.c.b16 %v179, %v178
    %v194 = vpack.c.b16 %v181, %v180
    %v195 = vpack.c.b16 %v183, %v182
    %v196 = vpack.c.b16 %v185, %v184
    %v197 = vpack.c.b16 %v187, %v186
    %v198 = vpack.c.b16 %v189, %v188
    %v199 = vpack.c.b16 %v191, %v190
    %208 = vmatprep.subr.bf16.mxu0 0
    %209 = vmatpush1.bf16.msra.mxu0 %v199
    %210 = vmatprep.subr.bf16.mxu0 0
    %211 = vmatpush1.bf16.msra.mxu0 %v198
    %212 = vmatprep.subr.bf16.mxu0 0
    %213 = vmatpush1.bf16.msra.mxu0 %v197
    %214 = vmatprep.subr.bf16.mxu0 0
    %215 = vmatpush1.bf16.msra.mxu0 %v196
    %216 = vmatprep.subr.bf16.mxu0 0
    %217 = vmatpush1.bf16.msra.mxu0 %v195
    %218 = vmatprep.subr.bf16.mxu0 0
    %219 = vmatpush1.bf16.msra.mxu0 %v194
    %220 = vmatprep.subr.bf16.mxu0 0
    %221 = vmatpush1.bf16.msra.mxu0 %v193
    %222 = vmatprep.subr.bf16.mxu0 0
    %223 = vmatpush1.bf16.msra.mxu0 %v192
    %224 = vmatprep.subr.bf16.mxu0 0
    %225 = vmatpush2.bf16.msra.mxu0 0
    %226 = vmatprep.subr.bf16.mxu0 0
    %227 = vmatpush2.bf16.msra.mxu0 0
    %228 = vmatprep.subr.bf16.mxu0 0
    %229 = vmatpush2.bf16.msra.mxu0 0
    %230 = vmatprep.subr.bf16.mxu0 0
    %231 = vmatpush2.bf16.msra.mxu0 0
    %232 = vmatprep.subr.bf16.mxu0 0
    %233 = vmatpush2.bf16.msra.mxu0 0
    %234 = vmatprep.subr.bf16.mxu0 0
    %235 = vmatpush2.bf16.msra.mxu0 0
    %236 = vmatprep.subr.bf16.mxu0 0
    %237 = vmatpush2.bf16.msra.mxu0 0
    %238 = vmatprep.subr.bf16.mxu0 0
    %239 = vmatpush2.bf16.msra.mxu0 0
    %240 = vmatprep.mubr.bf16.mxu0 0
    %241 = vmatmul.mubr.bf16.gmra.mxu0 %v136
    %v242 = vpop.f32.mrf.mxu0
    %v243 = vadd.f32 %v158, %v242
    %v244 = vpop.f32.mrf.mxu0
    %v245 = vpop.f32.mrf.mxu0
    %v246 = vpop.f32.mrf.mxu0
    %247 = vdwg.mxu0
    %vm248 = vcmask 9216
    %249 = vst.msk [vmem:[#allocation2] sm:$0x3] %vm248, %v243
    // Predicated region
    $region22: #{forward.7} parent=1 // pred_check
      _
    $region23: #{forward.7} parent=1 // pred_check_branch
      %251 = sbr.rel (0) target = $region25
    $region24: #{forward.7} parent=1 // pred_region
      %s253 = ssub.s32 32, 32
      %254 = vsyncadd [#allocation3], %s253
      %s256 = sshll.u32 [#allocation2], 4
      %s257 = int_to_ptr.vmem [resolvable:$true] %s256
      %259 = dma.vmem_to_hbm [thread:$0]  %s257, 32, %s5, [#allocation3]
    $region25: #{forward.7} parent=1 // pred_fallthru
      _
    // Predicated region
    $region26: #{forward.7} parent=1 // pred_check
      _
    $region27: #{forward.7} parent=1 // pred_check_branch
      %261 = sbr.rel (0) target = $region29
    $region28: #{forward.7} parent=1 // pred_region
      %262 = dma.done [#allocation3], 32
    $region29: #{forward.7} parent=1 // pred_fallthru
      _
    %263 = vsyncpa [#allocation3], 1

// kernel: forward.5
$region0: #{forward.5}
  #allocation0 [shape = 'u32[]', space=smem, size = 0x4, offset = 0x4, fixed_abs, tag = 'smem constant byte address 0x4 - core index']
  #allocation1 [shape = 'u32[144,128]{1,0:T(1,128)}', space=vmem, size = 0x12000, scoped, tag = 'internal scratch']
  %s0 = inlined_call_operand.vmem [shape: f32[16,128], index: 0, kind: input, shape index: {}]
  %s1 = inlined_call_operand.hbm [shape: bf16[128,384], index: 1, kind: input, shape index: {}]
  %s2 = inlined_call_operand.vmem [shape: f32[1,384], index: 2, kind: input, shape index: {}]
  %s3 = inlined_call_operand.vmem [shape: bf16[128,128], index: 3, kind: input, shape index: {}]
  %s4 = inlined_call_operand.hbm [shape: f32[1,128], index: 4, kind: input, shape index: {}]
  %s5 = inlined_call_operand.hbm [shape: f32[1,128], index: 5, kind: input, shape index: {}]
  %s6 = inlined_call_operand.hbm [shape: f32[1,128], index: 6, kind: input, shape index: {}]
  %s7 = inlined_call_operand.vmem [shape: bf16[128,512], index: 7, kind: input, shape index: {}]
  %s8 = inlined_call_operand.hbm [shape: f32[1,512], index: 8, kind: input, shape index: {}]
  %s9 = inlined_call_operand.hbm [shape: bf16[512,128], index: 9, kind: input, shape index: {}]
  %s10 = inlined_call_operand.hbm [shape: f32[1,128], index: 10, kind: input, shape index: {}]
  %s11 = inlined_call_operand.hbm [shape: f32[1,128], index: 11, kind: input, shape index: {}]
  %s12 = inlined_call_operand.hbm [shape: f32[1,128], index: 12, kind: input, shape index: {}]
  %s13 = inlined_call_operand.vmem [shape: f32[16,128], index: 13, kind: output, shape index: {}]
  %s14 = sld [smem:[#allocation0]]
  $region121: #{forward.5} parent=0
    _
  %s16 = ssub.s32 1, %s14
  %s17 = scalar_select 0, %s16, %s14
  $region1: #{forward.5} parent=0
    #allocation2 [shape = 'u8[98304]{0}', space=vmem, size = 0x18000, scoped, tag = 'input window, operand 1, single buffered']
    #allocation3 [shape = 's32[2]{0}', space=sflag, size = 0x8, scoped, tag = 'scoped memory for forward.5']
    #allocation4 [shape = 'u8[512]{0}', space=vmem, size = 0x400, scoped, tag = 'input window, operand 4, single buffered']
    #allocation5 [shape = 's32[1]{0}', space=sflag, size = 0x4, scoped, tag = 'scoped memory for forward.5']
    #allocation6 [shape = 'u8[512]{0}', space=vmem, size = 0x400, scoped, tag = 'input window, operand 5, single buffered']
    #allocation7 [shape = 'u8[512]{0}', space=vmem, size = 0x400, scoped, tag = 'input window, operand 6, single buffered']
    #allocation8 [shape = 's32[1]{0}', space=sflag, size = 0x4, scoped, tag = 'scoped memory for forward.5']
    #allocation9 [shape = 'u8[2048]{0}', space=vmem, size = 0x800, scoped, tag = 'input window, operand 8, single buffered']
    #allocation10 [shape = 'u8[131072]{0}', space=vmem, size = 0x20000, scoped, tag = 'input window, operand 9, single buffered']
    #allocation11 [shape = 's32[1]{0}', space=sflag, size = 0x4, scoped, tag = 'scoped memory for forward.5']
    #allocation12 [shape = 'u8[512]{0}', space=vmem, size = 0x400, scoped, tag = 'input window, operand 10, single buffered']
    #allocation13 [shape = 'u8[512]{0}', space=vmem, size = 0x400, scoped, tag = 'input window, operand 11, single buffered']
    #allocation14 [shape = 's32[1]{0}', space=sflag, size = 0x4, scoped, tag = 'scoped memory for forward.5']
    #allocation15 [shape = 'u8[512]{0}', space=vmem, size = 0x400, scoped, tag = 'input window, operand 12, single buffered']
    %18 = vsyncpa [#allocation3], 0
    %19 = vsyncpa [#allocation5], 0
    %20 = vsyncpa [#allocation8], 0
    %21 = vsyncpa [#allocation11], 0
    %22 = vsyncpa [#allocation14], 0
    loop: start=0, step=1, limit=4
    $region2: #{forward.5} parent=1 // loop_pre_header
      _
    $region3: #{forward.5} parent=1 // loop_header
      %s24 = sphi 0, %s28
      %p25 = scmp.ge.s32.totalorder %s24, 4
      %s34 = sphi 0, %s36
      %s37 = sphi 0, %s34
      %s38 = sphi 0, %s37
      %s54 = sphi 0, %s38
      %s58 = sphi 0, %s58
      %s60 = sphi 0, %s58
      %s61 = sphi 0, %s60
      %s75 = sphi 0, %s61
      %s79 = sphi 0, %s79
      %s81 = sphi 0, %s79
      %s82 = sphi 0, %s81
      %s96 = sphi 0, %s82
      %s100 = sphi 0, %s100
      %s102 = sphi 0, %s100
      %s103 = sphi 0, %s102
      %s117 = sphi 0, %s103
      %s121 = sphi 0, %s121
      %s123 = sphi 0, %s121
      %s124 = sphi 0, %s123
      %s138 = sphi 0, %s124
      %s142 = sphi 0, %s142
      %s144 = sphi 0, %s142
      %s145 = sphi 0, %s144
      %s159 = sphi 0, %s145
      %s163 = sphi 0, %s163
      %s165 = sphi 0, %s163
      %s166 = sphi 0, %s165
      %s180 = sphi 0, %s166
      %s184 = sphi 0, %s184
      %s186 = sphi 0, %s184
      %s187 = sphi 0, %s186
      %s201 = sphi 0, %s187
      %s205 = sphi 0, %s205
      %s207 = sphi 0, %s205
      %s208 = sphi 0, %s207
      %s222 = sphi 0, %s208
      %s226 = sphi 0, %s226
      %s228 = sphi 0, %s226
      %s229 = sphi 0, %s228
      %s243 = sphi 0, %s229
      %s247 = sphi 0, %s247
      %s249 = sphi 0, %s247
      %s250 = sphi 0, %s249
      %s264 = sphi 0, %s250
      %s268 = sphi 0, %s268
      %s270 = sphi 0, %s268
      %s271 = sphi 0, %s270
      %s285 = sphi 0, %s271
      %s289 = sphi 0, %s289
      %s291 = sphi 0, %s289
      %s292 = sphi 0, %s291
      %s306 = sphi 0, %s292
      %s312 = sphi 0, %s314
      %s315 = sphi 0, %s312
      %s316 = sphi 0, %s315
      %s332 = sphi 0, %s316
    $region4: #{forward.5} parent=1 // loop_header_branch
      %27 = sbr.rel (%p25) target = $region8
    $region5: #{forward.5} parent=1 // loop_body
      %s29 = ssub.s32 %s24, 1
      %s30 = ssub.s32 %s24, 2
      %s31 = sadd.s32 %s24, 1
      %s32 = ssub.s32 %s24, %s31
      %p33 = scmp.eq.s32.totalorder %s32, 0
      %s35 = sadd.s32 %s34, 1
      %s36 = scalar_select %p33, %s34, %s35
      %p39 = pneg %p33
      %p40 = scmp.eq.s32.totalorder %s24, 1
      %p41 = por %p39, %p40
      %p42 = scmp.ne.s32.totalorder %s34, %s37
      %p43 = scmp.eq.s32.totalorder %s24, 0
      %p44 = por %p42, %p43
      %p45 = scmp.ne.s32.totalorder %s34, %s37
      %p46 = scmp.eq.s32.totalorder %s29, 1
      %p47 = por %p45, %p46
      %p48 = scmp.ne.s32.totalorder %s37, %s38
      %p49 = scmp.eq.s32.totalorder %s29, 0
      %p50 = por %p48, %p49
      %p51 = scmp.ne.s32.totalorder %s37, %s38
      %p52 = scmp.eq.s32.totalorder %s30, 1
      %p53 = por %p51, %p52
      %p55 = scmp.ne.s32.totalorder %s38, %s54
      %p56 = scmp.eq.s32.totalorder %s30, 0
      %p57 = por %p55, %p56
      %s59 = sadd.s32 %s58, 1
      %p62 = scmp.eq.s32.totalorder %s24, 1
      %p63 = scmp.ne.s32.totalorder %s58, %s60
      %p64 = scmp.eq.s32.totalorder %s24, 0
      %p65 = por %p63, %p64
      %p66 = scmp.ne.s32.totalorder %s58, %s60
      %p67 = scmp.eq.s32.totalorder %s29, 1
      %p68 = por %p66, %p67
      %p69 = scmp.ne.s32.totalorder %s60, %s61
      %p70 = scmp.eq.s32.totalorder %s29, 0
      %p71 = por %p69, %p70
      %p72 = scmp.ne.s32.totalorder %s60, %s61
      %p73 = scmp.eq.s32.totalorder %s30, 1
      %p74 = por %p72, %p73
      %p76 = scmp.ne.s32.totalorder %s61, %s75
      %p77 = scmp.eq.s32.totalorder %s30, 0
      %p78 = por %p76, %p77
      %s80 = sadd.s32 %s79, 1
      %p83 = scmp.eq.s32.totalorder %s24, 1
      %p84 = scmp.ne.s32.totalorder %s79, %s81
      %p85 = scmp.eq.s32.totalorder %s24, 0
      %p86 = por %p84, %p85
      %p87 = scmp.ne.s32.totalorder %s79, %s81
      %p88 = scmp.eq.s32.totalorder %s29, 1
      %p89 = por %p87, %p88
      %p90 = scmp.ne.s32.totalorder %s81, %s82
      %p91 = scmp.eq.s32.totalorder %s29, 0
      %p92 = por %p90, %p91
      %p93 = scmp.ne.s32.totalorder %s81, %s82
      %p94 = scmp.eq.s32.totalorder %s30, 1
      %p95 = por %p93, %p94
      %p97 = scmp.ne.s32.totalorder %s82, %s96
      %p98 = scmp.eq.s32.totalorder %s30, 0
      %p99 = por %p97, %p98
      %s101 = sadd.s32 %s100, 1
      %p104 = scmp.eq.s32.totalorder %s24, 1
      %p105 = scmp.ne.s32.totalorder %s100, %s102
      %p106 = scmp.eq.s32.totalorder %s24, 0
      %p107 = por %p105, %p106
      %p108 = scmp.ne.s32.totalorder %s100, %s102
      %p109 = scmp.eq.s32.totalorder %s29, 1
      %p110 = por %p108, %p109
      %p111 = scmp.ne.s32.totalorder %s102, %s103
      %p112 = scmp.eq.s32.totalorder %s29, 0
      %p113 = por %p111, %p112
      %p114 = scmp.ne.s32.totalorder %s102, %s103
      %p115 = scmp.eq.s32.totalorder %s30, 1
      %p116 = por %p114, %p115
      %p118 = scmp.ne.s32.totalorder %s103, %s117
      %p119 = scmp.eq.s32.totalorder %s30, 0
      %p120 = por %p118, %p119
      %s122 = sadd.s32 %s121, 1
      %p125 = scmp.eq.s32.totalorder %s24, 1
      %p126 = scmp.ne.s32.totalorder %s121, %s123
      %p127 = scmp.eq.s32.totalorder %s24, 0
      %p128 = por %p126, %p127
      %p129 = scmp.ne.s32.totalorder %s121, %s123
      %p130 = scmp.eq.s32.totalorder %s29, 1
      %p131 = por %p129, %p130
      %p132 = scmp.ne.s32.totalorder %s123, %s124
      %p133 = scmp.eq.s32.totalorder %s29, 0
      %p134 = por %p132, %p133
      %p135 = scmp.ne.s32.totalorder %s123, %s124
      %p136 = scmp.eq.s32.totalorder %s30, 1
      %p137 = por %p135, %p136
      %p139 = scmp.ne.s32.totalorder %s124, %s138
      %p140 = scmp.eq.s32.totalorder %s30, 0
      %p141 = por %p139, %p140
      %s143 = sadd.s32 %s142, 1
      %p146 = scmp.eq.s32.totalorder %s24, 1
      %p147 = scmp.ne.s32.totalorder %s142, %s144
      %p148 = scmp.eq.s32.totalorder %s24, 0
      %p149 = por %p147, %p148
      %p150 = scmp.ne.s32.totalorder %s142, %s144
      %p151 = scmp.eq.s32.totalorder %s29, 1
      %p152 = por %p150, %p151
      %p153 = scmp.ne.s32.totalorder %s144, %s145
      %p154 = scmp.eq.s32.totalorder %s29, 0
      %p155 = por %p153, %p154
      %p156 = scmp.ne.s32.totalorder %s144, %s145
      %p157 = scmp.eq.s32.totalorder %s30, 1
      %p158 = por %p156, %p157
      %p160 = scmp.ne.s32.totalorder %s145, %s159
      %p161 = scmp.eq.s32.totalorder %s30, 0
      %p162 = por %p160, %p161
      %s164 = sadd.s32 %s163, 1
      %p167 = scmp.eq.s32.totalorder %s24, 1
      %p168 = scmp.ne.s32.totalorder %s163, %s165
      %p169 = scmp.eq.s32.totalorder %s24, 0
      %p170 = por %p168, %p169
      %p171 = scmp.ne.s32.totalorder %s163, %s165
      %p172 = scmp.eq.s32.totalorder %s29, 1
      %p173 = por %p171, %p172
      %p174 = scmp.ne.s32.totalorder %s165, %s166
      %p175 = scmp.eq.s32.totalorder %s29, 0
      %p176 = por %p174, %p175
      %p177 = scmp.ne.s32.totalorder %s165, %s166
      %p178 = scmp.eq.s32.totalorder %s30, 1
      %p179 = por %p177, %p178
      %p181 = scmp.ne.s32.totalorder %s166, %s180
      %p182 = scmp.eq.s32.totalorder %s30, 0
      %p183 = por %p181, %p182
      %s185 = sadd.s32 %s184, 1
      %p188 = scmp.eq.s32.totalorder %s24, 1
      %p189 = scmp.ne.s32.totalorder %s184, %s186
      %p190 = scmp.eq.s32.totalorder %s24, 0
      %p191 = por %p189, %p190
      %p192 = scmp.ne.s32.totalorder %s184, %s186
      %p193 = scmp.eq.s32.totalorder %s29, 1
      %p194 = por %p192, %p193
      %p195 = scmp.ne.s32.totalorder %s186, %s187
      %p196 = scmp.eq.s32.totalorder %s29, 0
      %p197 = por %p195, %p196
      %p198 = scmp.ne.s32.totalorder %s186, %s187
      %p199 = scmp.eq.s32.totalorder %s30, 1
      %p200 = por %p198, %p199
      %p202 = scmp.ne.s32.totalorder %s187, %s201
      %p203 = scmp.eq.s32.totalorder %s30, 0
      %p204 = por %p202, %p203
      %s206 = sadd.s32 %s205, 1
      %p209 = scmp.eq.s32.totalorder %s24, 1
      %p210 = scmp.ne.s32.totalorder %s205, %s207
      %p211 = scmp.eq.s32.totalorder %s24, 0
      %p212 = por %p210, %p211
      %p213 = scmp.ne.s32.totalorder %s205, %s207
      %p214 = scmp.eq.s32.totalorder %s29, 1
      %p215 = por %p213, %p214
      %p216 = scmp.ne.s32.totalorder %s207, %s208
      %p217 = scmp.eq.s32.totalorder %s29, 0
      %p218 = por %p216, %p217
      %p219 = scmp.ne.s32.totalorder %s207, %s208
      %p220 = scmp.eq.s32.totalorder %s30, 1
      %p221 = por %p219, %p220
      %p223 = scmp.ne.s32.totalorder %s208, %s222
      %p224 = scmp.eq.s32.totalorder %s30, 0
      %p225 = por %p223, %p224
      %s227 = sadd.s32 %s226, 1
      %p230 = scmp.eq.s32.totalorder %s24, 1
      %p231 = scmp.ne.s32.totalorder %s226, %s228
      %p232 = scmp.eq.s32.totalorder %s24, 0
      %p233 = por %p231, %p232
      %p234 = scmp.ne.s32.totalorder %s226, %s228
      %p235 = scmp.eq.s32.totalorder %s29, 1
      %p236 = por %p234, %p235
      %p237 = scmp.ne.s32.totalorder %s228, %s229
      %p238 = scmp.eq.s32.totalorder %s29, 0
      %p239 = por %p237, %p238
      %p240 = scmp.ne.s32.totalorder %s228, %s229
      %p241 = scmp.eq.s32.totalorder %s30, 1
      %p242 = por %p240, %p241
      %p244 = scmp.ne.s32.totalorder %s229, %s243
      %p245 = scmp.eq.s32.totalorder %s30, 0
      %p246 = por %p244, %p245
      %s248 = sadd.s32 %s247, 1
      %p251 = scmp.eq.s32.totalorder %s24, 1
      %p252 = scmp.ne.s32.totalorder %s247, %s249
      %p253 = scmp.eq.s32.totalorder %s24, 0
      %p254 = por %p252, %p253
      %p255 = scmp.ne.s32.totalorder %s247, %s249
      %p256 = scmp.eq.s32.totalorder %s29, 1
      %p257 = por %p255, %p256
      %p258 = scmp.ne.s32.totalorder %s249, %s250
      %p259 = scmp.eq.s32.totalorder %s29, 0
      %p260 = por %p258, %p259
      %p261 = scmp.ne.s32.totalorder %s249, %s250
      %p262 = scmp.eq.s32.totalorder %s30, 1
      %p263 = por %p261, %p262
      %p265 = scmp.ne.s32.totalorder %s250, %s264
      %p266 = scmp.eq.s32.totalorder %s30, 0
      %p267 = por %p265, %p266
      %s269 = sadd.s32 %s268, 1
      %p272 = scmp.eq.s32.totalorder %s24, 1
      %p273 = scmp.ne.s32.totalorder %s268, %s270
      %p274 = scmp.eq.s32.totalorder %s24, 0
      %p275 = por %p273, %p274
      %p276 = scmp.ne.s32.totalorder %s268, %s270
      %p277 = scmp.eq.s32.totalorder %s29, 1
      %p278 = por %p276, %p277
      %p279 = scmp.ne.s32.totalorder %s270, %s271
      %p280 = scmp.eq.s32.totalorder %s29, 0
      %p281 = por %p279, %p280
      %p282 = scmp.ne.s32.totalorder %s270, %s271
      %p283 = scmp.eq.s32.totalorder %s30, 1
      %p284 = por %p282, %p283
      %p286 = scmp.ne.s32.totalorder %s271, %s285
      %p287 = scmp.eq.s32.totalorder %s30, 0
      %p288 = por %p286, %p287
      %s290 = sadd.s32 %s289, 1
      %p293 = scmp.eq.s32.totalorder %s24, 1
      %p294 = scmp.ne.s32.totalorder %s289, %s291
      %p295 = scmp.eq.s32.totalorder %s24, 0
      %p296 = por %p294, %p295
      %p297 = scmp.ne.s32.totalorder %s289, %s291
      %p298 = scmp.eq.s32.totalorder %s29, 1
      %p299 = por %p297, %p298
      %p300 = scmp.ne.s32.totalorder %s291, %s292
      %p301 = scmp.eq.s32.totalorder %s29, 0
      %p302 = por %p300, %p301
      %p303 = scmp.ne.s32.totalorder %s291, %s292
      %p304 = scmp.eq.s32.totalorder %s30, 1
      %p305 = por %p303, %p304
      %p307 = scmp.ne.s32.totalorder %s292, %s306
      %p308 = scmp.eq.s32.totalorder %s30, 0
      %p309 = por %p307, %p308
      %s310 = ssub.s32 %s24, %s31
      %p311 = scmp.eq.s32.totalorder %s310, 0
      %s313 = sadd.s32 %s312, 1
      %s314 = scalar_select %p311, %s312, %s313
      %p317 = pneg %p311
      %p318 = scmp.eq.s32.totalorder %s24, 1
      %p319 = por %p317, %p318
      %p320 = scmp.ne.s32.totalorder %s312, %s315
      %p321 = scmp.eq.s32.totalorder %s24, 0
      %p322 = por %p320, %p321
      %p323 = scmp.ne.s32.totalorder %s312, %s315
      %p324 = scmp.eq.s32.totalorder %s29, 1
      %p325 = por %p323, %p324
      %p326 = scmp.ne.s32.totalorder %s315, %s316
      %p327 = scmp.eq.s32.totalorder %s29, 0
      %p328 = por %p326, %p327
      %p329 = scmp.ne.s32.totalorder %s315, %s316
      %p330 = scmp.eq.s32.totalorder %s30, 1
      %p331 = por %p329, %p330
      %p333 = scmp.ne.s32.totalorder %s316, %s332
      %p334 = scmp.eq.s32.totalorder %s30, 0
      %p335 = por %p333, %p334
      %p336 = scmp.le.s32.totalorder 1, %s24
      %p337 = scmp.lt.s32.totalorder %s24, 3
      %p338 = pnand %p336, %p337
      %p339 = pneg %p338
      // Predicated region
      $region9: #{forward.5} parent=5 // pred_check
        _
      $region10: #{forward.5} parent=5 // pred_check_branch
        %341 = sbr.rel (%p338) target = $region12
      $region11: #{forward.5} parent=5 // pred_region
        %s342 = ssub.s32 %s24, 1
        // Predicated region
        $region13: #{forward.5} parent=11 // pred_check
          %p343 = pneg %p71
        $region14: #{forward.5} parent=11 // pred_check_branch
          %345 = sbr.rel (%p343) target = $region16
        $region15: #{forward.5} parent=11 // pred_region
          %s347 = ssub.s32 3072, 3072
          %348 = vsyncadd [#allocation3], %s347
          %s349 = sshll.u32 [#allocation2], 4
          %s350 = int_to_ptr.vmem [resolvable:$true] %s349
          %355 = dma.hbm_to_vmem [thread:$0]  %s1, 3072, %s350, [#allocation3], 192, 192, 12
        $region16: #{forward.5} parent=11 // pred_fallthru
          _
        // Predicated region
        $region17: #{forward.5} parent=11 // pred_check
          %p356 = pneg %p92
        $region18: #{forward.5} parent=11 // pred_check_branch
          %358 = sbr.rel (%p356) target = $region20
        $region19: #{forward.5} parent=11 // pred_region
          _
        $region20: #{forward.5} parent=11 // pred_fallthru
          _
        // Predicated region
        $region21: #{forward.5} parent=11 // pred_check
          %p359 = pneg %p113
        $region22: #{forward.5} parent=11 // pred_check_branch
          %361 = sbr.rel (%p359) target = $region24
        $region23: #{forward.5} parent=11 // pred_region
          _
        $region24: #{forward.5} parent=11 // pred_fallthru
          _
        // Predicated region
        $region25: #{forward.5} parent=11 // pred_check
          %p362 = pneg %p134
        $region26: #{forward.5} parent=11 // pred_check_branch
          %364 = sbr.rel (%p362) target = $region28
        $region27: #{forward.5} parent=11 // pred_region
          %s366 = ssub.s32 16, 16
          %367 = vsyncadd [#allocation5], %s366
          %s369 = sshll.u32 [#allocation4], 4
          %s370 = int_to_ptr.vmem [resolvable:$true] %s369
          %372 = dma.hbm_to_vmem [thread:$0]  %s4, 16, %s370, [#allocation5]
        $region28: #{forward.5} parent=11 // pred_fallthru
          _
        // Predicated region
        $region29: #{forward.5} parent=11 // pred_check
          %p373 = pneg %p155
        $region30: #{forward.5} parent=11 // pred_check_branch
          %375 = sbr.rel (%p373) target = $region32
        $region31: #{forward.5} parent=11 // pred_region
          %s377 = ssub.s32 16, 16
          %378 = vsyncadd [#allocation5], %s377
          %s380 = sshll.u32 [#allocation6], 4
          %s381 = int_to_ptr.vmem [resolvable:$true] %s380
          %383 = dma.hbm_to_vmem [thread:$0]  %s5, 16, %s381, [#allocation5]
        $region32: #{forward.5} parent=11 // pred_fallthru
          _
        // Predicated region
        $region33: #{forward.5} parent=11 // pred_check
          %p384 = pneg %p176
        $region34: #{forward.5} parent=11 // pred_check_branch
          %386 = sbr.rel (%p384) target = $region36
        $region35: #{forward.5} parent=11 // pred_region
          %s388 = ssub.s32 16, 16
          %389 = vsyncadd [#allocation8], %s388
          %s391 = sshll.u32 [#allocation7], 4
          %s392 = int_to_ptr.vmem [resolvable:$true] %s391
          %394 = dma.hbm_to_vmem [thread:$0]  %s6, 16, %s392, [#allocation8]
        $region36: #{forward.5} parent=11 // pred_fallthru
          _
        // Predicated region
        $region37: #{forward.5} parent=11 // pred_check
          %p395 = pneg %p197
        $region38: #{forward.5} parent=11 // pred_check_branch
          %397 = sbr.rel (%p395) target = $region40
        $region39: #{forward.5} parent=11 // pred_region
          _
        $region40: #{forward.5} parent=11 // pred_fallthru
          _
        // Predicated region
        $region41: #{forward.5} parent=11 // pred_check
          %p398 = pneg %p218
        $region42: #{forward.5} parent=11 // pred_check_branch
          %400 = sbr.rel (%p398) target = $region44
        $region43: #{forward.5} parent=11 // pred_region
          %s402 = ssub.s32 64, 64
          %403 = vsyncadd [#allocation8], %s402
          %s405 = sshll.u32 [#allocation9], 4
          %s406 = int_to_ptr.vmem [resolvable:$true] %s405
          %408 = dma.hbm_to_vmem [thread:$0]  %s8, 64, %s406, [#allocation8]
        $region44: #{forward.5} parent=11 // pred_fallthru
          _
        // Predicated region
        $region45: #{forward.5} parent=11 // pred_check
          %p409 = pneg %p239
        $region46: #{forward.5} parent=11 // pred_check_branch
          %411 = sbr.rel (%p409) target = $region48
        $region47: #{forward.5} parent=11 // pred_region
          %s413 = ssub.s32 4096, 4096
          %414 = vsyncadd [#allocation11], %s413
          %s415 = sshll.u32 [#allocation10], 4
          %s416 = int_to_ptr.vmem [resolvable:$true] %s415
          %421 = dma.hbm_to_vmem [thread:$0]  %s9, 4096, %s416, [#allocation11], 64, 64, 4
        $region48: #{forward.5} parent=11 // pred_fallthru
          _
        // Predicated region
        $region49: #{forward.5} parent=11 // pred_check
          %p422 = pneg %p260
        $region50: #{forward.5} parent=11 // pred_check_branch
          %424 = sbr.rel (%p422) target = $region52
        $region51: #{forward.5} parent=11 // pred_region
          %s426 = ssub.s32 16, 16
          %427 = vsyncadd [#allocation11], %s426
          %s429 = sshll.u32 [#allocation12], 4
          %s430 = int_to_ptr.vmem [resolvable:$true] %s429
          %432 = dma.hbm_to_vmem [thread:$0]  %s10, 16, %s430, [#allocation11]
        $region52: #{forward.5} parent=11 // pred_fallthru
          _
        // Predicated region
        $region53: #{forward.5} parent=11 // pred_check
          %p433 = pneg %p281
        $region54: #{forward.5} parent=11 // pred_check_branch
          %435 = sbr.rel (%p433) target = $region56
        $region55: #{forward.5} parent=11 // pred_region
          %s437 = ssub.s32 16, 16
          %438 = vsyncadd [#allocation14], %s437
          %s440 = sshll.u32 [#allocation13], 4
          %s441 = int_to_ptr.vmem [resolvable:$true] %s440
          %443 = dma.hbm_to_vmem [thread:$0]  %s11, 16, %s441, [#allocation14]
        $region56: #{forward.5} parent=11 // pred_fallthru
          _
        // Predicated region
        $region57: #{forward.5} parent=11 // pred_check
          %p444 = pneg %p302
        $region58: #{forward.5} parent=11 // pred_check_branch
          %446 = sbr.rel (%p444) target = $region60
        $region59: #{forward.5} parent=11 // pred_region
          %s448 = ssub.s32 16, 16
          %449 = vsyncadd [#allocation14], %s448
          %s451 = sshll.u32 [#allocation15], 4
          %s452 = int_to_ptr.vmem [resolvable:$true] %s451
          %454 = dma.hbm_to_vmem [thread:$0]  %s12, 16, %s452, [#allocation14]
        $region60: #{forward.5} parent=11 // pred_fallthru
          _
      $region12: #{forward.5} parent=5 // pred_fallthru
        _
      %p455 = scmp.lt.s32.totalorder %s24, 2
      // Predicated region
      $region61: #{forward.5} parent=5 // pred_check
        %p456 = pneg %p455
      $region62: #{forward.5} parent=5 // pred_check_branch
        %458 = sbr.rel (%p456) target = $region64
      $region63: #{forward.5} parent=5 // pred_region
        // Predicated region
        $region65: #{forward.5} parent=63 // pred_check
          %p459 = pneg %p44
        $region66: #{forward.5} parent=63 // pred_check_branch
          %461 = sbr.rel (%p459) target = $region68
        $region67: #{forward.5} parent=63 // pred_region
          %p462 = scmp.lt.s32.totalorder %s24, 1
          %s463 = scalar_select %p462, %s24, 1
          %s464 = smul.addr %s463, 8
          %s465 = scalar_lea.vmem %s0, %s464
        $region68: #{forward.5} parent=63 // pred_fallthru
          _
      $region64: #{forward.5} parent=5 // pred_fallthru
        _
      %p466 = scmp.le.s32.totalorder 1, %s24
      %p467 = scmp.lt.s32.totalorder %s24, 3
      %p468 = pnand %p466, %p467
      %p469 = pneg %p468
      // Predicated region
      $region69: #{forward.5} parent=5 // pred_check
        _
      $region70: #{forward.5} parent=5 // pred_check_branch
        %471 = sbr.rel (%p468) target = $region72
      $region71: #{forward.5} parent=5 // pred_region
        %s472 = ssub.s32 %s24, 1
        // Predicated region
        $region73: #{forward.5} parent=71 // pred_check
          %p473 = pneg %p71
        $region74: #{forward.5} parent=71 // pred_check_branch
          %475 = sbr.rel (%p473) target = $region76
        $region75: #{forward.5} parent=71 // pred_region
          %476 = dma.done [#allocation3], 3072
        $region76: #{forward.5} parent=71 // pred_fallthru
          _
        // Predicated region
        $region77: #{forward.5} parent=71 // pred_check
          %p477 = pneg %p134
        $region78: #{forward.5} parent=71 // pred_check_branch
          %479 = sbr.rel (%p477) target = $region80
        $region79: #{forward.5} parent=71 // pred_region
          %480 = dma.done [#allocation5], 16
        $region80: #{forward.5} parent=71 // pred_fallthru
          _
        // Predicated region
        $region81: #{forward.5} parent=71 // pred_check
          %p481 = pneg %p155
        $region82: #{forward.5} parent=71 // pred_check_branch
          %483 = sbr.rel (%p481) target = $region84
        $region83: #{forward.5} parent=71 // pred_region
          %484 = dma.done [#allocation5], 16
        $region84: #{forward.5} parent=71 // pred_fallthru
          _
        // Predicated region
        $region85: #{forward.5} parent=71 // pred_check
          %p485 = pneg %p176
        $region86: #{forward.5} parent=71 // pred_check_branch
          %487 = sbr.rel (%p485) target = $region88
        $region87: #{forward.5} parent=71 // pred_region
          %488 = dma.done [#allocation8], 16
        $region88: #{forward.5} parent=71 // pred_fallthru
          _
        // Predicated region
        $region89: #{forward.5} parent=71 // pred_check
          %p489 = pneg %p218
        $region90: #{forward.5} parent=71 // pred_check_branch
          %491 = sbr.rel (%p489) target = $region92
        $region91: #{forward.5} parent=71 // pred_region
          %492 = dma.done [#allocation8], 64
        $region92: #{forward.5} parent=71 // pred_fallthru
          _
        // Predicated region
        $region93: #{forward.5} parent=71 // pred_check
          %p493 = pneg %p239
        $region94: #{forward.5} parent=71 // pred_check_branch
          %495 = sbr.rel (%p493) target = $region96
        $region95: #{forward.5} parent=71 // pred_region
          %496 = dma.done [#allocation11], 4096
        $region96: #{forward.5} parent=71 // pred_fallthru
          _
        // Predicated region
        $region97: #{forward.5} parent=71 // pred_check
          %p497 = pneg %p260
        $region98: #{forward.5} parent=71 // pred_check_branch
          %499 = sbr.rel (%p497) target = $region100
        $region99: #{forward.5} parent=71 // pred_region
          %500 = dma.done [#allocation11], 16
        $region100: #{forward.5} parent=71 // pred_fallthru
          _
        // Predicated region
        $region101: #{forward.5} parent=71 // pred_check
          %p501 = pneg %p281
        $region102: #{forward.5} parent=71 // pred_check_branch
          %503 = sbr.rel (%p501) target = $region104
        $region103: #{forward.5} parent=71 // pred_region
          %504 = dma.done [#allocation14], 16
        $region104: #{forward.5} parent=71 // pred_fallthru
          _
        // Predicated region
        $region105: #{forward.5} parent=71 // pred_check
          %p505 = pneg %p302
        $region106: #{forward.5} parent=71 // pred_check_branch
          %507 = sbr.rel (%p505) target = $region108
        $region107: #{forward.5} parent=71 // pred_region
          %508 = dma.done [#allocation14], 16
        $region108: #{forward.5} parent=71 // pred_fallthru
          _
        %p509 = scmp.lt.s32.totalorder %s29, 1
        %s510 = scalar_select %p509, %s29, 1
        %s511 = smul.addr %s510, 8
        %s512 = scalar_lea.vmem %s0, %s511
        %p513 = pneg %p50
        %p514 = pneg %p47
        %p515 = pneg %p71
        %p516 = pneg %p68
        %p517 = pneg %p92
        %p518 = pneg %p89
        %p519 = pneg %p113
        %p520 = pneg %p110
        %p521 = pneg %p134
        %p522 = pneg %p131
        %p523 = pneg %p155
        %p524 = pneg %p152
        %p525 = pneg %p176
        %p526 = pneg %p173
        %p527 = pneg %p197
        %p528 = pneg %p194
        %p529 = pneg %p218
        %p530 = pneg %p215
        %p531 = pneg %p239
        %p532 = pneg %p236
        %p533 = pneg %p260
        %p534 = pneg %p257
        %p535 = pneg %p281
        %p536 = pneg %p278
        %p537 = pneg %p302
        %p538 = pneg %p299
        %p539 = pneg %p328
        %p540 = pneg %p325
        %p541 = scmp.lt.s32.totalorder %s29, 1
        %s542 = scalar_select %p541, %s29, 1
        %s543 = smul.addr %s542, 8
        %s544 = scalar_lea.vmem %s13, %s543
        %p545 = scmp.lt.s32.totalorder %s29, 1
        %s546 = scalar_select %p545, %s29, 1
        %s547 = smul.addr %s546, 8
        %s548 = scalar_lea.vmem %s0, %s547
        %p549 = scmp.lt.s32.totalorder %s29, 1
        %s550 = scalar_select %p549, %s29, 1
        %s551 = smul.addr %s550, 8
        %s552 = scalar_lea.vmem %s13, %s551
        %v554 = vld [vmem:[%s548] sm:$0xff]
        %v555 = vpack.c.bf16 %v554, %v554
        %v556 = vld [vmem:[#allocation2] sm:$0xff]
        %v557 = vld [vmem:[#allocation2 + $0x8] sm:$0xf]
        %v558 = vld [vmem:[#allocation2 + $0xc] sm:$0xff]
        %v559 = vld [vmem:[#allocation2 + $0x14] sm:$0xf]
        %v560 = vld [vmem:[#allocation2 + $0x18] sm:$0xff]
        %v561 = vld [vmem:[#allocation2 + $0x20] sm:$0xf]
        %v562 = vld [vmem:[#allocation2 + $0x24] sm:$0xff]
        %v563 = vld [vmem:[#allocation2 + $0x2c] sm:$0xf]
        %v564 = vld [vmem:[#allocation2 + $0x30] sm:$0xff]
        %v565 = vld [vmem:[#allocation2 + $0x38] sm:$0xf]
        %v566 = vld [vmem:[#allocation2 + $0x3c] sm:$0xff]
        %v567 = vld [vmem:[#allocation2 + $0x44] sm:$0xf]
        %v568 = vld [vmem:[#allocation2 + $0x48] sm:$0xff]
        %v569 = vld [vmem:[#allocation2 + $0x50] sm:$0xf]
        %v570 = vld [vmem:[#allocation2 + $0x54] sm:$0xff]
        %v571 = vld [vmem:[#allocation2 + $0x5c] sm:$0xf]
        %v572 = vld [vmem:[#allocation2 + $0x60] sm:$0xff]
        %v573 = vld [vmem:[#allocation2 + $0x68] sm:$0xf]
        %v574 = vld [vmem:[#allocation2 + $0x6c] sm:$0xff]
        %v575 = vld [vmem:[#allocation2 + $0x74] sm:$0xf]
        %v576 = vld [vmem:[#allocation2 + $0x78] sm:$0xff]
        %v577 = vld [vmem:[#allocation2 + $0x80] sm:$0xf]
        %v578 = vld [vmem:[#allocation2 + $0x84] sm:$0xff]
        %v579 = vld [vmem:[#allocation2 + $0x8c] sm:$0xf]
        %v580 = vld [vmem:[#allocation2 + $0x90] sm:$0xff]
        %v581 = vld [vmem:[#allocation2 + $0x98] sm:$0xf]
        %v582 = vld [vmem:[#allocation2 + $0x9c] sm:$0xff]
        %v583 = vld [vmem:[#allocation2 + $0xa4] sm:$0xf]
        %v584 = vld [vmem:[#allocation2 + $0xa8] sm:$0xff]
        %v585 = vld [vmem:[#allocation2 + $0xb0] sm:$0xf]
        %v586 = vld [vmem:[#allocation2 + $0xb4] sm:$0xff]
        %v587 = vld [vmem:[#allocation2 + $0xbc] sm:$0xf]
        %v588 = vld [vmem:[%s2] sm:$0x7]
        %v590 = vlaneseq
        %v591 = vshrl.u32 %v590, 7
        %v592 = vsub.s32 0, %v591
        %v593 = vrot.slane %v588, %v592
        %v594 = vlaneseq
        %v595 = vshrl.u32 %v594, 7
        %v596 = vsub.s32 1, %v595
        %v597 = vrot.slane %v588, %v596
        %v598 = vlaneseq
        %v599 = vshrl.u32 %v598, 7
        %v600 = vsub.s32 2, %v599
        %v601 = vrot.slane %v588, %v600
        %v637 = vunpack.c.l.b16 %v556
        %v638 = vunpack.c.h.b16 %v556
        %v639 = vunpack.c.l.b16 %v557
        %v640 = vunpack.c.l.b16 %v558
        %v641 = vunpack.c.h.b16 %v558
        %v642 = vunpack.c.l.b16 %v559
        %v643 = vunpack.c.l.b16 %v560
        %v644 = vunpack.c.h.b16 %v560
        %v645 = vunpack.c.l.b16 %v561
        %v646 = vunpack.c.l.b16 %v562
        %v647 = vunpack.c.h.b16 %v562
        %v648 = vunpack.c.l.b16 %v563
        %v649 = vunpack.c.l.b16 %v564
        %v650 = vunpack.c.h.b16 %v564
        %v651 = vunpack.c.l.b16 %v565
        %v652 = vunpack.c.l.b16 %v566
        %v653 = vunpack.c.h.b16 %v566
        %v654 = vunpack.c.l.b16 %v567
        %v655 = vunpack.c.l.b16 %v568
        %v656 = vunpack.c.h.b16 %v568
        %v657 = vunpack.c.l.b16 %v569
        %v658 = vunpack.c.l.b16 %v570
        %v659 = vunpack.c.h.b16 %v570
        %v660 = vunpack.c.l.b16 %v571
        %v661 = vunpack.c.l.b16 %v572
        %v662 = vunpack.c.h.b16 %v572
        %v663 = vunpack.c.l.b16 %v573
        %v664 = vunpack.c.l.b16 %v574
        %v665 = vunpack.c.h.b16 %v574
        %v666 = vunpack.c.l.b16 %v575
        %v667 = vunpack.c.l.b16 %v576
        %v668 = vunpack.c.h.b16 %v576
        %v669 = vunpack.c.l.b16 %v577
        %v670 = vunpack.c.l.b16 %v578
        %v671 = vunpack.c.h.b16 %v578
        %v672 = vunpack.c.l.b16 %v579
        %v673 = vunpack.c.l.b16 %v580
        %v674 = vunpack.c.h.b16 %v580
        %v675 = vunpack.c.l.b16 %v581
        %v676 = vunpack.c.l.b16 %v582
        %v677 = vunpack.c.h.b16 %v582
        %v678 = vunpack.c.l.b16 %v583
        %v679 = vunpack.c.l.b16 %v584
        %v680 = vunpack.c.h.b16 %v584
        %v681 = vunpack.c.l.b16 %v585
        %v682 = vunpack.c.l.b16 %v586
        %v683 = vunpack.c.h.b16 %v586
        %v684 = vunpack.c.l.b16 %v587
        %v685 = vpack.c.b16 %v640, %v637
        %v686 = vpack.c.b16 %v641, %v638
        %v687 = vpack.c.b16 %v642, %v639
        %v688 = vpack.c.b16 %v646, %v643
        %v689 = vpack.c.b16 %v647, %v644
        %v690 = vpack.c.b16 %v648, %v645
        %v691 = vpack.c.b16 %v652, %v649
        %v692 = vpack.c.b16 %v653, %v650
        %v693 = vpack.c.b16 %v654, %v651
        %v694 = vpack.c.b16 %v658, %v655
        %v695 = vpack.c.b16 %v659, %v656
        %v696 = vpack.c.b16 %v660, %v657
        %v697 = vpack.c.b16 %v664, %v661
        %v698 = vpack.c.b16 %v665, %v662
        %v699 = vpack.c.b16 %v666, %v663
        %v700 = vpack.c.b16 %v670, %v667
        %v701 = vpack.c.b16 %v671, %v668
        %v702 = vpack.c.b16 %v672, %v669
        %v703 = vpack.c.b16 %v676, %v673
        %v704 = vpack.c.b16 %v677, %v674
        %v705 = vpack.c.b16 %v678, %v675
        %v706 = vpack.c.b16 %v682, %v679
        %v707 = vpack.c.b16 %v683, %v680
        %v708 = vpack.c.b16 %v684, %v681
        %733 = vmatprep.subr.bf16.mxu0 %v707
        %734 = vmatpush1.bf16.msra.mxu0 %v706
        %735 = vmatprep.subr.bf16.mxu0 %v704
        %736 = vmatpush1.bf16.msra.mxu0 %v703
        %737 = vmatprep.subr.bf16.mxu0 %v701
        %738 = vmatpush1.bf16.msra.mxu0 %v700
        %739 = vmatprep.subr.bf16.mxu0 %v698
        %740 = vmatpush1.bf16.msra.mxu0 %v697
        %741 = vmatprep.subr.bf16.mxu0 %v695
        %742 = vmatpush1.bf16.msra.mxu0 %v694
        %743 = vmatprep.subr.bf16.mxu0 %v692
        %744 = vmatpush1.bf16.msra.mxu0 %v691
        %745 = vmatprep.subr.bf16.mxu0 %v689
        %746 = vmatpush1.bf16.msra.mxu0 %v688
        %747 = vmatprep.subr.bf16.mxu0 %v686
        %748 = vmatpush1.bf16.msra.mxu0 %v685
        %749 = vmatprep.subr.bf16.mxu0 0
        %750 = vmatpush2.bf16.msra.mxu0 0
        %751 = vmatprep.subr.bf16.mxu0 0
        %752 = vmatpush2.bf16.msra.mxu0 0
        %753 = vmatprep.subr.bf16.mxu0 0
        %754 = vmatpush2.bf16.msra.mxu0 0
        %755 = vmatprep.subr.bf16.mxu0 0
        %756 = vmatpush2.bf16.msra.mxu0 0
        %757 = vmatprep.subr.bf16.mxu0 0
        %758 = vmatpush2.bf16.msra.mxu0 0
        %759 = vmatprep.subr.bf16.mxu0 0
        %760 = vmatpush2.bf16.msra.mxu0 0
        %761 = vmatprep.subr.bf16.mxu0 0
        %762 = vmatpush2.bf16.msra.mxu0 0
        %763 = vmatprep.subr.bf16.mxu0 0
        %764 = vmatpush2.bf16.msra.mxu0 0
        %765 = vmatprep.mubr.bf16.mxu0 0
        %766 = vmatmul.mubr.bf16.gmra.mxu0 %v555
        %v767 = vpop.f32.mrf.mxu0
        %v768 = vadd.f32 %v593, %v767
        %v769 = vpop.f32.mrf.mxu0
        %v770 = vadd.f32 %v597, %v769
        %v771 = vpop.f32.mrf.mxu0
        %v772 = vpop.f32.mrf.mxu0
        %773 = vdwg.mxu0
        %774 = vmatprep.subr.bf16.mxu0 0
        %775 = vmatpush1.bf16.msra.mxu0 %v708
        %776 = vmatprep.subr.bf16.mxu0 0
        %777 = vmatpush1.bf16.msra.mxu0 %v705
        %778 = vmatprep.subr.bf16.mxu0 0
        %779 = vmatpush1.bf16.msra.mxu0 %v702
        %780 = vmatprep.subr.bf16.mxu0 0
        %781 = vmatpush1.bf16.msra.mxu0 %v699
        %782 = vmatprep.subr.bf16.mxu0 0
        %783 = vmatpush1.bf16.msra.mxu0 %v696
        %784 = vmatprep.subr.bf16.mxu0 0
        %785 = vmatpush1.bf16.msra.mxu0 %v693
        %786 = vmatprep.subr.bf16.mxu0 0
        %787 = vmatpush1.bf16.msra.mxu0 %v690
        %788 = vmatprep.subr.bf16.mxu0 0
        %789 = vmatpush1.bf16.msra.mxu0 %v687
        %790 = vmatprep.subr.bf16.mxu0 0
        %791 = vmatpush2.bf16.msra.mxu0 0
        %792 = vmatprep.subr.bf16.mxu0 0
        %793 = vmatpush2.bf16.msra.mxu0 0
        %794 = vmatprep.subr.bf16.mxu0 0
        %795 = vmatpush2.bf16.msra.mxu0 0
        %796 = vmatprep.subr.bf16.mxu0 0
        %797 = vmatpush2.bf16.msra.mxu0 0
        %798 = vmatprep.subr.bf16.mxu0 0
        %799 = vmatpush2.bf16.msra.mxu0 0
        %800 = vmatprep.subr.bf16.mxu0 0
        %801 = vmatpush2.bf16.msra.mxu0 0
        %802 = vmatprep.subr.bf16.mxu0 0
        %803 = vmatpush2.bf16.msra.mxu0 0
        %804 = vmatprep.subr.bf16.mxu0 0
        %805 = vmatpush2.bf16.msra.mxu0 0
        %806 = vmatprep.mubr.bf16.mxu0 0
        %807 = vmatmul.mubr.bf16.gmra.mxu0 %v555
        %v808 = vpop.f32.mrf.mxu0
        %v809 = vadd.f32 %v601, %v808
        %v810 = vpop.f32.mrf.mxu0
        %v811 = vpop.f32.mrf.mxu0
        %v812 = vpop.f32.mrf.mxu0
        %813 = vdwg.mxu0
        %v814 = vpack.c.bf16 %v768, %v768
        %v815 = vpack.c.bf16 %v770, %v770
        %v816 = vpack.c.bf16 %v809, %v809
        %vm817 = vcmask 261120
        %v819 = vsel %vm817, %v814, 0
        %v822 = vsel %vm817, %v815, 0
        %824 = vmatprep.subr.bf16.mxu0 0
        %825 = vmatpush1.bf16.xpose.msra.mxu0 0
        %826 = vmatprep.subr.bf16.mxu0 0
        %827 = vmatpush1.bf16.xpose.msra.mxu0 0
        %828 = vmatprep.subr.bf16.mxu0 0
        %829 = vmatpush1.bf16.xpose.msra.mxu0 0
        %830 = vmatprep.subr.bf16.mxu0 0
        %831 = vmatpush1.bf16.xpose.msra.mxu0 0
        %832 = vmatprep.subr.bf16.mxu0 0
        %833 = vmatpush1.bf16.xpose.msra.mxu0 0
        %834 = vmatprep.subr.bf16.mxu0 0
        %835 = vmatpush1.bf16.xpose.msra.mxu0 0
        %836 = vmatprep.subr.bf16.mxu0 0
        %837 = vmatpush1.bf16.xpose.msra.mxu0 0
        %838 = vmatprep.subr.bf16.mxu0 0
        %839 = vmatpush1.bf16.xpose.msra.mxu0 %v822
        %840 = vmatprep.subr.bf16.mxu0 0
        %841 = vmatpush2.bf16.xpose.msra.mxu0 0
        %842 = vmatprep.subr.bf16.mxu0 0
        %843 = vmatpush2.bf16.xpose.msra.mxu0 0
        %844 = vmatprep.subr.bf16.mxu0 0
        %845 = vmatpush2.bf16.xpose.msra.mxu0 0
        %846 = vmatprep.subr.bf16.mxu0 0
        %847 = vmatpush2.bf16.xpose.msra.mxu0 0
        %848 = vmatprep.subr.bf16.mxu0 0
        %849 = vmatpush2.bf16.xpose.msra.mxu0 0
        %850 = vmatprep.subr.bf16.mxu0 0
        %851 = vmatpush2.bf16.xpose.msra.mxu0 0
        %852 = vmatprep.subr.bf16.mxu0 0
        %853 = vmatpush2.bf16.xpose.msra.mxu0 0
        %854 = vmatprep.subr.bf16.mxu0 0
        %855 = vmatpush2.bf16.xpose.msra.mxu0 0
        %856 = vmatprep.mubr.bf16.mxu0 0
        %857 = vmatmul.mubr.bf16.gmra.mxu0 %v819
        %v858 = vpop.f32.mrf.mxu0
        %v859 = vadd.f32 0.0, %v858
        %v860 = vpop.f32.mrf.mxu0
        %v861 = vpop.f32.mrf.mxu0
        %v862 = vpop.f32.mrf.mxu0
        %863 = vdwg.mxu0
        %v864 = vmul.f32 %v859, 0.17677669
        %vm865 = vcmask 64512
        %v866 = vsel %vm865, %v864, -inf
        %867 = vmax.xlane.f32.xlu0 %v866
        %v868 = vpop.xlane.xlu0 %867
        %v869 = vsub.f32 %v864, %v868
        %v870 = vmul.f32 %v869, 1.442695
        %v871 = vpow.pop %v870
        %v872 = vsel %vm865, %v871, 0.0
        %873 = vadd.xlane.f32.xlu0 %v872
        %v874 = vpop.xlane.xlu0 %873
        %v875 = vrcp.pop %v874
        %v876 = vmul.f32 %v871, %v875
        %v877 = vpack.c.bf16 %v876, %v876
        %v879 = vsel %vm865, %v877, 0
        %vm881 = vcmask 1043456
        %v883 = vsel %vm881, %v816, 0
        %885 = vmatprep.subr.bf16.mxu0 0
        %886 = vmatpush1.bf16.msra.mxu0 0
        %887 = vmatprep.subr.bf16.mxu0 0
        %888 = vmatpush1.bf16.msra.mxu0 0
        %889 = vmatprep.subr.bf16.mxu0 0
        %890 = vmatpush1.bf16.msra.mxu0 0
        %891 = vmatprep.subr.bf16.mxu0 0
        %892 = vmatpush1.bf16.msra.mxu0 0
        %893 = vmatprep.subr.bf16.mxu0 0
        %894 = vmatpush1.bf16.msra.mxu0 0
        %895 = vmatprep.subr.bf16.mxu0 0
        %896 = vmatpush1.bf16.msra.mxu0 0
        %897 = vmatprep.subr.bf16.mxu0 0
        %898 = vmatpush1.bf16.msra.mxu0 0
        %899 = vmatprep.subr.bf16.mxu0 0
        %900 = vmatpush1.bf16.msra.mxu0 %v883
        %901 = vmatprep.subr.bf16.mxu0 0
        %902 = vmatpush2.bf16.msra.mxu0 0
        %903 = vmatprep.subr.bf16.mxu0 0
        %904 = vmatpush2.bf16.msra.mxu0 0
        %905 = vmatprep.subr.bf16.mxu0 0
        %906 = vmatpush2.bf16.msra.mxu0 0
        %907 = vmatprep.subr.bf16.mxu0 0
        %908 = vmatpush2.bf16.msra.mxu0 0
        %909 = vmatprep.subr.bf16.mxu0 0
        %910 = vmatpush2.bf16.msra.mxu0 0
        %911 = vmatprep.subr.bf16.mxu0 0
        %912 = vmatpush2.bf16.msra.mxu0 0
        %913 = vmatprep.subr.bf16.mxu0 0
        %914 = vmatpush2.bf16.msra.mxu0 0
        %915 = vmatprep.subr.bf16.mxu0 0
        %916 = vmatpush2.bf16.msra.mxu0 0
        %917 = vmatprep.mubr.bf16.mxu0 0
        %918 = vmatmul.mubr.bf16.gmra.mxu0 %v879
        %v919 = vpop.f32.mrf.mxu0
        %v920 = vadd.f32 0.0, %v919
        %v921 = vpop.f32.mrf.mxu0
        %v922 = vpop.f32.mrf.mxu0
        %v923 = vpop.f32.mrf.mxu0
        %924 = vdwg.mxu0
        %926 = vrot.lane.b32.xlu0 %v814, 96
        %v927 = vpop.permute.xlu0 %926
        %929 = vrot.lane.b32.xlu0 %v815, 96
        %v930 = vpop.permute.xlu0 %929
        %v932 = vsel %vm817, %v927, 0
        %v935 = vsel %vm817, %v930, 0
        %937 = vmatprep.subr.bf16.mxu0 0
        %938 = vmatpush1.bf16.xpose.msra.mxu0 0
        %939 = vmatprep.subr.bf16.mxu0 0
        %940 = vmatpush1.bf16.xpose.msra.mxu0 0
        %941 = vmatprep.subr.bf16.mxu0 0
        %942 = vmatpush1.bf16.xpose.msra.mxu0 0
        %943 = vmatprep.subr.bf16.mxu0 0
        %944 = vmatpush1.bf16.xpose.msra.mxu0 0
        %945 = vmatprep.subr.bf16.mxu0 0
        %946 = vmatpush1.bf16.xpose.msra.mxu0 0
        %947 = vmatprep.subr.bf16.mxu0 0
        %948 = vmatpush1.bf16.xpose.msra.mxu0 0
        %949 = vmatprep.subr.bf16.mxu0 0
        %950 = vmatpush1.bf16.xpose.msra.mxu0 0
        %951 = vmatprep.subr.bf16.mxu0 0
        %952 = vmatpush1.bf16.xpose.msra.mxu0 %v935
        %953 = vmatprep.subr.bf16.mxu0 0
        %954 = vmatpush2.bf16.xpose.msra.mxu0 0
        %955 = vmatprep.subr.bf16.mxu0 0
        %956 = vmatpush2.bf16.xpose.msra.mxu0 0
        %957 = vmatprep.subr.bf16.mxu0 0
        %958 = vmatpush2.bf16.xpose.msra.mxu0 0
        %959 = vmatprep.subr.bf16.mxu0 0
        %960 = vmatpush2.bf16.xpose.msra.mxu0 0
        %961 = vmatprep.subr.bf16.mxu0 0
        %962 = vmatpush2.bf16.xpose.msra.mxu0 0
        %963 = vmatprep.subr.bf16.mxu0 0
        %964 = vmatpush2.bf16.xpose.msra.mxu0 0
        %965 = vmatprep.subr.bf16.mxu0 0
        %966 = vmatpush2.bf16.xpose.msra.mxu0 0
        %967 = vmatprep.subr.bf16.mxu0 0
        %968 = vmatpush2.bf16.xpose.msra.mxu0 0
        %969 = vmatprep.mubr.bf16.mxu0 0
        %970 = vmatmul.mubr.bf16.gmra.mxu0 %v932
        %v971 = vpop.f32.mrf.mxu0
        %v972 = vadd.f32 0.0, %v971
        %v973 = vpop.f32.mrf.mxu0
        %v974 = vpop.f32.mrf.mxu0
        %v975 = vpop.f32.mrf.mxu0
        %976 = vdwg.mxu0
        %v977 = vmul.f32 %v972, 0.17677669
        %v978 = vsel %vm865, %v977, -inf
        %979 = vmax.xlane.f32.xlu0 %v978
        %v980 = vpop.xlane.xlu0 %979
        %v981 = vsub.f32 %v977, %v980
        %v982 = vmul.f32 %v981, 1.442695
        %v983 = vpow.pop %v982
        %v984 = vsel %vm865, %v983, 0.0
        %985 = vadd.xlane.f32.xlu0 %v984
        %v986 = vpop.xlane.xlu0 %985
        %v987 = vrcp.pop %v986
        %v988 = vmul.f32 %v983, %v987
        %v989 = vpack.c.bf16 %v988, %v988
        %991 = vrot.lane.b32.xlu0 %v816, 96
        %v992 = vpop.permute.xlu0 %991
        %v994 = vsel %vm865, %v989, 0
        %v997 = vsel %vm881, %v992, 0
        %999 = vmatprep.subr.bf16.mxu0 0
        %1000 = vmatpush1.bf16.msra.mxu0 0
        %1001 = vmatprep.subr.bf16.mxu0 0
        %1002 = vmatpush1.bf16.msra.mxu0 0
        %1003 = vmatprep.subr.bf16.mxu0 0
        %1004 = vmatpush1.bf16.msra.mxu0 0
        %1005 = vmatprep.subr.bf16.mxu0 0
        %1006 = vmatpush1.bf16.msra.mxu0 0
        %1007 = vmatprep.subr.bf16.mxu0 0
        %1008 = vmatpush1.bf16.msra.mxu0 0
        %1009 = vmatprep.subr.bf16.mxu0 0
        %1010 = vmatpush1.bf16.msra.mxu0 0
        %1011 = vmatprep.subr.bf16.mxu0 0
        %1012 = vmatpush1.bf16.msra.mxu0 0
        %1013 = vmatprep.subr.bf16.mxu0 0
        %1014 = vmatpush1.bf16.msra.mxu0 %v997
        %1015 = vmatprep.subr.bf16.mxu0 0
        %1016 = vmatpush2.bf16.msra.mxu0 0
        %1017 = vmatprep.subr.bf16.mxu0 0
        %1018 = vmatpush2.bf16.msra.mxu0 0
        %1019 = vmatprep.subr.bf16.mxu0 0
        %1020 = vmatpush2.bf16.msra.mxu0 0
        %1021 = vmatprep.subr.bf16.mxu0 0
        %1022 = vmatpush2.bf16.msra.mxu0 0
        %1023 = vmatprep.subr.bf16.mxu0 0
        %1024 = vmatpush2.bf16.msra.mxu0 0
        %1025 = vmatprep.subr.bf16.mxu0 0
        %1026 = vmatpush2.bf16.msra.mxu0 0
        %1027 = vmatprep.subr.bf16.mxu0 0
        %1028 = vmatpush2.bf16.msra.mxu0 0
        %1029 = vmatprep.subr.bf16.mxu0 0
        %1030 = vmatpush2.bf16.msra.mxu0 0
        %1031 = vmatprep.mubr.bf16.mxu0 0
        %1032 = vmatmul.mubr.bf16.gmra.mxu0 %v994
        %v1033 = vpop.f32.mrf.mxu0
        %v1034 = vadd.f32 0.0, %v1033
        %v1035 = vpop.f32.mrf.mxu0
        %v1036 = vpop.f32.mrf.mxu0
        %v1037 = vpop.f32.mrf.mxu0
        %1038 = vdwg.mxu0
        %1039 = vrot.lane.b32.xlu0 %v814, 64
        %v1040 = vpop.permute.xlu0 %1039
        %1041 = vrot.lane.b32.xlu0 %v815, 64
        %v1042 = vpop.permute.xlu0 %1041
        %v1044 = vsel %vm817, %v1040, 0
        %v1047 = vsel %vm817, %v1042, 0
        %1049 = vmatprep.subr.bf16.mxu0 0
        %1050 = vmatpush1.bf16.xpose.msra.mxu0 0
        %1051 = vmatprep.subr.bf16.mxu0 0
        %1052 = vmatpush1.bf16.xpose.msra.mxu0 0
        %1053 = vmatprep.subr.bf16.mxu0 0
        %1054 = vmatpush1.bf16.xpose.msra.mxu0 0
        %1055 = vmatprep.subr.bf16.mxu0 0
        %1056 = vmatpush1.bf16.xpose.msra.mxu0 0
        %1057 = vmatprep.subr.bf16.mxu0 0
        %1058 = vmatpush1.bf16.xpose.msra.mxu0 0
        %1059 = vmatprep.subr.bf16.mxu0 0
        %1060 = vmatpush1.bf16.xpose.msra.mxu0 0
        %1061 = vmatprep.subr.bf16.mxu0 0
        %1062 = vmatpush1.bf16.xpose.msra.mxu0 0
        %1063 = vmatprep.subr.bf16.mxu0 0
        %1064 = vmatpush1.bf16.xpose.msra.mxu0 %v1047
        %1065 = vmatprep.subr.bf16.mxu0 0
        %1066 = vmatpush2.bf16.xpose.msra.mxu0 0
        %1067 = vmatprep.subr.bf16.mxu0 0
        %1068 = vmatpush2.bf16.xpose.msra.mxu0 0
        %1069 = vmatprep.subr.bf16.mxu0 0
        %1070 = vmatpush2.bf16.xpose.msra.mxu0 0
        %1071 = vmatprep.subr.bf16.mxu0 0
        %1072 = vmatpush2.bf16.xpose.msra.mxu0 0
        %1073 = vmatprep.subr.bf16.mxu0 0
        %1074 = vmatpush2.bf16.xpose.msra.mxu0 0
        %1075 = vmatprep.subr.bf16.mxu0 0
        %1076 = vmatpush2.bf16.xpose.msra.mxu0 0
        %1077 = vmatprep.subr.bf16.mxu0 0
        %1078 = vmatpush2.bf16.xpose.msra.mxu0 0
        %1079 = vmatprep.subr.bf16.mxu0 0
        %1080 = vmatpush2.bf16.xpose.msra.mxu0 0
        %1081 = vmatprep.mubr.bf16.mxu0 0
        %1082 = vmatmul.mubr.bf16.gmra.mxu0 %v1044
        %v1083 = vpop.f32.mrf.mxu0
        %v1084 = vadd.f32 0.0, %v1083
        %v1085 = vpop.f32.mrf.mxu0
        %v1086 = vpop.f32.mrf.mxu0
        %v1087 = vpop.f32.mrf.mxu0
        %1088 = vdwg.mxu0
        %v1089 = vmul.f32 %v1084, 0.17677669
        %v1090 = vsel %vm865, %v1089, -inf
        %1091 = vmax.xlane.f32.xlu0 %v1090
        %v1092 = vpop.xlane.xlu0 %1091
        %v1093 = vsub.f32 %v1089, %v1092
        %v1094 = vmul.f32 %v1093, 1.442695
        %v1095 = vpow.pop %v1094
        %v1096 = vsel %vm865, %v1095, 0.0
        %1097 = vadd.xlane.f32.xlu0 %v1096
        %v1098 = vpop.xlane.xlu0 %1097
        %v1099 = vrcp.pop %v1098
        %v1100 = vmul.f32 %v1095, %v1099
        %v1101 = vpack.c.bf16 %v1100, %v1100
        %1102 = vrot.lane.b32.xlu0 %v816, 64
        %v1103 = vpop.permute.xlu0 %1102
        %v1105 = vsel %vm865, %v1101, 0
        %v1108 = vsel %vm881, %v1103, 0
        %1110 = vmatprep.subr.bf16.mxu0 0
        %1111 = vmatpush1.bf16.msra.mxu0 0
        %1112 = vmatprep.subr.bf16.mxu0 0
        %1113 = vmatpush1.bf16.msra.mxu0 0
        %1114 = vmatprep.subr.bf16.mxu0 0
        %1115 = vmatpush1.bf16.msra.mxu0 0
        %1116 = vmatprep.subr.bf16.mxu0 0
        %1117 = vmatpush1.bf16.msra.mxu0 0
        %1118 = vmatprep.subr.bf16.mxu0 0
        %1119 = vmatpush1.bf16.msra.mxu0 0
        %1120 = vmatprep.subr.bf16.mxu0 0
        %1121 = vmatpush1.bf16.msra.mxu0 0
        %1122 = vmatprep.subr.bf16.mxu0 0
        %1123 = vmatpush1.bf16.msra.mxu0 0
        %1124 = vmatprep.subr.bf16.mxu0 0
        %1125 = vmatpush1.bf16.msra.mxu0 %v1108
        %1126 = vmatprep.subr.bf16.mxu0 0
        %1127 = vmatpush2.bf16.msra.mxu0 0
        %1128 = vmatprep.subr.bf16.mxu0 0
        %1129 = vmatpush2.bf16.msra.mxu0 0
        %1130 = vmatprep.subr.bf16.mxu0 0
        %1131 = vmatpush2.bf16.msra.mxu0 0
        %1132 = vmatprep.subr.bf16.mxu0 0
        %1133 = vmatpush2.bf16.msra.mxu0 0
        %1134 = vmatprep.subr.bf16.mxu0 0
        %1135 = vmatpush2.bf16.msra.mxu0 0
        %1136 = vmatprep.subr.bf16.mxu0 0
        %1137 = vmatpush2.bf16.msra.mxu0 0
        %1138 = vmatprep.subr.bf16.mxu0 0
        %1139 = vmatpush2.bf16.msra.mxu0 0
        %1140 = vmatprep.subr.bf16.mxu0 0
        %1141 = vmatpush2.bf16.msra.mxu0 0
        %1142 = vmatprep.mubr.bf16.mxu0 0
        %1143 = vmatmul.mubr.bf16.gmra.mxu0 %v1105
        %v1144 = vpop.f32.mrf.mxu0
        %v1145 = vadd.f32 0.0, %v1144
        %v1146 = vpop.f32.mrf.mxu0
        %v1147 = vpop.f32.mrf.mxu0
        %v1148 = vpop.f32.mrf.mxu0
        %1149 = vdwg.mxu0
        %1150 = vrot.lane.b32.xlu0 %v814, 32
        %v1151 = vpop.permute.xlu0 %1150
        %1152 = vrot.lane.b32.xlu0 %v815, 32
        %v1153 = vpop.permute.xlu0 %1152
        %v1155 = vsel %vm817, %v1151, 0
        %v1158 = vsel %vm817, %v1153, 0
        %1160 = vmatprep.subr.bf16.mxu0 0
        %1161 = vmatpush1.bf16.xpose.msra.mxu0 0
        %1162 = vmatprep.subr.bf16.mxu0 0
        %1163 = vmatpush1.bf16.xpose.msra.mxu0 0
        %1164 = vmatprep.subr.bf16.mxu0 0
        %1165 = vmatpush1.bf16.xpose.msra.mxu0 0
        %1166 = vmatprep.subr.bf16.mxu0 0
        %1167 = vmatpush1.bf16.xpose.msra.mxu0 0
        %1168 = vmatprep.subr.bf16.mxu0 0
        %1169 = vmatpush1.bf16.xpose.msra.mxu0 0
        %1170 = vmatprep.subr.bf16.mxu0 0
        %1171 = vmatpush1.bf16.xpose.msra.mxu0 0
        %1172 = vmatprep.subr.bf16.mxu0 0
        %1173 = vmatpush1.bf16.xpose.msra.mxu0 0
        %1174 = vmatprep.subr.bf16.mxu0 0
        %1175 = vmatpush1.bf16.xpose.msra.mxu0 %v1158
        %1176 = vmatprep.subr.bf16.mxu0 0
        %1177 = vmatpush2.bf16.xpose.msra.mxu0 0
        %1178 = vmatprep.subr.bf16.mxu0 0
        %1179 = vmatpush2.bf16.xpose.msra.mxu0 0
        %1180 = vmatprep.subr.bf16.mxu0 0
        %1181 = vmatpush2.bf16.xpose.msra.mxu0 0
        %1182 = vmatprep.subr.bf16.mxu0 0
        %1183 = vmatpush2.bf16.xpose.msra.mxu0 0
        %1184 = vmatprep.subr.bf16.mxu0 0
        %1185 = vmatpush2.bf16.xpose.msra.mxu0 0
        %1186 = vmatprep.subr.bf16.mxu0 0
        %1187 = vmatpush2.bf16.xpose.msra.mxu0 0
        %1188 = vmatprep.subr.bf16.mxu0 0
        %1189 = vmatpush2.bf16.xpose.msra.mxu0 0
        %1190 = vmatprep.subr.bf16.mxu0 0
        %1191 = vmatpush2.bf16.xpose.msra.mxu0 0
        %1192 = vmatprep.mubr.bf16.mxu0 0
        %1193 = vmatmul.mubr.bf16.gmra.mxu0 %v1155
        %v1194 = vpop.f32.mrf.mxu0
        %v1195 = vadd.f32 0.0, %v1194
        %v1196 = vpop.f32.mrf.mxu0
        %v1197 = vpop.f32.mrf.mxu0
        %v1198 = vpop.f32.mrf.mxu0
        %1199 = vdwg.mxu0
        %v1200 = vmul.f32 %v1195, 0.17677669
        %v1201 = vsel %vm865, %v1200, -inf
        %1202 = vmax.xlane.f32.xlu0 %v1201
        %v1203 = vpop.xlane.xlu0 %1202
        %v1204 = vsub.f32 %v1200, %v1203
        %v1205 = vmul.f32 %v1204, 1.442695
        %v1206 = vpow.pop %v1205
        %v1207 = vsel %vm865, %v1206, 0.0
        %1208 = vadd.xlane.f32.xlu0 %v1207
        %v1209 = vpop.xlane.xlu0 %1208
        %v1210 = vrcp.pop %v1209
        %v1211 = vmul.f32 %v1206, %v1210
        %v1212 = vpack.c.bf16 %v1211, %v1211
        %1213 = vrot.lane.b32.xlu0 %v816, 32
        %v1214 = vpop.permute.xlu0 %1213
        %v1216 = vsel %vm865, %v1212, 0
        %v1219 = vsel %vm881, %v1214, 0
        %1221 = vmatprep.subr.bf16.mxu0 0
        %1222 = vmatpush1.bf16.msra.mxu0 0
        %1223 = vmatprep.subr.bf16.mxu0 0
        %1224 = vmatpush1.bf16.msra.mxu0 0
        %1225 = vmatprep.subr.bf16.mxu0 0
        %1226 = vmatpush1.bf16.msra.mxu0 0
        %1227 = vmatprep.subr.bf16.mxu0 0
        %1228 = vmatpush1.bf16.msra.mxu0 0
        %1229 = vmatprep.subr.bf16.mxu0 0
        %1230 = vmatpush1.bf16.msra.mxu0 0
        %1231 = vmatprep.subr.bf16.mxu0 0
        %1232 = vmatpush1.bf16.msra.mxu0 0
        %1233 = vmatprep.subr.bf16.mxu0 0
        %1234 = vmatpush1.bf16.msra.mxu0 0
        %1235 = vmatprep.subr.bf16.mxu0 0
        %1236 = vmatpush1.bf16.msra.mxu0 %v1219
        %1237 = vmatprep.subr.bf16.mxu0 0
        %1238 = vmatpush2.bf16.msra.mxu0 0
        %1239 = vmatprep.subr.bf16.mxu0 0
        %1240 = vmatpush2.bf16.msra.mxu0 0
        %1241 = vmatprep.subr.bf16.mxu0 0
        %1242 = vmatpush2.bf16.msra.mxu0 0
        %1243 = vmatprep.subr.bf16.mxu0 0
        %1244 = vmatpush2.bf16.msra.mxu0 0
        %1245 = vmatprep.subr.bf16.mxu0 0
        %1246 = vmatpush2.bf16.msra.mxu0 0
        %1247 = vmatprep.subr.bf16.mxu0 0
        %1248 = vmatpush2.bf16.msra.mxu0 0
        %1249 = vmatprep.subr.bf16.mxu0 0
        %1250 = vmatpush2.bf16.msra.mxu0 0
        %1251 = vmatprep.subr.bf16.mxu0 0
        %1252 = vmatpush2.bf16.msra.mxu0 0
        %1253 = vmatprep.mubr.bf16.mxu0 0
        %1254 = vmatmul.mubr.bf16.gmra.mxu0 %v1216
        %v1255 = vpop.f32.mrf.mxu0
        %v1256 = vadd.f32 0.0, %v1255
        %v1257 = vpop.f32.mrf.mxu0
        %v1258 = vpop.f32.mrf.mxu0
        %v1259 = vpop.f32.mrf.mxu0
        %1260 = vdwg.mxu0
        %1262 = vrot.lane.b32.xlu0 %v1034, 32
        %v1263 = vpop.permute.xlu0 %1262
        %1266 = vrot.lane.b32.xlu0 %v1145, 64
        %v1267 = vpop.permute.xlu0 %1266
        %1270 = vrot.lane.b32.xlu0 %v1256, 96
        %v1271 = vpop.permute.xlu0 %1270
        %v1273 = vsel %vm817, %v920, %v1263
        %vm1274 = vcmask 523264
        %v1275 = vsel %vm1274, %v1273, %v1267
        %vm1276 = vcmask 785408
        %v1277 = vsel %vm1276, %v1275, %v1271
        %v1278 = vpack.c.bf16 %v1277, %v1277
        %v1279 = vld [vmem:[%s3] sm:$0xf]
        %v1280 = vld [vmem:[%s3 + $0x4] sm:$0xf]
        %v1281 = vld [vmem:[%s3 + $0x8] sm:$0xf]
        %v1282 = vld [vmem:[%s3 + $0xc] sm:$0xf]
        %v1283 = vld [vmem:[%s3 + $0x10] sm:$0xf]
        %v1284 = vld [vmem:[%s3 + $0x14] sm:$0xf]
        %v1285 = vld [vmem:[%s3 + $0x18] sm:$0xf]
        %v1286 = vld [vmem:[%s3 + $0x1c] sm:$0xf]
        %v1287 = vld [vmem:[%s3 + $0x20] sm:$0xf]
        %v1288 = vld [vmem:[%s3 + $0x24] sm:$0xf]
        %v1289 = vld [vmem:[%s3 + $0x28] sm:$0xf]
        %v1290 = vld [vmem:[%s3 + $0x2c] sm:$0xf]
        %v1291 = vld [vmem:[%s3 + $0x30] sm:$0xf]
        %v1292 = vld [vmem:[%s3 + $0x34] sm:$0xf]
        %v1293 = vld [vmem:[%s3 + $0x38] sm:$0xf]
        %v1294 = vld [vmem:[%s3 + $0x3c] sm:$0xf]
        %v1295 = vld [vmem:[#allocation4] sm:$0x1]
        %v1297 = vlaneseq
        %v1298 = vshrl.u32 %v1297, 7
        %v1299 = vsub.s32 0, %v1298
        %v1300 = vrot.slane %v1295, %v1299
        %v1318 = vunpack.c.l.b16 %v1279
        %v1319 = vunpack.c.l.b16 %v1280
        %v1320 = vunpack.c.l.b16 %v1281
        %v1321 = vunpack.c.l.b16 %v1282
        %v1322 = vunpack.c.l.b16 %v1283
        %v1323 = vunpack.c.l.b16 %v1284
        %v1324 = vunpack.c.l.b16 %v1285
        %v1325 = vunpack.c.l.b16 %v1286
        %v1326 = vunpack.c.l.b16 %v1287
        %v1327 = vunpack.c.l.b16 %v1288
        %v1328 = vunpack.c.l.b16 %v1289
        %v1329 = vunpack.c.l.b16 %v1290
        %v1330 = vunpack.c.l.b16 %v1291
        %v1331 = vunpack.c.l.b16 %v1292
        %v1332 = vunpack.c.l.b16 %v1293
        %v1333 = vunpack.c.l.b16 %v1294
        %v1334 = vpack.c.b16 %v1319, %v1318
        %v1335 = vpack.c.b16 %v1321, %v1320
        %v1336 = vpack.c.b16 %v1323, %v1322
        %v1337 = vpack.c.b16 %v1325, %v1324
        %v1338 = vpack.c.b16 %v1327, %v1326
        %v1339 = vpack.c.b16 %v1329, %v1328
        %v1340 = vpack.c.b16 %v1331, %v1330
        %v1341 = vpack.c.b16 %v1333, %v1332
        %1350 = vmatprep.subr.bf16.mxu0 0
        %1351 = vmatpush1.bf16.msra.mxu0 %v1341
        %1352 = vmatprep.subr.bf16.mxu0 0
        %1353 = vmatpush1.bf16.msra.mxu0 %v1340
        %1354 = vmatprep.subr.bf16.mxu0 0
        %1355 = vmatpush1.bf16.msra.mxu0 %v1339
        %1356 = vmatprep.subr.bf16.mxu0 0
        %1357 = vmatpush1.bf16.msra.mxu0 %v1338
        %1358 = vmatprep.subr.bf16.mxu0 0
        %1359 = vmatpush1.bf16.msra.mxu0 %v1337
        %1360 = vmatprep.subr.bf16.mxu0 0
        %1361 = vmatpush1.bf16.msra.mxu0 %v1336
        %1362 = vmatprep.subr.bf16.mxu0 0
        %1363 = vmatpush1.bf16.msra.mxu0 %v1335
        %1364 = vmatprep.subr.bf16.mxu0 0
        %1365 = vmatpush1.bf16.msra.mxu0 %v1334
        %1366 = vmatprep.subr.bf16.mxu0 0
        %1367 = vmatpush2.bf16.msra.mxu0 0
        %1368 = vmatprep.subr.bf16.mxu0 0
        %1369 = vmatpush2.bf16.msra.mxu0 0
        %1370 = vmatprep.subr.bf16.mxu0 0
        %1371 = vmatpush2.bf16.msra.mxu0 0
        %1372 = vmatprep.subr.bf16.mxu0 0
        %1373 = vmatpush2.bf16.msra.mxu0 0
        %1374 = vmatprep.subr.bf16.mxu0 0
        %1375 = vmatpush2.bf16.msra.mxu0 0
        %1376 = vmatprep.subr.bf16.mxu0 0
        %1377 = vmatpush2.bf16.msra.mxu0 0
        %1378 = vmatprep.subr.bf16.mxu0 0
        %1379 = vmatpush2.bf16.msra.mxu0 0
        %1380 = vmatprep.subr.bf16.mxu0 0
        %1381 = vmatpush2.bf16.msra.mxu0 0
        %1382 = vmatprep.mubr.bf16.mxu0 0
        %1383 = vmatmul.mubr.bf16.gmra.mxu0 %v1278
        %v1384 = vpop.f32.mrf.mxu0
        %v1385 = vadd.f32 %v1300, %v1384
        %v1386 = vpop.f32.mrf.mxu0
        %v1387 = vpop.f32.mrf.mxu0
        %v1388 = vpop.f32.mrf.mxu0
        %1389 = vdwg.mxu0
        %v1390 = vadd.f32 %v1385, %v554
        %v1391 = vld [vmem:[#allocation6] sm:$0x1]
        %v1392 = vld [vmem:[#allocation7] sm:$0x1]
        %1393 = vadd.xlane.f32.xlu0 %v1390
        %v1394 = vpop.xlane.xlu0 %1393
        %v1395 = vrcp.pop 128.0
        %v1396 = vmul.f32 %v1394, %v1395
        %v1397 = vsub.f32 %v1390, %v1396
        %v1398 = vmul.f32 %v1397, %v1397
        %1399 = vadd.xlane.f32.xlu0 %v1398
        %v1400 = vpop.xlane.xlu0 %1399
        %v1401 = vmul.f32 %v1400, %v1395
        %v1402 = vadd.f32 %v1401, 1e-12
        %v1403 = vrsqrt.pop %v1402
        %v1404 = vmul.f32 %v1397, %v1403
        %v1406 = vlaneseq
        %v1407 = vshrl.u32 %v1406, 7
        %v1408 = vsub.s32 0, %v1407
        %v1409 = vrot.slane %v1391, %v1408
        %v1411 = vmul.f32 %v1404, %v1409
        %v1413 = vlaneseq
        %v1414 = vshrl.u32 %v1413, 7
        %v1415 = vsub.s32 0, %v1414
        %v1416 = vrot.slane %v1392, %v1415
        %v1418 = vadd.f32 %v1411, %v1416
        %v1419 = vpack.c.bf16 %v1418, %v1418
        %v1420 = vld [vmem:[%s7] sm:$0xff]
        %v1421 = vld [vmem:[%s7 + $0x8] sm:$0xff]
        %v1422 = vld [vmem:[%s7 + $0x10] sm:$0xff]
        %v1423 = vld [vmem:[%s7 + $0x18] sm:$0xff]
        %v1424 = vld [vmem:[%s7 + $0x20] sm:$0xff]
        %v1425 = vld [vmem:[%s7 + $0x28] sm:$0xff]
        %v1426 = vld [vmem:[%s7 + $0x30] sm:$0xff]
        %v1427 = vld [vmem:[%s7 + $0x38] sm:$0xff]
        %v1428 = vld [vmem:[%s7 + $0x40] sm:$0xff]
        %v1429 = vld [vmem:[%s7 + $0x48] sm:$0xff]
        %v1430 = vld [vmem:[%s7 + $0x50] sm:$0xff]
        %v1431 = vld [vmem:[%s7 + $0x58] sm:$0xff]
        %v1432 = vld [vmem:[%s7 + $0x60] sm:$0xff]
        %v1433 = vld [vmem:[%s7 + $0x68] sm:$0xff]
        %v1434 = vld [vmem:[%s7 + $0x70] sm:$0xff]
        %v1435 = vld [vmem:[%s7 + $0x78] sm:$0xff]
        %v1436 = vld [vmem:[%s7 + $0x80] sm:$0xff]
        %v1437 = vld [vmem:[%s7 + $0x88] sm:$0xff]
        %v1438 = vld [vmem:[%s7 + $0x90] sm:$0xff]
        %v1439 = vld [vmem:[%s7 + $0x98] sm:$0xff]
        %v1440 = vld [vmem:[%s7 + $0xa0] sm:$0xff]
        %v1441 = vld [vmem:[%s7 + $0xa8] sm:$0xff]
        %v1442 = vld [vmem:[%s7 + $0xb0] sm:$0xff]
        %v1443 = vld [vmem:[%s7 + $0xb8] sm:$0xff]
        %v1444 = vld [vmem:[%s7 + $0xc0] sm:$0xff]
        %v1445 = vld [vmem:[%s7 + $0xc8] sm:$0xff]
        %v1446 = vld [vmem:[%s7 + $0xd0] sm:$0xff]
        %v1447 = vld [vmem:[%s7 + $0xd8] sm:$0xff]
        %v1448 = vld [vmem:[%s7 + $0xe0] sm:$0xff]
        %v1449 = vld [vmem:[%s7 + $0xe8] sm:$0xff]
        %v1450 = vld [vmem:[%s7 + $0xf0] sm:$0xff]
        %v1451 = vld [vmem:[%s7 + $0xf8] sm:$0xff]
        %v1452 = vld [vmem:[#allocation9] sm:$0xf]
        %v1454 = vlaneseq
        %v1455 = vshrl.u32 %v1454, 7
        %v1456 = vsub.s32 0, %v1455
        %v1457 = vrot.slane %v1452, %v1456
        %v1458 = vlaneseq
        %v1459 = vshrl.u32 %v1458, 7
        %v1460 = vsub.s32 1, %v1459
        %v1461 = vrot.slane %v1452, %v1460
        %v1462 = vlaneseq
        %v1463 = vshrl.u32 %v1462, 7
        %v1464 = vsub.s32 2, %v1463
        %v1465 = vrot.slane %v1452, %v1464
        %v1466 = vlaneseq
        %v1467 = vshrl.u32 %v1466, 7
        %v1468 = vsub.s32 3, %v1467
        %v1469 = vrot.slane %v1452, %v1468
        %v1506 = vunpack.c.l.b16 %v1420
        %v1507 = vunpack.c.h.b16 %v1420
        %v1508 = vunpack.c.l.b16 %v1421
        %v1509 = vunpack.c.h.b16 %v1421
        %v1510 = vunpack.c.l.b16 %v1422
        %v1511 = vunpack.c.h.b16 %v1422
        %v1512 = vunpack.c.l.b16 %v1423
        %v1513 = vunpack.c.h.b16 %v1423
        %v1514 = vunpack.c.l.b16 %v1424
        %v1515 = vunpack.c.h.b16 %v1424
        %v1516 = vunpack.c.l.b16 %v1425
        %v1517 = vunpack.c.h.b16 %v1425
        %v1518 = vunpack.c.l.b16 %v1426
        %v1519 = vunpack.c.h.b16 %v1426
        %v1520 = vunpack.c.l.b16 %v1427
        %v1521 = vunpack.c.h.b16 %v1427
        %v1522 = vunpack.c.l.b16 %v1428
        %v1523 = vunpack.c.h.b16 %v1428
        %v1524 = vunpack.c.l.b16 %v1429
        %v1525 = vunpack.c.h.b16 %v1429
        %v1526 = vunpack.c.l.b16 %v1430
        %v1527 = vunpack.c.h.b16 %v1430
        %v1528 = vunpack.c.l.b16 %v1431
        %v1529 = vunpack.c.h.b16 %v1431
        %v1530 = vunpack.c.l.b16 %v1432
        %v1531 = vunpack.c.h.b16 %v1432
        %v1532 = vunpack.c.l.b16 %v1433
        %v1533 = vunpack.c.h.b16 %v1433
        %v1534 = vunpack.c.l.b16 %v1434
        %v1535 = vunpack.c.h.b16 %v1434
        %v1536 = vunpack.c.l.b16 %v1435
        %v1537 = vunpack.c.h.b16 %v1435
        %v1538 = vunpack.c.l.b16 %v1436
        %v1539 = vunpack.c.h.b16 %v1436
        %v1540 = vunpack.c.l.b16 %v1437
        %v1541 = vunpack.c.h.b16 %v1437
        %v1542 = vunpack.c.l.b16 %v1438
        %v1543 = vunpack.c.h.b16 %v1438
        %v1544 = vunpack.c.l.b16 %v1439
        %v1545 = vunpack.c.h.b16 %v1439
        %v1546 = vunpack.c.l.b16 %v1440
        %v1547 = vunpack.c.h.b16 %v1440
        %v1548 = vunpack.c.l.b16 %v1441
        %v1549 = vunpack.c.h.b16 %v1441
        %v1550 = vunpack.c.l.b16 %v1442
        %v1551 = vunpack.c.h.b16 %v1442
        %v1552 = vunpack.c.l.b16 %v1443
        %v1553 = vunpack.c.h.b16 %v1443
        %v1554 = vunpack.c.l.b16 %v1444
        %v1555 = vunpack.c.h.b16 %v1444
        %v1556 = vunpack.c.l.b16 %v1445
        %v1557 = vunpack.c.h.b16 %v1445
        %v1558 = vunpack.c.l.b16 %v1446
        %v1559 = vunpack.c.h.b16 %v1446
        %v1560 = vunpack.c.l.b16 %v1447
        %v1561 = vunpack.c.h.b16 %v1447
        %v1562 = vunpack.c.l.b16 %v1448
        %v1563 = vunpack.c.h.b16 %v1448
        %v1564 = vunpack.c.l.b16 %v1449
        %v1565 = vunpack.c.h.b16 %v1449
        %v1566 = vunpack.c.l.b16 %v1450
        %v1567 = vunpack.c.h.b16 %v1450
        %v1568 = vunpack.c.l.b16 %v1451
        %v1569 = vunpack.c.h.b16 %v1451
        %v1570 = vpack.c.b16 %v1510, %v1506
        %v1571 = vpack.c.b16 %v1511, %v1507
        %v1572 = vpack.c.b16 %v1512, %v1508
        %v1573 = vpack.c.b16 %v1513, %v1509
        %v1574 = vpack.c.b16 %v1518, %v1514
        %v1575 = vpack.c.b16 %v1519, %v1515
        %v1576 = vpack.c.b16 %v1520, %v1516
        %v1577 = vpack.c.b16 %v1521, %v1517
        %v1578 = vpack.c.b16 %v1526, %v1522
        %v1579 = vpack.c.b16 %v1527, %v1523
        %v1580 = vpack.c.b16 %v1528, %v1524
        %v1581 = vpack.c.b16 %v1529, %v1525
        %v1582 = vpack.c.b16 %v1534, %v1530
        %v1583 = vpack.c.b16 %v1535, %v1531
        %v1584 = vpack.c.b16 %v1536, %v1532
        %v1585 = vpack.c.b16 %v1537, %v1533
        %v1586 = vpack.c.b16 %v1542, %v1538
        %v1587 = vpack.c.b16 %v1543, %v1539
        %v1588 = vpack.c.b16 %v1544, %v1540
        %v1589 = vpack.c.b16 %v1545, %v1541
        %v1590 = vpack.c.b16 %v1550, %v1546
        %v1591 = vpack.c.b16 %v1551, %v1547
        %v1592 = vpack.c.b16 %v1552, %v1548
        %v1593 = vpack.c.b16 %v1553, %v1549
        %v1594 = vpack.c.b16 %v1558, %v1554
        %v1595 = vpack.c.b16 %v1559, %v1555
        %v1596 = vpack.c.b16 %v1560, %v1556
        %v1597 = vpack.c.b16 %v1561, %v1557
        %v1598 = vpack.c.b16 %v1566, %v1562
        %v1599 = vpack.c.b16 %v1567, %v1563
        %v1600 = vpack.c.b16 %v1568, %v1564
        %v1601 = vpack.c.b16 %v1569, %v1565
        %1634 = vmatprep.subr.bf16.mxu0 %v1599
        %1635 = vmatpush1.bf16.msra.mxu0 %v1598
        %1636 = vmatprep.subr.bf16.mxu0 %v1595
        %1637 = vmatpush1.bf16.msra.mxu0 %v1594
        %1638 = vmatprep.subr.bf16.mxu0 %v1591
        %1639 = vmatpush1.bf16.msra.mxu0 %v1590
        %1640 = vmatprep.subr.bf16.mxu0 %v1587
        %1641 = vmatpush1.bf16.msra.mxu0 %v1586
        %1642 = vmatprep.subr.bf16.mxu0 %v1583
        %1643 = vmatpush1.bf16.msra.mxu0 %v1582
        %1644 = vmatprep.subr.bf16.mxu0 %v1579
        %1645 = vmatpush1.bf16.msra.mxu0 %v1578
        %1646 = vmatprep.subr.bf16.mxu0 %v1575
        %1647 = vmatpush1.bf16.msra.mxu0 %v1574
        %1648 = vmatprep.subr.bf16.mxu0 %v1571
        %1649 = vmatpush1.bf16.msra.mxu0 %v1570
        %1650 = vmatprep.subr.bf16.mxu0 0
        %1651 = vmatpush2.bf16.msra.mxu0 0
        %1652 = vmatprep.subr.bf16.mxu0 0
        %1653 = vmatpush2.bf16.msra.mxu0 0
        %1654 = vmatprep.subr.bf16.mxu0 0
        %1655 = vmatpush2.bf16.msra.mxu0 0
        %1656 = vmatprep.subr.bf16.mxu0 0
        %1657 = vmatpush2.bf16.msra.mxu0 0
        %1658 = vmatprep.subr.bf16.mxu0 0
        %1659 = vmatpush2.bf16.msra.mxu0 0
        %1660 = vmatprep.subr.bf16.mxu0 0
        %1661 = vmatpush2.bf16.msra.mxu0 0
        %1662 = vmatprep.subr.bf16.mxu0 0
        %1663 = vmatpush2.bf16.msra.mxu0 0
        %1664 = vmatprep.subr.bf16.mxu0 0
        %1665 = vmatpush2.bf16.msra.mxu0 0
        %1666 = vmatprep.mubr.bf16.mxu0 0
        %1667 = vmatmul.mubr.bf16.gmra.mxu0 %v1419
        %v1668 = vpop.f32.mrf.mxu0
        %v1669 = vadd.f32 %v1457, %v1668
        %v1670 = vpop.f32.mrf.mxu0
        %v1671 = vadd.f32 %v1461, %v1670
        %v1672 = vpop.f32.mrf.mxu0
        %v1673 = vpop.f32.mrf.mxu0
        %1674 = vdwg.mxu0
        %1675 = vmatprep.subr.bf16.mxu0 %v1601
        %1676 = vmatpush1.bf16.msra.mxu0 %v1600
        %1677 = vmatprep.subr.bf16.mxu0 %v1597
        %1678 = vmatpush1.bf16.msra.mxu0 %v1596
        %1679 = vmatprep.subr.bf16.mxu0 %v1593
        %1680 = vmatpush1.bf16.msra.mxu0 %v1592
        %1681 = vmatprep.subr.bf16.mxu0 %v1589
        %1682 = vmatpush1.bf16.msra.mxu0 %v1588
        %1683 = vmatprep.subr.bf16.mxu0 %v1585
        %1684 = vmatpush1.bf16.msra.mxu0 %v1584
        %1685 = vmatprep.subr.bf16.mxu0 %v1581
        %1686 = vmatpush1.bf16.msra.mxu0 %v1580
        %1687 = vmatprep.subr.bf16.mxu0 %v1577
        %1688 = vmatpush1.bf16.msra.mxu0 %v1576
        %1689 = vmatprep.subr.bf16.mxu0 %v1573
        %1690 = vmatpush1.bf16.msra.mxu0 %v1572
        %1691 = vmatprep.subr.bf16.mxu0 0
        %1692 = vmatpush2.bf16.msra.mxu0 0
        %1693 = vmatprep.subr.bf16.mxu0 0
        %1694 = vmatpush2.bf16.msra.mxu0 0
        %1695 = vmatprep.subr.bf16.mxu0 0
        %1696 = vmatpush2.bf16.msra.mxu0 0
        %1697 = vmatprep.subr.bf16.mxu0 0
        %1698 = vmatpush2.bf16.msra.mxu0 0
        %1699 = vmatprep.subr.bf16.mxu0 0
        %1700 = vmatpush2.bf16.msra.mxu0 0
        %1701 = vmatprep.subr.bf16.mxu0 0
        %1702 = vmatpush2.bf16.msra.mxu0 0
        %1703 = vmatprep.subr.bf16.mxu0 0
        %1704 = vmatpush2.bf16.msra.mxu0 0
        %1705 = vmatprep.subr.bf16.mxu0 0
        %1706 = vmatpush2.bf16.msra.mxu0 0
        %1707 = vmatprep.mubr.bf16.mxu0 0
        %1708 = vmatmul.mubr.bf16.gmra.mxu0 %v1419
        %v1709 = vpop.f32.mrf.mxu0
        %v1710 = vadd.f32 %v1465, %v1709
        %v1711 = vpop.f32.mrf.mxu0
        %v1712 = vadd.f32 %v1469, %v1711
        %v1713 = vpop.f32.mrf.mxu0
        %v1714 = vpop.f32.mrf.mxu0
        %1715 = vdwg.mxu0
        %v1716 = vmul.f32 %v1669, 0.5
        %v1717 = vmul.f32 %v1671, 0.5
        %v1718 = vmul.f32 %v1710, 0.5
        %v1719 = vmul.f32 %v1712, 0.5
        %v1720 = vmul.f32 %v1669, 0.044715
        %v1721 = vmul.f32 %v1671, 0.044715
        %v1722 = vmul.f32 %v1710, 0.044715
        %v1723 = vmul.f32 %v1712, 0.044715
        %v1724 = vmul.f32 %v1720, %v1669
        %v1725 = vmul.f32 %v1721, %v1671
        %v1726 = vmul.f32 %v1722, %v1710
        %v1727 = vmul.f32 %v1723, %v1712
        %v1728 = vmul.f32 %v1724, %v1669
        %v1729 = vmul.f32 %v1725, %v1671
        %v1730 = vmul.f32 %v1726, %v1710
        %v1731 = vmul.f32 %v1727, %v1712
        %v1732 = vadd.f32 %v1669, %v1728
        %v1733 = vadd.f32 %v1671, %v1729
        %v1734 = vadd.f32 %v1710, %v1730
        %v1735 = vadd.f32 %v1712, %v1731
        %v1736 = vmul.f32 %v1732, 0.7978845
        %v1737 = vmul.f32 %v1733, 0.7978845
        %v1738 = vmul.f32 %v1734, 0.7978845
        %v1739 = vmul.f32 %v1735, 0.7978845
        %v1740 = vtanh.pop %v1736
        %v1741 = vtanh.pop %v1737
        %v1742 = vtanh.pop %v1738
        %v1743 = vtanh.pop %v1739
        %v1744 = vadd.f32 %v1740, 1.0
        %v1745 = vadd.f32 %v1741, 1.0
        %v1746 = vadd.f32 %v1742, 1.0
        %v1747 = vadd.f32 %v1743, 1.0
        %v1748 = vmul.f32 %v1716, %v1744
        %v1749 = vmul.f32 %v1717, %v1745
        %v1750 = vmul.f32 %v1718, %v1746
        %v1751 = vmul.f32 %v1719, %v1747
        %v1752 = vpack.c.bf16 %v1748, %v1748
        %v1753 = vpack.c.bf16 %v1749, %v1749
        %v1754 = vpack.c.bf16 %v1750, %v1750
        %v1755 = vpack.c.bf16 %v1751, %v1751
        %v1756 = vld [vmem:[#allocation10] sm:$0xf]
        %v1757 = vld [vmem:[#allocation10 + $0x4] sm:$0xf]
        %v1758 = vld [vmem:[#allocation10 + $0x8] sm:$0xf]
        %v1759 = vld [vmem:[#allocation10 + $0xc] sm:$0xf]
        %v1760 = vld [vmem:[#allocation10 + $0x10] sm:$0xf]
        %v1761 = vld [vmem:[#allocation10 + $0x14] sm:$0xf]
        %v1762 = vld [vmem:[#allocation10 + $0x18] sm:$0xf]
        %v1763 = vld [vmem:[#allocation10 + $0x1c] sm:$0xf]
        %v1764 = vld [vmem:[#allocation10 + $0x20] sm:$0xf]
        %v1765 = vld [vmem:[#allocation10 + $0x24] sm:$0xf]
        %v1766 = vld [vmem:[#allocation10 + $0x28] sm:$0xf]
        %v1767 = vld [vmem:[#allocation10 + $0x2c] sm:$0xf]
        %v1768 = vld [vmem:[#allocation10 + $0x30] sm:$0xf]
        %v1769 = vld [vmem:[#allocation10 + $0x34] sm:$0xf]
        %v1770 = vld [vmem:[#allocation10 + $0x38] sm:$0xf]
        %v1771 = vld [vmem:[#allocation10 + $0x3c] sm:$0xf]
        %v1772 = vld [vmem:[#allocation10 + $0x40] sm:$0xf]
        %v1773 = vld [vmem:[#allocation10 + $0x44] sm:$0xf]
        %v1774 = vld [vmem:[#allocation10 + $0x48] sm:$0xf]
        %v1775 = vld [vmem:[#allocation10 + $0x4c] sm:$0xf]
        %v1776 = vld [vmem:[#allocation10 + $0x50] sm:$0xf]
        %v1777 = vld [vmem:[#allocation10 + $0x54] sm:$0xf]
        %v1778 = vld [vmem:[#allocation10 + $0x58] sm:$0xf]
        %v1779 = vld [vmem:[#allocation10 + $0x5c] sm:$0xf]
        %v1780 = vld [vmem:[#allocation10 + $0x60] sm:$0xf]
        %v1781 = vld [vmem:[#allocation10 + $0x64] sm:$0xf]
        %v1782 = vld [vmem:[#allocation10 + $0x68] sm:$0xf]
        %v1783 = vld [vmem:[#allocation10 + $0x6c] sm:$0xf]
        %v1784 = vld [vmem:[#allocation10 + $0x70] sm:$0xf]
        %v1785 = vld [vmem:[#allocation10 + $0x74] sm:$0xf]
        %v1786 = vld [vmem:[#allocation10 + $0x78] sm:$0xf]
        %v1787 = vld [vmem:[#allocation10 + $0x7c] sm:$0xf]
        %v1788 = vld [vmem:[#allocation10 + $0x80] sm:$0xf]
        %v1789 = vld [vmem:[#allocation10 + $0x84] sm:$0xf]
        %v1790 = vld [vmem:[#allocation10 + $0x88] sm:$0xf]
        %v1791 = vld [vmem:[#allocation10 + $0x8c] sm:$0xf]
        %v1792 = vld [vmem:[#allocation10 + $0x90] sm:$0xf]
        %v1793 = vld [vmem:[#allocation10 + $0x94] sm:$0xf]
        %v1794 = vld [vmem:[#allocation10 + $0x98] sm:$0xf]
        %v1795 = vld [vmem:[#allocation10 + $0x9c] sm:$0xf]
        %v1796 = vld [vmem:[#allocation10 + $0xa0] sm:$0xf]
        %v1797 = vld [vmem:[#allocation10 + $0xa4] sm:$0xf]
        %v1798 = vld [vmem:[#allocation10 + $0xa8] sm:$0xf]
        %v1799 = vld [vmem:[#allocation10 + $0xac] sm:$0xf]
        %v1800 = vld [vmem:[#allocation10 + $0xb0] sm:$0xf]
        %v1801 = vld [vmem:[#allocation10 + $0xb4] sm:$0xf]
        %v1802 = vld [vmem:[#allocation10 + $0xb8] sm:$0xf]
        %v1803 = vld [vmem:[#allocation10 + $0xbc] sm:$0xf]
        %v1804 = vld [vmem:[#allocation10 + $0xc0] sm:$0xf]
        %v1805 = vld [vmem:[#allocation10 + $0xc4] sm:$0xf]
        %v1806 = vld [vmem:[#allocation10 + $0xc8] sm:$0xf]
        %v1807 = vld [vmem:[#allocation10 + $0xcc] sm:$0xf]
        %v1808 = vld [vmem:[#allocation10 + $0xd0] sm:$0xf]
        %v1809 = vld [vmem:[#allocation10 + $0xd4] sm:$0xf]
        %v1810 = vld [vmem:[#allocation10 + $0xd8] sm:$0xf]
        %v1811 = vld [vmem:[#allocation10 + $0xdc] sm:$0xf]
        %v1812 = vld [vmem:[#allocation10 + $0xe0] sm:$0xf]
        %v1813 = vld [vmem:[#allocation10 + $0xe4] sm:$0xf]
        %v1814 = vld [vmem:[#allocation10 + $0xe8] sm:$0xf]
        %v1815 = vld [vmem:[#allocation10 + $0xec] sm:$0xf]
        %v1816 = vld [vmem:[#allocation10 + $0xf0] sm:$0xf]
        %v1817 = vld [vmem:[#allocation10 + $0xf4] sm:$0xf]
        %v1818 = vld [vmem:[#allocation10 + $0xf8] sm:$0xf]
        %v1819 = vld [vmem:[#allocation10 + $0xfc] sm:$0xf]
        %v1820 = vld [vmem:[#allocation12] sm:$0x1]
        %v1822 = vlaneseq
        %v1823 = vshrl.u32 %v1822, 7
        %v1824 = vsub.s32 0, %v1823
        %v1825 = vrot.slane %v1820, %v1824
        %v1891 = vunpack.c.l.b16 %v1756
        %v1892 = vunpack.c.l.b16 %v1757
        %v1893 = vunpack.c.l.b16 %v1758
        %v1894 = vunpack.c.l.b16 %v1759
        %v1895 = vunpack.c.l.b16 %v1760
        %v1896 = vunpack.c.l.b16 %v1761
        %v1897 = vunpack.c.l.b16 %v1762
        %v1898 = vunpack.c.l.b16 %v1763
        %v1899 = vunpack.c.l.b16 %v1764
        %v1900 = vunpack.c.l.b16 %v1765
        %v1901 = vunpack.c.l.b16 %v1766
        %v1902 = vunpack.c.l.b16 %v1767
        %v1903 = vunpack.c.l.b16 %v1768
        %v1904 = vunpack.c.l.b16 %v1769
        %v1905 = vunpack.c.l.b16 %v1770
        %v1906 = vunpack.c.l.b16 %v1771
        %v1907 = vunpack.c.l.b16 %v1772
        %v1908 = vunpack.c.l.b16 %v1773
        %v1909 = vunpack.c.l.b16 %v1774
        %v1910 = vunpack.c.l.b16 %v1775
        %v1911 = vunpack.c.l.b16 %v1776
        %v1912 = vunpack.c.l.b16 %v1777
        %v1913 = vunpack.c.l.b16 %v1778
        %v1914 = vunpack.c.l.b16 %v1779
        %v1915 = vunpack.c.l.b16 %v1780
        %v1916 = vunpack.c.l.b16 %v1781
        %v1917 = vunpack.c.l.b16 %v1782
        %v1918 = vunpack.c.l.b16 %v1783
        %v1919 = vunpack.c.l.b16 %v1784
        %v1920 = vunpack.c.l.b16 %v1785
        %v1921 = vunpack.c.l.b16 %v1786
        %v1922 = vunpack.c.l.b16 %v1787
        %v1923 = vunpack.c.l.b16 %v1788
        %v1924 = vunpack.c.l.b16 %v1789
        %v1925 = vunpack.c.l.b16 %v1790
        %v1926 = vunpack.c.l.b16 %v1791
        %v1927 = vunpack.c.l.b16 %v1792
        %v1928 = vunpack.c.l.b16 %v1793
        %v1929 = vunpack.c.l.b16 %v1794
        %v1930 = vunpack.c.l.b16 %v1795
        %v1931 = vunpack.c.l.b16 %v1796
        %v1932 = vunpack.c.l.b16 %v1797
        %v1933 = vunpack.c.l.b16 %v1798
        %v1934 = vunpack.c.l.b16 %v1799
        %v1935 = vunpack.c.l.b16 %v1800
        %v1936 = vunpack.c.l.b16 %v1801
        %v1937 = vunpack.c.l.b16 %v1802
        %v1938 = vunpack.c.l.b16 %v1803
        %v1939 = vunpack.c.l.b16 %v1804
        %v1940 = vunpack.c.l.b16 %v1805
        %v1941 = vunpack.c.l.b16 %v1806
        %v1942 = vunpack.c.l.b16 %v1807
        %v1943 = vunpack.c.l.b16 %v1808
        %v1944 = vunpack.c.l.b16 %v1809
        %v1945 = vunpack.c.l.b16 %v1810
        %v1946 = vunpack.c.l.b16 %v1811
        %v1947 = vunpack.c.l.b16 %v1812
        %v1948 = vunpack.c.l.b16 %v1813
        %v1949 = vunpack.c.l.b16 %v1814
        %v1950 = vunpack.c.l.b16 %v1815
        %v1951 = vunpack.c.l.b16 %v1816
        %v1952 = vunpack.c.l.b16 %v1817
        %v1953 = vunpack.c.l.b16 %v1818
        %v1954 = vunpack.c.l.b16 %v1819
        %v1955 = vpack.c.b16 %v1892, %v1891
        %v1956 = vpack.c.b16 %v1894, %v1893
        %v1957 = vpack.c.b16 %v1896, %v1895
        %v1958 = vpack.c.b16 %v1898, %v1897
        %v1959 = vpack.c.b16 %v1900, %v1899
        %v1960 = vpack.c.b16 %v1902, %v1901
        %v1961 = vpack.c.b16 %v1904, %v1903
        %v1962 = vpack.c.b16 %v1906, %v1905
        %v1963 = vpack.c.b16 %v1908, %v1907
        %v1964 = vpack.c.b16 %v1910, %v1909
        %v1965 = vpack.c.b16 %v1912, %v1911
        %v1966 = vpack.c.b16 %v1914, %v1913
        %v1967 = vpack.c.b16 %v1916, %v1915
        %v1968 = vpack.c.b16 %v1918, %v1917
        %v1969 = vpack.c.b16 %v1920, %v1919
        %v1970 = vpack.c.b16 %v1922, %v1921
        %v1971 = vpack.c.b16 %v1924, %v1923
        %v1972 = vpack.c.b16 %v1926, %v1925
        %v1973 = vpack.c.b16 %v1928, %v1927
        %v1974 = vpack.c.b16 %v1930, %v1929
        %v1975 = vpack.c.b16 %v1932, %v1931
        %v1976 = vpack.c.b16 %v1934, %v1933
        %v1977 = vpack.c.b16 %v1936, %v1935
        %v1978 = vpack.c.b16 %v1938, %v1937
        %v1979 = vpack.c.b16 %v1940, %v1939
        %v1980 = vpack.c.b16 %v1942, %v1941
        %v1981 = vpack.c.b16 %v1944, %v1943
        %v1982 = vpack.c.b16 %v1946, %v1945
        %v1983 = vpack.c.b16 %v1948, %v1947
        %v1984 = vpack.c.b16 %v1950, %v1949
        %v1985 = vpack.c.b16 %v1952, %v1951
        %v1986 = vpack.c.b16 %v1954, %v1953
        %2019 = vmatprep.subr.bf16.mxu0 0
        %2020 = vmatpush1.bf16.msra.mxu0 %v1962
        %2021 = vmatprep.subr.bf16.mxu0 0
        %2022 = vmatpush1.bf16.msra.mxu0 %v1961
        %2023 = vmatprep.subr.bf16.mxu0 0
        %2024 = vmatpush1.bf16.msra.mxu0 %v1960
        %2025 = vmatprep.subr.bf16.mxu0 0
        %2026 = vmatpush1.bf16.msra.mxu0 %v1959
        %2027 = vmatprep.subr.bf16.mxu0 0
        %2028 = vmatpush1.bf16.msra.mxu0 %v1958
        %2029 = vmatprep.subr.bf16.mxu0 0
        %2030 = vmatpush1.bf16.msra.mxu0 %v1957
        %2031 = vmatprep.subr.bf16.mxu0 0
        %2032 = vmatpush1.bf16.msra.mxu0 %v1956
        %2033 = vmatprep.subr.bf16.mxu0 0
        %2034 = vmatpush1.bf16.msra.mxu0 %v1955
        %2035 = vmatprep.subr.bf16.mxu0 0
        %2036 = vmatpush2.bf16.msra.mxu0 %v1970
        %2037 = vmatprep.subr.bf16.mxu0 0
        %2038 = vmatpush2.bf16.msra.mxu0 %v1969
        %2039 = vmatprep.subr.bf16.mxu0 0
        %2040 = vmatpush2.bf16.msra.mxu0 %v1968
        %2041 = vmatprep.subr.bf16.mxu0 0
        %2042 = vmatpush2.bf16.msra.mxu0 %v1967
        %2043 = vmatprep.subr.bf16.mxu0 0
        %2044 = vmatpush2.bf16.msra.mxu0 %v1966
        %2045 = vmatprep.subr.bf16.mxu0 0
        %2046 = vmatpush2.bf16.msra.mxu0 %v1965
        %2047 = vmatprep.subr.bf16.mxu0 0
        %2048 = vmatpush2.bf16.msra.mxu0 %v1964
        %2049 = vmatprep.subr.bf16.mxu0 0
        %2050 = vmatpush2.bf16.msra.mxu0 %v1963
        %2051 = vmatprep.mubr.bf16.mxu0 %v1753
        %2052 = vmatmul.mubr.bf16.gmra.mxu0 %v1752
        %v2053 = vpop.f32.mrf.mxu0
        %v2054 = vadd.f32 %v1825, %v2053
        %v2055 = vpop.f32.mrf.mxu0
        %v2056 = vpop.f32.mrf.mxu0
        %v2057 = vpop.f32.mrf.mxu0
        %2058 = vdwg.mxu0
        %2059 = vmatprep.subr.bf16.mxu0 0
        %2060 = vmatpush1.bf16.msra.mxu0 %v1978
        %2061 = vmatprep.subr.bf16.mxu0 0
        %2062 = vmatpush1.bf16.msra.mxu0 %v1977
        %2063 = vmatprep.subr.bf16.mxu0 0
        %2064 = vmatpush1.bf16.msra.mxu0 %v1976
        %2065 = vmatprep.subr.bf16.mxu0 0
        %2066 = vmatpush1.bf16.msra.mxu0 %v1975
        %2067 = vmatprep.subr.bf16.mxu0 0
        %2068 = vmatpush1.bf16.msra.mxu0 %v1974
        %2069 = vmatprep.subr.bf16.mxu0 0
        %2070 = vmatpush1.bf16.msra.mxu0 %v1973
        %2071 = vmatprep.subr.bf16.mxu0 0
        %2072 = vmatpush1.bf16.msra.mxu0 %v1972
        %2073 = vmatprep.subr.bf16.mxu0 0
        %2074 = vmatpush1.bf16.msra.mxu0 %v1971
        %2075 = vmatprep.subr.bf16.mxu0 0
        %2076 = vmatpush2.bf16.msra.mxu0 %v1986
        %2077 = vmatprep.subr.bf16.mxu0 0
        %2078 = vmatpush2.bf16.msra.mxu0 %v1985
        %2079 = vmatprep.subr.bf16.mxu0 0
        %2080 = vmatpush2.bf16.msra.mxu0 %v1984
        %2081 = vmatprep.subr.bf16.mxu0 0
        %2082 = vmatpush2.bf16.msra.mxu0 %v1983
        %2083 = vmatprep.subr.bf16.mxu0 0
        %2084 = vmatpush2.bf16.msra.mxu0 %v1982
        %2085 = vmatprep.subr.bf16.mxu0 0
        %2086 = vmatpush2.bf16.msra.mxu0 %v1981
        %2087 = vmatprep.subr.bf16.mxu0 0
        %2088 = vmatpush2.bf16.msra.mxu0 %v1980
        %2089 = vmatprep.subr.bf16.mxu0 0
        %2090 = vmatpush2.bf16.msra.mxu0 %v1979
        %2091 = vmatprep.mubr.bf16.mxu0 %v1755
        %2092 = vmatmul.mubr.bf16.gmra.mxu0 %v1754
        %v2093 = vpop.f32.mrf.mxu0
        %v2094 = vadd.f32 %v2054, %v2093
        %v2095 = vpop.f32.mrf.mxu0
        %v2096 = vpop.f32.mrf.mxu0
        %v2097 = vpop.f32.mrf.mxu0
        %2098 = vdwg.mxu0
        %v2099 = vadd.f32 %v2094, %v1418
        %v2100 = vld [vmem:[#allocation13] sm:$0x1]
        %v2101 = vld [vmem:[#allocation15] sm:$0x1]
        %2102 = vadd.xlane.f32.xlu0 %v2099
        %v2103 = vpop.xlane.xlu0 %2102
        %v2104 = vmul.f32 %v2103, %v1395
        %v2105 = vsub.f32 %v2099, %v2104
        %v2106 = vmul.f32 %v2105, %v2105
        %2107 = vadd.xlane.f32.xlu0 %v2106
        %v2108 = vpop.xlane.xlu0 %2107
        %v2109 = vmul.f32 %v2108, %v1395
        %v2110 = vadd.f32 %v2109, 1e-12
        %v2111 = vrsqrt.pop %v2110
        %v2112 = vmul.f32 %v2105, %v2111
        %v2114 = vlaneseq
        %v2115 = vshrl.u32 %v2114, 7
        %v2116 = vsub.s32 0, %v2115
        %v2117 = vrot.slane %v2100, %v2116
        %v2119 = vmul.f32 %v2112, %v2117
        %v2121 = vlaneseq
        %v2122 = vshrl.u32 %v2121, 7
        %v2123 = vsub.s32 0, %v2122
        %v2124 = vrot.slane %v2101, %v2123
        %v2126 = vadd.f32 %v2119, %v2124
        %2127 = vst [vmem:[%s552] sm:$0xff] %v2126
        %p2128 = scmp.lt.s32.totalorder %s29, 1
        %s2129 = scalar_select %p2128, %s29, 1
        %s2130 = smul.addr %s2129, 8
        %s2131 = scalar_lea.vmem %s13, %s2130
        // Predicated region
        $region109: #{forward.5} parent=71 // pred_check
          %p2132 = pneg %p325
        $region110: #{forward.5} parent=71 // pred_check_branch
          %2134 = sbr.rel (%p2132) target = $region112
        $region111: #{forward.5} parent=71 // pred_region
          _
        $region112: #{forward.5} parent=71 // pred_fallthru
          _
      $region72: #{forward.5} parent=5 // pred_fallthru
        _
      %p2135 = scmp.le.s32.totalorder 2, %s24
      // Predicated region
      $region113: #{forward.5} parent=5 // pred_check
        %p2136 = pneg %p2135
      $region114: #{forward.5} parent=5 // pred_check_branch
        %2138 = sbr.rel (%p2136) target = $region116
      $region115: #{forward.5} parent=5 // pred_region
        %s2139 = ssub.s32 %s24, 2
        // Predicated region
        $region117: #{forward.5} parent=115 // pred_check
          %p2140 = pneg %p331
        $region118: #{forward.5} parent=115 // pred_check_branch
          %2142 = sbr.rel (%p2140) target = $region120
        $region119: #{forward.5} parent=115 // pred_region
          %p2143 = scmp.lt.s32.totalorder %s30, 1
          %s2144 = scalar_select %p2143, %s30, 1
          %s2145 = smul.addr %s2144, 8
          %s2146 = scalar_lea.vmem %s13, %s2145
        $region120: #{forward.5} parent=115 // pred_fallthru
          _
      $region116: #{forward.5} parent=5 // pred_fallthru
        _
    $region6: #{forward.5} parent=1 // loop_footer
      %s28 = sadd.s32 1, %s24
    $region7: #{forward.5} parent=1 // loop_footer_branch
      %23 = sbr.rel target = $region3
    $region8: #{forward.5} parent=1 // loop_exit
      _
    %2147 = vsyncpa [#allocation3], 1
    %s2148 = scalar_lea.sflag [#allocation3], 1
    %2149 = vsyncpa %s2148, 1
    %2150 = vsyncpa [#allocation5], 1
    %2151 = vsyncpa [#allocation8], 1
    %2152 = vsyncpa [#allocation11], 1
    %2153 = vsyncpa [#allocation14], 1

// kernel: forward.6
$region0: #{forward.6}
  #allocation0 [shape = 'u32[]', space=smem, size = 0x4, offset = 0x4, fixed_abs, tag = 'smem constant byte address 0x4 - core index']
  #allocation1 [shape = 'u32[144,128]{1,0:T(1,128)}', space=vmem, size = 0x12000, scoped, tag = 'internal scratch']
  %s0 = inlined_call_operand.vmem [shape: f32[16,128], index: 0, kind: input, shape index: {}]
  %s1 = inlined_call_operand.vmem [shape: bf16[128,384], index: 1, kind: input, shape index: {}]
  %s2 = inlined_call_operand.vmem [shape: f32[1,384], index: 2, kind: input, shape index: {}]
  %s3 = inlined_call_operand.vmem [shape: bf16[128,128], index: 3, kind: input, shape index: {}]
  %s4 = inlined_call_operand.vmem [shape: f32[1,128], index: 4, kind: input, shape index: {}]
  %s5 = inlined_call_operand.vmem [shape: f32[1,128], index: 5, kind: input, shape index: {}]
  %s6 = inlined_call_operand.vmem [shape: f32[1,128], index: 6, kind: input, shape index: {}]
  %s7 = inlined_call_operand.vmem [shape: bf16[128,512], index: 7, kind: input, shape index: {}]
  %s8 = inlined_call_operand.vmem [shape: f32[1,512], index: 8, kind: input, shape index: {}]
  %s9 = inlined_call_operand.vmem [shape: bf16[512,128], index: 9, kind: input, shape index: {}]
  %s10 = inlined_call_operand.vmem [shape: f32[1,128], index: 10, kind: input, shape index: {}]
  %s11 = inlined_call_operand.vmem [shape: f32[1,128], index: 11, kind: input, shape index: {}]
  %s12 = inlined_call_operand.vmem [shape: f32[1,128], index: 12, kind: input, shape index: {}]
  %s13 = inlined_call_operand.vmem [shape: f32[16,128], index: 13, kind: output, shape index: {}]
  %s14 = sld [smem:[#allocation0]]
  $region85: #{forward.6} parent=0
    _
  %s16 = ssub.s32 1, %s14
  %s17 = scalar_select 0, %s16, %s14
  loop: start=0, step=1, limit=4
  $region2: #{forward.6} parent=0 // loop_pre_header
    _
  $region3: #{forward.6} parent=0 // loop_header
    %s19 = sphi 0, %s23
    %p20 = scmp.ge.s32.totalorder %s19, 4
    %s29 = sphi 0, %s31
    %s32 = sphi 0, %s29
    %s33 = sphi 0, %s32
    %s49 = sphi 0, %s33
    %s53 = sphi 0, %s53
    %s55 = sphi 0, %s53
    %s56 = sphi 0, %s55
    %s70 = sphi 0, %s56
    %s74 = sphi 0, %s74
    %s76 = sphi 0, %s74
    %s77 = sphi 0, %s76
    %s91 = sphi 0, %s77
    %s95 = sphi 0, %s95
    %s97 = sphi 0, %s95
    %s98 = sphi 0, %s97
    %s112 = sphi 0, %s98
    %s116 = sphi 0, %s116
    %s118 = sphi 0, %s116
    %s119 = sphi 0, %s118
    %s133 = sphi 0, %s119
    %s137 = sphi 0, %s137
    %s139 = sphi 0, %s137
    %s140 = sphi 0, %s139
    %s154 = sphi 0, %s140
    %s158 = sphi 0, %s158
    %s160 = sphi 0, %s158
    %s161 = sphi 0, %s160
    %s175 = sphi 0, %s161
    %s179 = sphi 0, %s179
    %s181 = sphi 0, %s179
    %s182 = sphi 0, %s181
    %s196 = sphi 0, %s182
    %s200 = sphi 0, %s200
    %s202 = sphi 0, %s200
    %s203 = sphi 0, %s202
    %s217 = sphi 0, %s203
    %s221 = sphi 0, %s221
    %s223 = sphi 0, %s221
    %s224 = sphi 0, %s223
    %s238 = sphi 0, %s224
    %s242 = sphi 0, %s242
    %s244 = sphi 0, %s242
    %s245 = sphi 0, %s244
    %s259 = sphi 0, %s245
    %s263 = sphi 0, %s263
    %s265 = sphi 0, %s263
    %s266 = sphi 0, %s265
    %s280 = sphi 0, %s266
    %s284 = sphi 0, %s284
    %s286 = sphi 0, %s284
    %s287 = sphi 0, %s286
    %s301 = sphi 0, %s287
    %s307 = sphi 0, %s309
    %s310 = sphi 0, %s307
    %s311 = sphi 0, %s310
    %s327 = sphi 0, %s311
  $region4: #{forward.6} parent=0 // loop_header_branch
    %22 = sbr.rel (%p20) target = $region8
  $region5: #{forward.6} parent=0 // loop_body
    %s24 = ssub.s32 %s19, 1
    %s25 = ssub.s32 %s19, 2
    %s26 = sadd.s32 %s19, 1
    %s27 = ssub.s32 %s19, %s26
    %p28 = scmp.eq.s32.totalorder %s27, 0
    %s30 = sadd.s32 %s29, 1
    %s31 = scalar_select %p28, %s29, %s30
    %p34 = pneg %p28
    %p35 = scmp.eq.s32.totalorder %s19, 1
    %p36 = por %p34, %p35
    %p37 = scmp.ne.s32.totalorder %s29, %s32
    %p38 = scmp.eq.s32.totalorder %s19, 0
    %p39 = por %p37, %p38
    %p40 = scmp.ne.s32.totalorder %s29, %s32
    %p41 = scmp.eq.s32.totalorder %s24, 1
    %p42 = por %p40, %p41
    %p43 = scmp.ne.s32.totalorder %s32, %s33
    %p44 = scmp.eq.s32.totalorder %s24, 0
    %p45 = por %p43, %p44
    %p46 = scmp.ne.s32.totalorder %s32, %s33
    %p47 = scmp.eq.s32.totalorder %s25, 1
    %p48 = por %p46, %p47
    %p50 = scmp.ne.s32.totalorder %s33, %s49
    %p51 = scmp.eq.s32.totalorder %s25, 0
    %p52 = por %p50, %p51
    %s54 = sadd.s32 %s53, 1
    %p57 = scmp.eq.s32.totalorder %s19, 1
    %p58 = scmp.ne.s32.totalorder %s53, %s55
    %p59 = scmp.eq.s32.totalorder %s19, 0
    %p60 = por %p58, %p59
    %p61 = scmp.ne.s32.totalorder %s53, %s55
    %p62 = scmp.eq.s32.totalorder %s24, 1
    %p63 = por %p61, %p62
    %p64 = scmp.ne.s32.totalorder %s55, %s56
    %p65 = scmp.eq.s32.totalorder %s24, 0
    %p66 = por %p64, %p65
    %p67 = scmp.ne.s32.totalorder %s55, %s56
    %p68 = scmp.eq.s32.totalorder %s25, 1
    %p69 = por %p67, %p68
    %p71 = scmp.ne.s32.totalorder %s56, %s70
    %p72 = scmp.eq.s32.totalorder %s25, 0
    %p73 = por %p71, %p72
    %s75 = sadd.s32 %s74, 1
    %p78 = scmp.eq.s32.totalorder %s19, 1
    %p79 = scmp.ne.s32.totalorder %s74, %s76
    %p80 = scmp.eq.s32.totalorder %s19, 0
    %p81 = por %p79, %p80
    %p82 = scmp.ne.s32.totalorder %s74, %s76
    %p83 = scmp.eq.s32.totalorder %s24, 1
    %p84 = por %p82, %p83
    %p85 = scmp.ne.s32.totalorder %s76, %s77
    %p86 = scmp.eq.s32.totalorder %s24, 0
    %p87 = por %p85, %p86
    %p88 = scmp.ne.s32.totalorder %s76, %s77
    %p89 = scmp.eq.s32.totalorder %s25, 1
    %p90 = por %p88, %p89
    %p92 = scmp.ne.s32.totalorder %s77, %s91
    %p93 = scmp.eq.s32.totalorder %s25, 0
    %p94 = por %p92, %p93
    %s96 = sadd.s32 %s95, 1
    %p99 = scmp.eq.s32.totalorder %s19, 1
    %p100 = scmp.ne.s32.totalorder %s95, %s97
    %p101 = scmp.eq.s32.totalorder %s19, 0
    %p102 = por %p100, %p101
    %p103 = scmp.ne.s32.totalorder %s95, %s97
    %p104 = scmp.eq.s32.totalorder %s24, 1
    %p105 = por %p103, %p104
    %p106 = scmp.ne.s32.totalorder %s97, %s98
    %p107 = scmp.eq.s32.totalorder %s24, 0
    %p108 = por %p106, %p107
    %p109 = scmp.ne.s32.totalorder %s97, %s98
    %p110 = scmp.eq.s32.totalorder %s25, 1
    %p111 = por %p109, %p110
    %p113 = scmp.ne.s32.totalorder %s98, %s112
    %p114 = scmp.eq.s32.totalorder %s25, 0
    %p115 = por %p113, %p114
    %s117 = sadd.s32 %s116, 1
    %p120 = scmp.eq.s32.totalorder %s19, 1
    %p121 = scmp.ne.s32.totalorder %s116, %s118
    %p122 = scmp.eq.s32.totalorder %s19, 0
    %p123 = por %p121, %p122
    %p124 = scmp.ne.s32.totalorder %s116, %s118
    %p125 = scmp.eq.s32.totalorder %s24, 1
    %p126 = por %p124, %p125
    %p127 = scmp.ne.s32.totalorder %s118, %s119
    %p128 = scmp.eq.s32.totalorder %s24, 0
    %p129 = por %p127, %p128
    %p130 = scmp.ne.s32.totalorder %s118, %s119
    %p131 = scmp.eq.s32.totalorder %s25, 1
    %p132 = por %p130, %p131
    %p134 = scmp.ne.s32.totalorder %s119, %s133
    %p135 = scmp.eq.s32.totalorder %s25, 0
    %p136 = por %p134, %p135
    %s138 = sadd.s32 %s137, 1
    %p141 = scmp.eq.s32.totalorder %s19, 1
    %p142 = scmp.ne.s32.totalorder %s137, %s139
    %p143 = scmp.eq.s32.totalorder %s19, 0
    %p144 = por %p142, %p143
    %p145 = scmp.ne.s32.totalorder %s137, %s139
    %p146 = scmp.eq.s32.totalorder %s24, 1
    %p147 = por %p145, %p146
    %p148 = scmp.ne.s32.totalorder %s139, %s140
    %p149 = scmp.eq.s32.totalorder %s24, 0
    %p150 = por %p148, %p149
    %p151 = scmp.ne.s32.totalorder %s139, %s140
    %p152 = scmp.eq.s32.totalorder %s25, 1
    %p153 = por %p151, %p152
    %p155 = scmp.ne.s32.totalorder %s140, %s154
    %p156 = scmp.eq.s32.totalorder %s25, 0
    %p157 = por %p155, %p156
    %s159 = sadd.s32 %s158, 1
    %p162 = scmp.eq.s32.totalorder %s19, 1
    %p163 = scmp.ne.s32.totalorder %s158, %s160
    %p164 = scmp.eq.s32.totalorder %s19, 0
    %p165 = por %p163, %p164
    %p166 = scmp.ne.s32.totalorder %s158, %s160
    %p167 = scmp.eq.s32.totalorder %s24, 1
    %p168 = por %p166, %p167
    %p169 = scmp.ne.s32.totalorder %s160, %s161
    %p170 = scmp.eq.s32.totalorder %s24, 0
    %p171 = por %p169, %p170
    %p172 = scmp.ne.s32.totalorder %s160, %s161
    %p173 = scmp.eq.s32.totalorder %s25, 1
    %p174 = por %p172, %p173
    %p176 = scmp.ne.s32.totalorder %s161, %s175
    %p177 = scmp.eq.s32.totalorder %s25, 0
    %p178 = por %p176, %p177
    %s180 = sadd.s32 %s179, 1
    %p183 = scmp.eq.s32.totalorder %s19, 1
    %p184 = scmp.ne.s32.totalorder %s179, %s181
    %p185 = scmp.eq.s32.totalorder %s19, 0
    %p186 = por %p184, %p185
    %p187 = scmp.ne.s32.totalorder %s179, %s181
    %p188 = scmp.eq.s32.totalorder %s24, 1
    %p189 = por %p187, %p188
    %p190 = scmp.ne.s32.totalorder %s181, %s182
    %p191 = scmp.eq.s32.totalorder %s24, 0
    %p192 = por %p190, %p191
    %p193 = scmp.ne.s32.totalorder %s181, %s182
    %p194 = scmp.eq.s32.totalorder %s25, 1
    %p195 = por %p193, %p194
    %p197 = scmp.ne.s32.totalorder %s182, %s196
    %p198 = scmp.eq.s32.totalorder %s25, 0
    %p199 = por %p197, %p198
    %s201 = sadd.s32 %s200, 1
    %p204 = scmp.eq.s32.totalorder %s19, 1
    %p205 = scmp.ne.s32.totalorder %s200, %s202
    %p206 = scmp.eq.s32.totalorder %s19, 0
    %p207 = por %p205, %p206
    %p208 = scmp.ne.s32.totalorder %s200, %s202
    %p209 = scmp.eq.s32.totalorder %s24, 1
    %p210 = por %p208, %p209
    %p211 = scmp.ne.s32.totalorder %s202, %s203
    %p212 = scmp.eq.s32.totalorder %s24, 0
    %p213 = por %p211, %p212
    %p214 = scmp.ne.s32.totalorder %s202, %s203
    %p215 = scmp.eq.s32.totalorder %s25, 1
    %p216 = por %p214, %p215
    %p218 = scmp.ne.s32.totalorder %s203, %s217
    %p219 = scmp.eq.s32.totalorder %s25, 0
    %p220 = por %p218, %p219
    %s222 = sadd.s32 %s221, 1
    %p225 = scmp.eq.s32.totalorder %s19, 1
    %p226 = scmp.ne.s32.totalorder %s221, %s223
    %p227 = scmp.eq.s32.totalorder %s19, 0
    %p228 = por %p226, %p227
    %p229 = scmp.ne.s32.totalorder %s221, %s223
    %p230 = scmp.eq.s32.totalorder %s24, 1
    %p231 = por %p229, %p230
    %p232 = scmp.ne.s32.totalorder %s223, %s224
    %p233 = scmp.eq.s32.totalorder %s24, 0
    %p234 = por %p232, %p233
    %p235 = scmp.ne.s32.totalorder %s223, %s224
    %p236 = scmp.eq.s32.totalorder %s25, 1
    %p237 = por %p235, %p236
    %p239 = scmp.ne.s32.totalorder %s224, %s238
    %p240 = scmp.eq.s32.totalorder %s25, 0
    %p241 = por %p239, %p240
    %s243 = sadd.s32 %s242, 1
    %p246 = scmp.eq.s32.totalorder %s19, 1
    %p247 = scmp.ne.s32.totalorder %s242, %s244
    %p248 = scmp.eq.s32.totalorder %s19, 0
    %p249 = por %p247, %p248
    %p250 = scmp.ne.s32.totalorder %s242, %s244
    %p251 = scmp.eq.s32.totalorder %s24, 1
    %p252 = por %p250, %p251
    %p253 = scmp.ne.s32.totalorder %s244, %s245
    %p254 = scmp.eq.s32.totalorder %s24, 0
    %p255 = por %p253, %p254
    %p256 = scmp.ne.s32.totalorder %s244, %s245
    %p257 = scmp.eq.s32.totalorder %s25, 1
    %p258 = por %p256, %p257
    %p260 = scmp.ne.s32.totalorder %s245, %s259
    %p261 = scmp.eq.s32.totalorder %s25, 0
    %p262 = por %p260, %p261
    %s264 = sadd.s32 %s263, 1
    %p267 = scmp.eq.s32.totalorder %s19, 1
    %p268 = scmp.ne.s32.totalorder %s263, %s265
    %p269 = scmp.eq.s32.totalorder %s19, 0
    %p270 = por %p268, %p269
    %p271 = scmp.ne.s32.totalorder %s263, %s265
    %p272 = scmp.eq.s32.totalorder %s24, 1
    %p273 = por %p271, %p272
    %p274 = scmp.ne.s32.totalorder %s265, %s266
    %p275 = scmp.eq.s32.totalorder %s24, 0
    %p276 = por %p274, %p275
    %p277 = scmp.ne.s32.totalorder %s265, %s266
    %p278 = scmp.eq.s32.totalorder %s25, 1
    %p279 = por %p277, %p278
    %p281 = scmp.ne.s32.totalorder %s266, %s280
    %p282 = scmp.eq.s32.totalorder %s25, 0
    %p283 = por %p281, %p282
    %s285 = sadd.s32 %s284, 1
    %p288 = scmp.eq.s32.totalorder %s19, 1
    %p289 = scmp.ne.s32.totalorder %s284, %s286
    %p290 = scmp.eq.s32.totalorder %s19, 0
    %p291 = por %p289, %p290
    %p292 = scmp.ne.s32.totalorder %s284, %s286
    %p293 = scmp.eq.s32.totalorder %s24, 1
    %p294 = por %p292, %p293
    %p295 = scmp.ne.s32.totalorder %s286, %s287
    %p296 = scmp.eq.s32.totalorder %s24, 0
    %p297 = por %p295, %p296
    %p298 = scmp.ne.s32.totalorder %s286, %s287
    %p299 = scmp.eq.s32.totalorder %s25, 1
    %p300 = por %p298, %p299
    %p302 = scmp.ne.s32.totalorder %s287, %s301
    %p303 = scmp.eq.s32.totalorder %s25, 0
    %p304 = por %p302, %p303
    %s305 = ssub.s32 %s19, %s26
    %p306 = scmp.eq.s32.totalorder %s305, 0
    %s308 = sadd.s32 %s307, 1
    %s309 = scalar_select %p306, %s307, %s308
    %p312 = pneg %p306
    %p313 = scmp.eq.s32.totalorder %s19, 1
    %p314 = por %p312, %p313
    %p315 = scmp.ne.s32.totalorder %s307, %s310
    %p316 = scmp.eq.s32.totalorder %s19, 0
    %p317 = por %p315, %p316
    %p318 = scmp.ne.s32.totalorder %s307, %s310
    %p319 = scmp.eq.s32.totalorder %s24, 1
    %p320 = por %p318, %p319
    %p321 = scmp.ne.s32.totalorder %s310, %s311
    %p322 = scmp.eq.s32.totalorder %s24, 0
    %p323 = por %p321, %p322
    %p324 = scmp.ne.s32.totalorder %s310, %s311
    %p325 = scmp.eq.s32.totalorder %s25, 1
    %p326 = por %p324, %p325
    %p328 = scmp.ne.s32.totalorder %s311, %s327
    %p329 = scmp.eq.s32.totalorder %s25, 0
    %p330 = por %p328, %p329
    %p331 = scmp.le.s32.totalorder 1, %s19
    %p332 = scmp.lt.s32.totalorder %s19, 3
    %p333 = pnand %p331, %p332
    %p334 = pneg %p333
    // Predicated region
    $region9: #{forward.6} parent=5 // pred_check
      _
    $region10: #{forward.6} parent=5 // pred_check_branch
      %336 = sbr.rel (%p333) target = $region12
    $region11: #{forward.6} parent=5 // pred_region
      %s337 = ssub.s32 %s19, 1
      // Predicated region
      $region13: #{forward.6} parent=11 // pred_check
        %p338 = pneg %p66
      $region14: #{forward.6} parent=11 // pred_check_branch
        %340 = sbr.rel (%p338) target = $region16
      $region15: #{forward.6} parent=11 // pred_region
        _
      $region16: #{forward.6} parent=11 // pred_fallthru
        _
      // Predicated region
      $region17: #{forward.6} parent=11 // pred_check
        %p341 = pneg %p87
      $region18: #{forward.6} parent=11 // pred_check_branch
        %343 = sbr.rel (%p341) target = $region20
      $region19: #{forward.6} parent=11 // pred_region
        _
      $region20: #{forward.6} parent=11 // pred_fallthru
        _
      // Predicated region
      $region21: #{forward.6} parent=11 // pred_check
        %p344 = pneg %p108
      $region22: #{forward.6} parent=11 // pred_check_branch
        %346 = sbr.rel (%p344) target = $region24
      $region23: #{forward.6} parent=11 // pred_region
        _
      $region24: #{forward.6} parent=11 // pred_fallthru
        _
      // Predicated region
      $region25: #{forward.6} parent=11 // pred_check
        %p347 = pneg %p129
      $region26: #{forward.6} parent=11 // pred_check_branch
        %349 = sbr.rel (%p347) target = $region28
      $region27: #{forward.6} parent=11 // pred_region
        _
      $region28: #{forward.6} parent=11 // pred_fallthru
        _
      // Predicated region
      $region29: #{forward.6} parent=11 // pred_check
        %p350 = pneg %p150
      $region30: #{forward.6} parent=11 // pred_check_branch
        %352 = sbr.rel (%p350) target = $region32
      $region31: #{forward.6} parent=11 // pred_region
        _
      $region32: #{forward.6} parent=11 // pred_fallthru
        _
      // Predicated region
      $region33: #{forward.6} parent=11 // pred_check
        %p353 = pneg %p171
      $region34: #{forward.6} parent=11 // pred_check_branch
        %355 = sbr.rel (%p353) target = $region36
      $region35: #{forward.6} parent=11 // pred_region
        _
      $region36: #{forward.6} parent=11 // pred_fallthru
        _
      // Predicated region
      $region37: #{forward.6} parent=11 // pred_check
        %p356 = pneg %p192
      $region38: #{forward.6} parent=11 // pred_check_branch
        %358 = sbr.rel (%p356) target = $region40
      $region39: #{forward.6} parent=11 // pred_region
        _
      $region40: #{forward.6} parent=11 // pred_fallthru
        _
      // Predicated region
      $region41: #{forward.6} parent=11 // pred_check
        %p359 = pneg %p213
      $region42: #{forward.6} parent=11 // pred_check_branch
        %361 = sbr.rel (%p359) target = $region44
      $region43: #{forward.6} parent=11 // pred_region
        _
      $region44: #{forward.6} parent=11 // pred_fallthru
        _
      // Predicated region
      $region45: #{forward.6} parent=11 // pred_check
        %p362 = pneg %p234
      $region46: #{forward.6} parent=11 // pred_check_branch
        %364 = sbr.rel (%p362) target = $region48
      $region47: #{forward.6} parent=11 // pred_region
        _
      $region48: #{forward.6} parent=11 // pred_fallthru
        _
      // Predicated region
      $region49: #{forward.6} parent=11 // pred_check
        %p365 = pneg %p255
      $region50: #{forward.6} parent=11 // pred_check_branch
        %367 = sbr.rel (%p365) target = $region52
      $region51: #{forward.6} parent=11 // pred_region
        _
      $region52: #{forward.6} parent=11 // pred_fallthru
        _
      // Predicated region
      $region53: #{forward.6} parent=11 // pred_check
        %p368 = pneg %p276
      $region54: #{forward.6} parent=11 // pred_check_branch
        %370 = sbr.rel (%p368) target = $region56
      $region55: #{forward.6} parent=11 // pred_region
        _
      $region56: #{forward.6} parent=11 // pred_fallthru
        _
      // Predicated region
      $region57: #{forward.6} parent=11 // pred_check
        %p371 = pneg %p297
      $region58: #{forward.6} parent=11 // pred_check_branch
        %373 = sbr.rel (%p371) target = $region60
      $region59: #{forward.6} parent=11 // pred_region
        _
      $region60: #{forward.6} parent=11 // pred_fallthru
        _
    $region12: #{forward.6} parent=5 // pred_fallthru
      _
    %p374 = scmp.lt.s32.totalorder %s19, 2
    // Predicated region
    $region61: #{forward.6} parent=5 // pred_check
      %p375 = pneg %p374
    $region62: #{forward.6} parent=5 // pred_check_branch
      %377 = sbr.rel (%p375) target = $region64
    $region63: #{forward.6} parent=5 // pred_region
      // Predicated region
      $region65: #{forward.6} parent=63 // pred_check
        %p378 = pneg %p39
      $region66: #{forward.6} parent=63 // pred_check_branch
        %380 = sbr.rel (%p378) target = $region68
      $region67: #{forward.6} parent=63 // pred_region
        %p381 = scmp.lt.s32.totalorder %s19, 1
        %s382 = scalar_select %p381, %s19, 1
        %s383 = smul.addr %s382, 8
        %s384 = scalar_lea.vmem %s0, %s383
      $region68: #{forward.6} parent=63 // pred_fallthru
        _
    $region64: #{forward.6} parent=5 // pred_fallthru
      _
    %p385 = scmp.le.s32.totalorder 1, %s19
    %p386 = scmp.lt.s32.totalorder %s19, 3
    %p387 = pnand %p385, %p386
    %p388 = pneg %p387
    // Predicated region
    $region69: #{forward.6} parent=5 // pred_check
      _
    $region70: #{forward.6} parent=5 // pred_check_branch
      %390 = sbr.rel (%p387) target = $region72
    $region71: #{forward.6} parent=5 // pred_region
      %s391 = ssub.s32 %s19, 1
      %p392 = scmp.lt.s32.totalorder %s24, 1
      %s393 = scalar_select %p392, %s24, 1
      %s394 = smul.addr %s393, 8
      %s395 = scalar_lea.vmem %s0, %s394
      %p396 = pneg %p45
      %p397 = pneg %p42
      %p398 = pneg %p66
      %p399 = pneg %p63
      %p400 = pneg %p87
      %p401 = pneg %p84
      %p402 = pneg %p108
      %p403 = pneg %p105
      %p404 = pneg %p129
      %p405 = pneg %p126
      %p406 = pneg %p150
      %p407 = pneg %p147
      %p408 = pneg %p171
      %p409 = pneg %p168
      %p410 = pneg %p192
      %p411 = pneg %p189
      %p412 = pneg %p213
      %p413 = pneg %p210
      %p414 = pneg %p234
      %p415 = pneg %p231
      %p416 = pneg %p255
      %p417 = pneg %p252
      %p418 = pneg %p276
      %p419 = pneg %p273
      %p420 = pneg %p297
      %p421 = pneg %p294
      %p422 = pneg %p323
      %p423 = pneg %p320
      %p424 = scmp.lt.s32.totalorder %s24, 1
      %s425 = scalar_select %p424, %s24, 1
      %s426 = smul.addr %s425, 8
      %s427 = scalar_lea.vmem %s13, %s426
      %p428 = scmp.lt.s32.totalorder %s24, 1
      %s429 = scalar_select %p428, %s24, 1
      %s430 = smul.addr %s429, 8
      %s431 = scalar_lea.vmem %s0, %s430
      %p432 = scmp.lt.s32.totalorder %s24, 1
      %s433 = scalar_select %p432, %s24, 1
      %s434 = smul.addr %s433, 8
      %s435 = scalar_lea.vmem %s13, %s434
      %v437 = vld [vmem:[%s431] sm:$0xff]
      %v438 = vpack.c.bf16 %v437, %v437
      %v439 = vld [vmem:[%s1] sm:$0xff]
      %v440 = vld [vmem:[%s1 + $0x8] sm:$0xf]
      %v441 = vld [vmem:[%s1 + $0xc] sm:$0xff]
      %v442 = vld [vmem:[%s1 + $0x14] sm:$0xf]
      %v443 = vld [vmem:[%s1 + $0x18] sm:$0xff]
      %v444 = vld [vmem:[%s1 + $0x20] sm:$0xf]
      %v445 = vld [vmem:[%s1 + $0x24] sm:$0xff]
      %v446 = vld [vmem:[%s1 + $0x2c] sm:$0xf]
      %v447 = vld [vmem:[%s1 + $0x30] sm:$0xff]
      %v448 = vld [vmem:[%s1 + $0x38] sm:$0xf]
      %v449 = vld [vmem:[%s1 + $0x3c] sm:$0xff]
      %v450 = vld [vmem:[%s1 + $0x44] sm:$0xf]
      %v451 = vld [vmem:[%s1 + $0x48] sm:$0xff]
      %v452 = vld [vmem:[%s1 + $0x50] sm:$0xf]
      %v453 = vld [vmem:[%s1 + $0x54] sm:$0xff]
      %v454 = vld [vmem:[%s1 + $0x5c] sm:$0xf]
      %v455 = vld [vmem:[%s1 + $0x60] sm:$0xff]
      %v456 = vld [vmem:[%s1 + $0x68] sm:$0xf]
      %v457 = vld [vmem:[%s1 + $0x6c] sm:$0xff]
      %v458 = vld [vmem:[%s1 + $0x74] sm:$0xf]
      %v459 = vld [vmem:[%s1 + $0x78] sm:$0xff]
      %v460 = vld [vmem:[%s1 + $0x80] sm:$0xf]
      %v461 = vld [vmem:[%s1 + $0x84] sm:$0xff]
      %v462 = vld [vmem:[%s1 + $0x8c] sm:$0xf]
      %v463 = vld [vmem:[%s1 + $0x90] sm:$0xff]
      %v464 = vld [vmem:[%s1 + $0x98] sm:$0xf]
      %v465 = vld [vmem:[%s1 + $0x9c] sm:$0xff]
      %v466 = vld [vmem:[%s1 + $0xa4] sm:$0xf]
      %v467 = vld [vmem:[%s1 + $0xa8] sm:$0xff]
      %v468 = vld [vmem:[%s1 + $0xb0] sm:$0xf]
      %v469 = vld [vmem:[%s1 + $0xb4] sm:$0xff]
      %v470 = vld [vmem:[%s1 + $0xbc] sm:$0xf]
      %v471 = vld [vmem:[%s2] sm:$0x7]
      %v473 = vlaneseq
      %v474 = vshrl.u32 %v473, 7
      %v475 = vsub.s32 0, %v474
      %v476 = vrot.slane %v471, %v475
      %v477 = vlaneseq
      %v478 = vshrl.u32 %v477, 7
      %v479 = vsub.s32 1, %v478
      %v480 = vrot.slane %v471, %v479
      %v481 = vlaneseq
      %v482 = vshrl.u32 %v481, 7
      %v483 = vsub.s32 2, %v482
      %v484 = vrot.slane %v471, %v483
      %v520 = vunpack.c.l.b16 %v439
      %v521 = vunpack.c.h.b16 %v439
      %v522 = vunpack.c.l.b16 %v440
      %v523 = vunpack.c.l.b16 %v441
      %v524 = vunpack.c.h.b16 %v441
      %v525 = vunpack.c.l.b16 %v442
      %v526 = vunpack.c.l.b16 %v443
      %v527 = vunpack.c.h.b16 %v443
      %v528 = vunpack.c.l.b16 %v444
      %v529 = vunpack.c.l.b16 %v445
      %v530 = vunpack.c.h.b16 %v445
      %v531 = vunpack.c.l.b16 %v446
      %v532 = vunpack.c.l.b16 %v447
      %v533 = vunpack.c.h.b16 %v447
      %v534 = vunpack.c.l.b16 %v448
      %v535 = vunpack.c.l.b16 %v449
      %v536 = vunpack.c.h.b16 %v449
      %v537 = vunpack.c.l.b16 %v450
      %v538 = vunpack.c.l.b16 %v451
      %v539 = vunpack.c.h.b16 %v451
      %v540 = vunpack.c.l.b16 %v452
      %v541 = vunpack.c.l.b16 %v453
      %v542 = vunpack.c.h.b16 %v453
      %v543 = vunpack.c.l.b16 %v454
      %v544 = vunpack.c.l.b16 %v455
      %v545 = vunpack.c.h.b16 %v455
      %v546 = vunpack.c.l.b16 %v456
      %v547 = vunpack.c.l.b16 %v457
      %v548 = vunpack.c.h.b16 %v457
      %v549 = vunpack.c.l.b16 %v458
      %v550 = vunpack.c.l.b16 %v459
      %v551 = vunpack.c.h.b16 %v459
      %v552 = vunpack.c.l.b16 %v460
      %v553 = vunpack.c.l.b16 %v461
      %v554 = vunpack.c.h.b16 %v461
      %v555 = vunpack.c.l.b16 %v462
      %v556 = vunpack.c.l.b16 %v463
      %v557 = vunpack.c.h.b16 %v463
      %v558 = vunpack.c.l.b16 %v464
      %v559 = vunpack.c.l.b16 %v465
      %v560 = vunpack.c.h.b16 %v465
      %v561 = vunpack.c.l.b16 %v466
      %v562 = vunpack.c.l.b16 %v467
      %v563 = vunpack.c.h.b16 %v467
      %v564 = vunpack.c.l.b16 %v468
      %v565 = vunpack.c.l.b16 %v469
      %v566 = vunpack.c.h.b16 %v469
      %v567 = vunpack.c.l.b16 %v470
      %v568 = vpack.c.b16 %v523, %v520
      %v569 = vpack.c.b16 %v524, %v521
      %v570 = vpack.c.b16 %v525, %v522
      %v571 = vpack.c.b16 %v529, %v526
      %v572 = vpack.c.b16 %v530, %v527
      %v573 = vpack.c.b16 %v531, %v528
      %v574 = vpack.c.b16 %v535, %v532
      %v575 = vpack.c.b16 %v536, %v533
      %v576 = vpack.c.b16 %v537, %v534
      %v577 = vpack.c.b16 %v541, %v538
      %v578 = vpack.c.b16 %v542, %v539
      %v579 = vpack.c.b16 %v543, %v540
      %v580 = vpack.c.b16 %v547, %v544
      %v581 = vpack.c.b16 %v548, %v545
      %v582 = vpack.c.b16 %v549, %v546
      %v583 = vpack.c.b16 %v553, %v550
      %v584 = vpack.c.b16 %v554, %v551
      %v585 = vpack.c.b16 %v555, %v552
      %v586 = vpack.c.b16 %v559, %v556
      %v587 = vpack.c.b16 %v560, %v557
      %v588 = vpack.c.b16 %v561, %v558
      %v589 = vpack.c.b16 %v565, %v562
      %v590 = vpack.c.b16 %v566, %v563
      %v591 = vpack.c.b16 %v567, %v564
      %616 = vmatprep.subr.bf16.mxu0 %v590
      %617 = vmatpush1.bf16.msra.mxu0 %v589
      %618 = vmatprep.subr.bf16.mxu0 %v587
      %619 = vmatpush1.bf16.msra.mxu0 %v586
      %620 = vmatprep.subr.bf16.mxu0 %v584
      %621 = vmatpush1.bf16.msra.mxu0 %v583
      %622 = vmatprep.subr.bf16.mxu0 %v581
      %623 = vmatpush1.bf16.msra.mxu0 %v580
      %624 = vmatprep.subr.bf16.mxu0 %v578
      %625 = vmatpush1.bf16.msra.mxu0 %v577
      %626 = vmatprep.subr.bf16.mxu0 %v575
      %627 = vmatpush1.bf16.msra.mxu0 %v574
      %628 = vmatprep.subr.bf16.mxu0 %v572
      %629 = vmatpush1.bf16.msra.mxu0 %v571
      %630 = vmatprep.subr.bf16.mxu0 %v569
      %631 = vmatpush1.bf16.msra.mxu0 %v568
      %632 = vmatprep.subr.bf16.mxu0 0
      %633 = vmatpush2.bf16.msra.mxu0 0
      %634 = vmatprep.subr.bf16.mxu0 0
      %635 = vmatpush2.bf16.msra.mxu0 0
      %636 = vmatprep.subr.bf16.mxu0 0
      %637 = vmatpush2.bf16.msra.mxu0 0
      %638 = vmatprep.subr.bf16.mxu0 0
      %639 = vmatpush2.bf16.msra.mxu0 0
      %640 = vmatprep.subr.bf16.mxu0 0
      %641 = vmatpush2.bf16.msra.mxu0 0
      %642 = vmatprep.subr.bf16.mxu0 0
      %643 = vmatpush2.bf16.msra.mxu0 0
      %644 = vmatprep.subr.bf16.mxu0 0
      %645 = vmatpush2.bf16.msra.mxu0 0
      %646 = vmatprep.subr.bf16.mxu0 0
      %647 = vmatpush2.bf16.msra.mxu0 0
      %648 = vmatprep.mubr.bf16.mxu0 0
      %649 = vmatmul.mubr.bf16.gmra.mxu0 %v438
      %v650 = vpop.f32.mrf.mxu0
      %v651 = vadd.f32 %v476, %v650
      %v652 = vpop.f32.mrf.mxu0
      %v653 = vadd.f32 %v480, %v652
      %v654 = vpop.f32.mrf.mxu0
      %v655 = vpop.f32.mrf.mxu0
      %656 = vdwg.mxu0
      %657 = vmatprep.subr.bf16.mxu0 0
      %658 = vmatpush1.bf16.msra.mxu0 %v591
      %659 = vmatprep.subr.bf16.mxu0 0
      %660 = vmatpush1.bf16.msra.mxu0 %v588
      %661 = vmatprep.subr.bf16.mxu0 0
      %662 = vmatpush1.bf16.msra.mxu0 %v585
      %663 = vmatprep.subr.bf16.mxu0 0
      %664 = vmatpush1.bf16.msra.mxu0 %v582
      %665 = vmatprep.subr.bf16.mxu0 0
      %666 = vmatpush1.bf16.msra.mxu0 %v579
      %667 = vmatprep.subr.bf16.mxu0 0
      %668 = vmatpush1.bf16.msra.mxu0 %v576
      %669 = vmatprep.subr.bf16.mxu0 0
      %670 = vmatpush1.bf16.msra.mxu0 %v573
      %671 = vmatprep.subr.bf16.mxu0 0
      %672 = vmatpush1.bf16.msra.mxu0 %v570
      %673 = vmatprep.subr.bf16.mxu0 0
      %674 = vmatpush2.bf16.msra.mxu0 0
      %675 = vmatprep.subr.bf16.mxu0 0
      %676 = vmatpush2.bf16.msra.mxu0 0
      %677 = vmatprep.subr.bf16.mxu0 0
      %678 = vmatpush2.bf16.msra.mxu0 0
      %679 = vmatprep.subr.bf16.mxu0 0
      %680 = vmatpush2.bf16.msra.mxu0 0
      %681 = vmatprep.subr.bf16.mxu0 0
      %682 = vmatpush2.bf16.msra.mxu0 0
      %683 = vmatprep.subr.bf16.mxu0 0
      %684 = vmatpush2.bf16.msra.mxu0 0
      %685 = vmatprep.subr.bf16.mxu0 0
      %686 = vmatpush2.bf16.msra.mxu0 0
      %687 = vmatprep.subr.bf16.mxu0 0
      %688 = vmatpush2.bf16.msra.mxu0 0
      %689 = vmatprep.mubr.bf16.mxu0 0
      %690 = vmatmul.mubr.bf16.gmra.mxu0 %v438
      %v691 = vpop.f32.mrf.mxu0
      %v692 = vadd.f32 %v484, %v691
      %v693 = vpop.f32.mrf.mxu0
      %v694 = vpop.f32.mrf.mxu0
      %v695 = vpop.f32.mrf.mxu0
      %696 = vdwg.mxu0
      %v697 = vpack.c.bf16 %v651, %v651
      %v698 = vpack.c.bf16 %v653, %v653
      %v699 = vpack.c.bf16 %v692, %v692
      %vm700 = vcmask 261120
      %v702 = vsel %vm700, %v697, 0
      %v705 = vsel %vm700, %v698, 0
      %707 = vmatprep.subr.bf16.mxu0 0
      %708 = vmatpush1.bf16.xpose.msra.mxu0 0
      %709 = vmatprep.subr.bf16.mxu0 0
      %710 = vmatpush1.bf16.xpose.msra.mxu0 0
      %711 = vmatprep.subr.bf16.mxu0 0
      %712 = vmatpush1.bf16.xpose.msra.mxu0 0
      %713 = vmatprep.subr.bf16.mxu0 0
      %714 = vmatpush1.bf16.xpose.msra.mxu0 0
      %715 = vmatprep.subr.bf16.mxu0 0
      %716 = vmatpush1.bf16.xpose.msra.mxu0 0
      %717 = vmatprep.subr.bf16.mxu0 0
      %718 = vmatpush1.bf16.xpose.msra.mxu0 0
      %719 = vmatprep.subr.bf16.mxu0 0
      %720 = vmatpush1.bf16.xpose.msra.mxu0 0
      %721 = vmatprep.subr.bf16.mxu0 0
      %722 = vmatpush1.bf16.xpose.msra.mxu0 %v705
      %723 = vmatprep.subr.bf16.mxu0 0
      %724 = vmatpush2.bf16.xpose.msra.mxu0 0
      %725 = vmatprep.subr.bf16.mxu0 0
      %726 = vmatpush2.bf16.xpose.msra.mxu0 0
      %727 = vmatprep.subr.bf16.mxu0 0
      %728 = vmatpush2.bf16.xpose.msra.mxu0 0
      %729 = vmatprep.subr.bf16.mxu0 0
      %730 = vmatpush2.bf16.xpose.msra.mxu0 0
      %731 = vmatprep.subr.bf16.mxu0 0
      %732 = vmatpush2.bf16.xpose.msra.mxu0 0
      %733 = vmatprep.subr.bf16.mxu0 0
      %734 = vmatpush2.bf16.xpose.msra.mxu0 0
      %735 = vmatprep.subr.bf16.mxu0 0
      %736 = vmatpush2.bf16.xpose.msra.mxu0 0
      %737 = vmatprep.subr.bf16.mxu0 0
      %738 = vmatpush2.bf16.xpose.msra.mxu0 0
      %739 = vmatprep.mubr.bf16.mxu0 0
      %740 = vmatmul.mubr.bf16.gmra.mxu0 %v702
      %v741 = vpop.f32.mrf.mxu0
      %v742 = vadd.f32 0.0, %v741
      %v743 = vpop.f32.mrf.mxu0
      %v744 = vpop.f32.mrf.mxu0
      %v745 = vpop.f32.mrf.mxu0
      %746 = vdwg.mxu0
      %v747 = vmul.f32 %v742, 0.17677669
      %vm748 = vcmask 64512
      %v749 = vsel %vm748, %v747, -inf
      %750 = vmax.xlane.f32.xlu0 %v749
      %v751 = vpop.xlane.xlu0 %750
      %v752 = vsub.f32 %v747, %v751
      %v753 = vmul.f32 %v752, 1.442695
      %v754 = vpow.pop %v753
      %v755 = vsel %vm748, %v754, 0.0
      %756 = vadd.xlane.f32.xlu0 %v755
      %v757 = vpop.xlane.xlu0 %756
      %v758 = vrcp.pop %v757
      %v759 = vmul.f32 %v754, %v758
      %v760 = vpack.c.bf16 %v759, %v759
      %v762 = vsel %vm748, %v760, 0
      %vm764 = vcmask 1043456
      %v766 = vsel %vm764, %v699, 0
      %768 = vmatprep.subr.bf16.mxu0 0
      %769 = vmatpush1.bf16.msra.mxu0 0
      %770 = vmatprep.subr.bf16.mxu0 0
      %771 = vmatpush1.bf16.msra.mxu0 0
      %772 = vmatprep.subr.bf16.mxu0 0
      %773 = vmatpush1.bf16.msra.mxu0 0
      %774 = vmatprep.subr.bf16.mxu0 0
      %775 = vmatpush1.bf16.msra.mxu0 0
      %776 = vmatprep.subr.bf16.mxu0 0
      %777 = vmatpush1.bf16.msra.mxu0 0
      %778 = vmatprep.subr.bf16.mxu0 0
      %779 = vmatpush1.bf16.msra.mxu0 0
      %780 = vmatprep.subr.bf16.mxu0 0
      %781 = vmatpush1.bf16.msra.mxu0 0
      %782 = vmatprep.subr.bf16.mxu0 0
      %783 = vmatpush1.bf16.msra.mxu0 %v766
      %784 = vmatprep.subr.bf16.mxu0 0
      %785 = vmatpush2.bf16.msra.mxu0 0
      %786 = vmatprep.subr.bf16.mxu0 0
      %787 = vmatpush2.bf16.msra.mxu0 0
      %788 = vmatprep.subr.bf16.mxu0 0
      %789 = vmatpush2.bf16.msra.mxu0 0
      %790 = vmatprep.subr.bf16.mxu0 0
      %791 = vmatpush2.bf16.msra.mxu0 0
      %792 = vmatprep.subr.bf16.mxu0 0
      %793 = vmatpush2.bf16.msra.mxu0 0
      %794 = vmatprep.subr.bf16.mxu0 0
      %795 = vmatpush2.bf16.msra.mxu0 0
      %796 = vmatprep.subr.bf16.mxu0 0
      %797 = vmatpush2.bf16.msra.mxu0 0
      %798 = vmatprep.subr.bf16.mxu0 0
      %799 = vmatpush2.bf16.msra.mxu0 0
      %800 = vmatprep.mubr.bf16.mxu0 0
      %801 = vmatmul.mubr.bf16.gmra.mxu0 %v762
      %v802 = vpop.f32.mrf.mxu0
      %v803 = vadd.f32 0.0, %v802
      %v804 = vpop.f32.mrf.mxu0
      %v805 = vpop.f32.mrf.mxu0
      %v806 = vpop.f32.mrf.mxu0
      %807 = vdwg.mxu0
      %809 = vrot.lane.b32.xlu0 %v697, 96
      %v810 = vpop.permute.xlu0 %809
      %812 = vrot.lane.b32.xlu0 %v698, 96
      %v813 = vpop.permute.xlu0 %812
      %v815 = vsel %vm700, %v810, 0
      %v818 = vsel %vm700, %v813, 0
      %820 = vmatprep.subr.bf16.mxu0 0
      %821 = vmatpush1.bf16.xpose.msra.mxu0 0
      %822 = vmatprep.subr.bf16.mxu0 0
      %823 = vmatpush1.bf16.xpose.msra.mxu0 0
      %824 = vmatprep.subr.bf16.mxu0 0
      %825 = vmatpush1.bf16.xpose.msra.mxu0 0
      %826 = vmatprep.subr.bf16.mxu0 0
      %827 = vmatpush1.bf16.xpose.msra.mxu0 0
      %828 = vmatprep.subr.bf16.mxu0 0
      %829 = vmatpush1.bf16.xpose.msra.mxu0 0
      %830 = vmatprep.subr.bf16.mxu0 0
      %831 = vmatpush1.bf16.xpose.msra.mxu0 0
      %832 = vmatprep.subr.bf16.mxu0 0
      %833 = vmatpush1.bf16.xpose.msra.mxu0 0
      %834 = vmatprep.subr.bf16.mxu0 0
      %835 = vmatpush1.bf16.xpose.msra.mxu0 %v818
      %836 = vmatprep.subr.bf16.mxu0 0
      %837 = vmatpush2.bf16.xpose.msra.mxu0 0
      %838 = vmatprep.subr.bf16.mxu0 0
      %839 = vmatpush2.bf16.xpose.msra.mxu0 0
      %840 = vmatprep.subr.bf16.mxu0 0
      %841 = vmatpush2.bf16.xpose.msra.mxu0 0
      %842 = vmatprep.subr.bf16.mxu0 0
      %843 = vmatpush2.bf16.xpose.msra.mxu0 0
      %844 = vmatprep.subr.bf16.mxu0 0
      %845 = vmatpush2.bf16.xpose.msra.mxu0 0
      %846 = vmatprep.subr.bf16.mxu0 0
      %847 = vmatpush2.bf16.xpose.msra.mxu0 0
      %848 = vmatprep.subr.bf16.mxu0 0
      %849 = vmatpush2.bf16.xpose.msra.mxu0 0
      %850 = vmatprep.subr.bf16.mxu0 0
      %851 = vmatpush2.bf16.xpose.msra.mxu0 0
      %852 = vmatprep.mubr.bf16.mxu0 0
      %853 = vmatmul.mubr.bf16.gmra.mxu0 %v815
      %v854 = vpop.f32.mrf.mxu0
      %v855 = vadd.f32 0.0, %v854
      %v856 = vpop.f32.mrf.mxu0
      %v857 = vpop.f32.mrf.mxu0
      %v858 = vpop.f32.mrf.mxu0
      %859 = vdwg.mxu0
      %v860 = vmul.f32 %v855, 0.17677669
      %v861 = vsel %vm748, %v860, -inf
      %862 = vmax.xlane.f32.xlu0 %v861
      %v863 = vpop.xlane.xlu0 %862
      %v864 = vsub.f32 %v860, %v863
      %v865 = vmul.f32 %v864, 1.442695
      %v866 = vpow.pop %v865
      %v867 = vsel %vm748, %v866, 0.0
      %868 = vadd.xlane.f32.xlu0 %v867
      %v869 = vpop.xlane.xlu0 %868
      %v870 = vrcp.pop %v869
      %v871 = vmul.f32 %v866, %v870
      %v872 = vpack.c.bf16 %v871, %v871
      %874 = vrot.lane.b32.xlu0 %v699, 96
      %v875 = vpop.permute.xlu0 %874
      %v877 = vsel %vm748, %v872, 0
      %v880 = vsel %vm764, %v875, 0
      %882 = vmatprep.subr.bf16.mxu0 0
      %883 = vmatpush1.bf16.msra.mxu0 0
      %884 = vmatprep.subr.bf16.mxu0 0
      %885 = vmatpush1.bf16.msra.mxu0 0
      %886 = vmatprep.subr.bf16.mxu0 0
      %887 = vmatpush1.bf16.msra.mxu0 0
      %888 = vmatprep.subr.bf16.mxu0 0
      %889 = vmatpush1.bf16.msra.mxu0 0
      %890 = vmatprep.subr.bf16.mxu0 0
      %891 = vmatpush1.bf16.msra.mxu0 0
      %892 = vmatprep.subr.bf16.mxu0 0
      %893 = vmatpush1.bf16.msra.mxu0 0
      %894 = vmatprep.subr.bf16.mxu0 0
      %895 = vmatpush1.bf16.msra.mxu0 0
      %896 = vmatprep.subr.bf16.mxu0 0
      %897 = vmatpush1.bf16.msra.mxu0 %v880
      %898 = vmatprep.subr.bf16.mxu0 0
      %899 = vmatpush2.bf16.msra.mxu0 0
      %900 = vmatprep.subr.bf16.mxu0 0
      %901 = vmatpush2.bf16.msra.mxu0 0
      %902 = vmatprep.subr.bf16.mxu0 0
      %903 = vmatpush2.bf16.msra.mxu0 0
      %904 = vmatprep.subr.bf16.mxu0 0
      %905 = vmatpush2.bf16.msra.mxu0 0
      %906 = vmatprep.subr.bf16.mxu0 0
      %907 = vmatpush2.bf16.msra.mxu0 0
      %908 = vmatprep.subr.bf16.mxu0 0
      %909 = vmatpush2.bf16.msra.mxu0 0
      %910 = vmatprep.subr.bf16.mxu0 0
      %911 = vmatpush2.bf16.msra.mxu0 0
      %912 = vmatprep.subr.bf16.mxu0 0
      %913 = vmatpush2.bf16.msra.mxu0 0
      %914 = vmatprep.mubr.bf16.mxu0 0
      %915 = vmatmul.mubr.bf16.gmra.mxu0 %v877
      %v916 = vpop.f32.mrf.mxu0
      %v917 = vadd.f32 0.0, %v916
      %v918 = vpop.f32.mrf.mxu0
      %v919 = vpop.f32.mrf.mxu0
      %v920 = vpop.f32.mrf.mxu0
      %921 = vdwg.mxu0
      %922 = vrot.lane.b32.xlu0 %v697, 64
      %v923 = vpop.permute.xlu0 %922
      %924 = vrot.lane.b32.xlu0 %v698, 64
      %v925 = vpop.permute.xlu0 %924
      %v927 = vsel %vm700, %v923, 0
      %v930 = vsel %vm700, %v925, 0
      %932 = vmatprep.subr.bf16.mxu0 0
      %933 = vmatpush1.bf16.xpose.msra.mxu0 0
      %934 = vmatprep.subr.bf16.mxu0 0
      %935 = vmatpush1.bf16.xpose.msra.mxu0 0
      %936 = vmatprep.subr.bf16.mxu0 0
      %937 = vmatpush1.bf16.xpose.msra.mxu0 0
      %938 = vmatprep.subr.bf16.mxu0 0
      %939 = vmatpush1.bf16.xpose.msra.mxu0 0
      %940 = vmatprep.subr.bf16.mxu0 0
      %941 = vmatpush1.bf16.xpose.msra.mxu0 0
      %942 = vmatprep.subr.bf16.mxu0 0
      %943 = vmatpush1.bf16.xpose.msra.mxu0 0
      %944 = vmatprep.subr.bf16.mxu0 0
      %945 = vmatpush1.bf16.xpose.msra.mxu0 0
      %946 = vmatprep.subr.bf16.mxu0 0
      %947 = vmatpush1.bf16.xpose.msra.mxu0 %v930
      %948 = vmatprep.subr.bf16.mxu0 0
      %949 = vmatpush2.bf16.xpose.msra.mxu0 0
      %950 = vmatprep.subr.bf16.mxu0 0
      %951 = vmatpush2.bf16.xpose.msra.mxu0 0
      %952 = vmatprep.subr.bf16.mxu0 0
      %953 = vmatpush2.bf16.xpose.msra.mxu0 0
      %954 = vmatprep.subr.bf16.mxu0 0
      %955 = vmatpush2.bf16.xpose.msra.mxu0 0
      %956 = vmatprep.subr.bf16.mxu0 0
      %957 = vmatpush2.bf16.xpose.msra.mxu0 0
      %958 = vmatprep.subr.bf16.mxu0 0
      %959 = vmatpush2.bf16.xpose.msra.mxu0 0
      %960 = vmatprep.subr.bf16.mxu0 0
      %961 = vmatpush2.bf16.xpose.msra.mxu0 0
      %962 = vmatprep.subr.bf16.mxu0 0
      %963 = vmatpush2.bf16.xpose.msra.mxu0 0
      %964 = vmatprep.mubr.bf16.mxu0 0
      %965 = vmatmul.mubr.bf16.gmra.mxu0 %v927
      %v966 = vpop.f32.mrf.mxu0
      %v967 = vadd.f32 0.0, %v966
      %v968 = vpop.f32.mrf.mxu0
      %v969 = vpop.f32.mrf.mxu0
      %v970 = vpop.f32.mrf.mxu0
      %971 = vdwg.mxu0
      %v972 = vmul.f32 %v967, 0.17677669
      %v973 = vsel %vm748, %v972, -inf
      %974 = vmax.xlane.f32.xlu0 %v973
      %v975 = vpop.xlane.xlu0 %974
      %v976 = vsub.f32 %v972, %v975
      %v977 = vmul.f32 %v976, 1.442695
      %v978 = vpow.pop %v977
      %v979 = vsel %vm748, %v978, 0.0
      %980 = vadd.xlane.f32.xlu0 %v979
      %v981 = vpop.xlane.xlu0 %980
      %v982 = vrcp.pop %v981
      %v983 = vmul.f32 %v978, %v982
      %v984 = vpack.c.bf16 %v983, %v983
      %985 = vrot.lane.b32.xlu0 %v699, 64
      %v986 = vpop.permute.xlu0 %985
      %v988 = vsel %vm748, %v984, 0
      %v991 = vsel %vm764, %v986, 0
      %993 = vmatprep.subr.bf16.mxu0 0
      %994 = vmatpush1.bf16.msra.mxu0 0
      %995 = vmatprep.subr.bf16.mxu0 0
      %996 = vmatpush1.bf16.msra.mxu0 0
      %997 = vmatprep.subr.bf16.mxu0 0
      %998 = vmatpush1.bf16.msra.mxu0 0
      %999 = vmatprep.subr.bf16.mxu0 0
      %1000 = vmatpush1.bf16.msra.mxu0 0
      %1001 = vmatprep.subr.bf16.mxu0 0
      %1002 = vmatpush1.bf16.msra.mxu0 0
      %1003 = vmatprep.subr.bf16.mxu0 0
      %1004 = vmatpush1.bf16.msra.mxu0 0
      %1005 = vmatprep.subr.bf16.mxu0 0
      %1006 = vmatpush1.bf16.msra.mxu0 0
      %1007 = vmatprep.subr.bf16.mxu0 0
      %1008 = vmatpush1.bf16.msra.mxu0 %v991
      %1009 = vmatprep.subr.bf16.mxu0 0
      %1010 = vmatpush2.bf16.msra.mxu0 0
      %1011 = vmatprep.subr.bf16.mxu0 0
      %1012 = vmatpush2.bf16.msra.mxu0 0
      %1013 = vmatprep.subr.bf16.mxu0 0
      %1014 = vmatpush2.bf16.msra.mxu0 0
      %1015 = vmatprep.subr.bf16.mxu0 0
      %1016 = vmatpush2.bf16.msra.mxu0 0
      %1017 = vmatprep.subr.bf16.mxu0 0
      %1018 = vmatpush2.bf16.msra.mxu0 0
      %1019 = vmatprep.subr.bf16.mxu0 0
      %1020 = vmatpush2.bf16.msra.mxu0 0
      %1021 = vmatprep.subr.bf16.mxu0 0
      %1022 = vmatpush2.bf16.msra.mxu0 0
      %1023 = vmatprep.subr.bf16.mxu0 0
      %1024 = vmatpush2.bf16.msra.mxu0 0
      %1025 = vmatprep.mubr.bf16.mxu0 0
      %1026 = vmatmul.mubr.bf16.gmra.mxu0 %v988
      %v1027 = vpop.f32.mrf.mxu0
      %v1028 = vadd.f32 0.0, %v1027
      %v1029 = vpop.f32.mrf.mxu0
      %v1030 = vpop.f32.mrf.mxu0
      %v1031 = vpop.f32.mrf.mxu0
      %1032 = vdwg.mxu0
      %1033 = vrot.lane.b32.xlu0 %v697, 32
      %v1034 = vpop.permute.xlu0 %1033
      %1035 = vrot.lane.b32.xlu0 %v698, 32
      %v1036 = vpop.permute.xlu0 %1035
      %v1038 = vsel %vm700, %v1034, 0
      %v1041 = vsel %vm700, %v1036, 0
      %1043 = vmatprep.subr.bf16.mxu0 0
      %1044 = vmatpush1.bf16.xpose.msra.mxu0 0
      %1045 = vmatprep.subr.bf16.mxu0 0
      %1046 = vmatpush1.bf16.xpose.msra.mxu0 0
      %1047 = vmatprep.subr.bf16.mxu0 0
      %1048 = vmatpush1.bf16.xpose.msra.mxu0 0
      %1049 = vmatprep.subr.bf16.mxu0 0
      %1050 = vmatpush1.bf16.xpose.msra.mxu0 0
      %1051 = vmatprep.subr.bf16.mxu0 0
      %1052 = vmatpush1.bf16.xpose.msra.mxu0 0
      %1053 = vmatprep.subr.bf16.mxu0 0
      %1054 = vmatpush1.bf16.xpose.msra.mxu0 0
      %1055 = vmatprep.subr.bf16.mxu0 0
      %1056 = vmatpush1.bf16.xpose.msra.mxu0 0
      %1057 = vmatprep.subr.bf16.mxu0 0
      %1058 = vmatpush1.bf16.xpose.msra.mxu0 %v1041
      %1059 = vmatprep.subr.bf16.mxu0 0
      %1060 = vmatpush2.bf16.xpose.msra.mxu0 0
      %1061 = vmatprep.subr.bf16.mxu0 0
      %1062 = vmatpush2.bf16.xpose.msra.mxu0 0
      %1063 = vmatprep.subr.bf16.mxu0 0
      %1064 = vmatpush2.bf16.xpose.msra.mxu0 0
      %1065 = vmatprep.subr.bf16.mxu0 0
      %1066 = vmatpush2.bf16.xpose.msra.mxu0 0
      %1067 = vmatprep.subr.bf16.mxu0 0
      %1068 = vmatpush2.bf16.xpose.msra.mxu0 0
      %1069 = vmatprep.subr.bf16.mxu0 0
      %1070 = vmatpush2.bf16.xpose.msra.mxu0 0
      %1071 = vmatprep.subr.bf16.mxu0 0
      %1072 = vmatpush2.bf16.xpose.msra.mxu0 0
      %1073 = vmatprep.subr.bf16.mxu0 0
      %1074 = vmatpush2.bf16.xpose.msra.mxu0 0
      %1075 = vmatprep.mubr.bf16.mxu0 0
      %1076 = vmatmul.mubr.bf16.gmra.mxu0 %v1038
      %v1077 = vpop.f32.mrf.mxu0
      %v1078 = vadd.f32 0.0, %v1077
      %v1079 = vpop.f32.mrf.mxu0
      %v1080 = vpop.f32.mrf.mxu0
      %v1081 = vpop.f32.mrf.mxu0
      %1082 = vdwg.mxu0
      %v1083 = vmul.f32 %v1078, 0.17677669
      %v1084 = vsel %vm748, %v1083, -inf
      %1085 = vmax.xlane.f32.xlu0 %v1084
      %v1086 = vpop.xlane.xlu0 %1085
      %v1087 = vsub.f32 %v1083, %v1086
      %v1088 = vmul.f32 %v1087, 1.442695
      %v1089 = vpow.pop %v1088
      %v1090 = vsel %vm748, %v1089, 0.0
      %1091 = vadd.xlane.f32.xlu0 %v1090
      %v1092 = vpop.xlane.xlu0 %1091
      %v1093 = vrcp.pop %v1092
      %v1094 = vmul.f32 %v1089, %v1093
      %v1095 = vpack.c.bf16 %v1094, %v1094
      %1096 = vrot.lane.b32.xlu0 %v699, 32
      %v1097 = vpop.permute.xlu0 %1096
      %v1099 = vsel %vm748, %v1095, 0
      %v1102 = vsel %vm764, %v1097, 0
      %1104 = vmatprep.subr.bf16.mxu0 0
      %1105 = vmatpush1.bf16.msra.mxu0 0
      %1106 = vmatprep.subr.bf16.mxu0 0
      %1107 = vmatpush1.bf16.msra.mxu0 0
      %1108 = vmatprep.subr.bf16.mxu0 0
      %1109 = vmatpush1.bf16.msra.mxu0 0
      %1110 = vmatprep.subr.bf16.mxu0 0
      %1111 = vmatpush1.bf16.msra.mxu0 0
      %1112 = vmatprep.subr.bf16.mxu0 0
      %1113 = vmatpush1.bf16.msra.mxu0 0
      %1114 = vmatprep.subr.bf16.mxu0 0
      %1115 = vmatpush1.bf16.msra.mxu0 0
      %1116 = vmatprep.subr.bf16.mxu0 0
      %1117 = vmatpush1.bf16.msra.mxu0 0
      %1118 = vmatprep.subr.bf16.mxu0 0
      %1119 = vmatpush1.bf16.msra.mxu0 %v1102
      %1120 = vmatprep.subr.bf16.mxu0 0
      %1121 = vmatpush2.bf16.msra.mxu0 0
      %1122 = vmatprep.subr.bf16.mxu0 0
      %1123 = vmatpush2.bf16.msra.mxu0 0
      %1124 = vmatprep.subr.bf16.mxu0 0
      %1125 = vmatpush2.bf16.msra.mxu0 0
      %1126 = vmatprep.subr.bf16.mxu0 0
      %1127 = vmatpush2.bf16.msra.mxu0 0
      %1128 = vmatprep.subr.bf16.mxu0 0
      %1129 = vmatpush2.bf16.msra.mxu0 0
      %1130 = vmatprep.subr.bf16.mxu0 0
      %1131 = vmatpush2.bf16.msra.mxu0 0
      %1132 = vmatprep.subr.bf16.mxu0 0
      %1133 = vmatpush2.bf16.msra.mxu0 0
      %1134 = vmatprep.subr.bf16.mxu0 0
      %1135 = vmatpush2.bf16.msra.mxu0 0
      %1136 = vmatprep.mubr.bf16.mxu0 0
      %1137 = vmatmul.mubr.bf16.gmra.mxu0 %v1099
      %v1138 = vpop.f32.mrf.mxu0
      %v1139 = vadd.f32 0.0, %v1138
      %v1140 = vpop.f32.mrf.mxu0
      %v1141 = vpop.f32.mrf.mxu0
      %v1142 = vpop.f32.mrf.mxu0
      %1143 = vdwg.mxu0
      %1145 = vrot.lane.b32.xlu0 %v917, 32
      %v1146 = vpop.permute.xlu0 %1145
      %1149 = vrot.lane.b32.xlu0 %v1028, 64
      %v1150 = vpop.permute.xlu0 %1149
      %1153 = vrot.lane.b32.xlu0 %v1139, 96
      %v1154 = vpop.permute.xlu0 %1153
      %v1156 = vsel %vm700, %v803, %v1146
      %vm1157 = vcmask 523264
      %v1158 = vsel %vm1157, %v1156, %v1150
      %vm1159 = vcmask 785408
      %v1160 = vsel %vm1159, %v1158, %v1154
      %v1161 = vpack.c.bf16 %v1160, %v1160
      %v1162 = vld [vmem:[%s3] sm:$0xf]
      %v1163 = vld [vmem:[%s3 + $0x4] sm:$0xf]
      %v1164 = vld [vmem:[%s3 + $0x8] sm:$0xf]
      %v1165 = vld [vmem:[%s3 + $0xc] sm:$0xf]
      %v1166 = vld [vmem:[%s3 + $0x10] sm:$0xf]
      %v1167 = vld [vmem:[%s3 + $0x14] sm:$0xf]
      %v1168 = vld [vmem:[%s3 + $0x18] sm:$0xf]
      %v1169 = vld [vmem:[%s3 + $0x1c] sm:$0xf]
      %v1170 = vld [vmem:[%s3 + $0x20] sm:$0xf]
      %v1171 = vld [vmem:[%s3 + $0x24] sm:$0xf]
      %v1172 = vld [vmem:[%s3 + $0x28] sm:$0xf]
      %v1173 = vld [vmem:[%s3 + $0x2c] sm:$0xf]
      %v1174 = vld [vmem:[%s3 + $0x30] sm:$0xf]
      %v1175 = vld [vmem:[%s3 + $0x34] sm:$0xf]
      %v1176 = vld [vmem:[%s3 + $0x38] sm:$0xf]
      %v1177 = vld [vmem:[%s3 + $0x3c] sm:$0xf]
      %v1178 = vld [vmem:[%s4] sm:$0x1]
      %v1180 = vlaneseq
      %v1181 = vshrl.u32 %v1180, 7
      %v1182 = vsub.s32 0, %v1181
      %v1183 = vrot.slane %v1178, %v1182
      %v1201 = vunpack.c.l.b16 %v1162
      %v1202 = vunpack.c.l.b16 %v1163
      %v1203 = vunpack.c.l.b16 %v1164
      %v1204 = vunpack.c.l.b16 %v1165
      %v1205 = vunpack.c.l.b16 %v1166
      %v1206 = vunpack.c.l.b16 %v1167
      %v1207 = vunpack.c.l.b16 %v1168
      %v1208 = vunpack.c.l.b16 %v1169
      %v1209 = vunpack.c.l.b16 %v1170
      %v1210 = vunpack.c.l.b16 %v1171
      %v1211 = vunpack.c.l.b16 %v1172
      %v1212 = vunpack.c.l.b16 %v1173
      %v1213 = vunpack.c.l.b16 %v1174
      %v1214 = vunpack.c.l.b16 %v1175
      %v1215 = vunpack.c.l.b16 %v1176
      %v1216 = vunpack.c.l.b16 %v1177
      %v1217 = vpack.c.b16 %v1202, %v1201
      %v1218 = vpack.c.b16 %v1204, %v1203
      %v1219 = vpack.c.b16 %v1206, %v1205
      %v1220 = vpack.c.b16 %v1208, %v1207
      %v1221 = vpack.c.b16 %v1210, %v1209
      %v1222 = vpack.c.b16 %v1212, %v1211
      %v1223 = vpack.c.b16 %v1214, %v1213
      %v1224 = vpack.c.b16 %v1216, %v1215
      %1233 = vmatprep.subr.bf16.mxu0 0
      %1234 = vmatpush1.bf16.msra.mxu0 %v1224
      %1235 = vmatprep.subr.bf16.mxu0 0
      %1236 = vmatpush1.bf16.msra.mxu0 %v1223
      %1237 = vmatprep.subr.bf16.mxu0 0
      %1238 = vmatpush1.bf16.msra.mxu0 %v1222
      %1239 = vmatprep.subr.bf16.mxu0 0
      %1240 = vmatpush1.bf16.msra.mxu0 %v1221
      %1241 = vmatprep.subr.bf16.mxu0 0
      %1242 = vmatpush1.bf16.msra.mxu0 %v1220
      %1243 = vmatprep.subr.bf16.mxu0 0
      %1244 = vmatpush1.bf16.msra.mxu0 %v1219
      %1245 = vmatprep.subr.bf16.mxu0 0
      %1246 = vmatpush1.bf16.msra.mxu0 %v1218
      %1247 = vmatprep.subr.bf16.mxu0 0
      %1248 = vmatpush1.bf16.msra.mxu0 %v1217
      %1249 = vmatprep.subr.bf16.mxu0 0
      %1250 = vmatpush2.bf16.msra.mxu0 0
      %1251 = vmatprep.subr.bf16.mxu0 0
      %1252 = vmatpush2.bf16.msra.mxu0 0
      %1253 = vmatprep.subr.bf16.mxu0 0
      %1254 = vmatpush2.bf16.msra.mxu0 0
      %1255 = vmatprep.subr.bf16.mxu0 0
      %1256 = vmatpush2.bf16.msra.mxu0 0
      %1257 = vmatprep.subr.bf16.mxu0 0
      %1258 = vmatpush2.bf16.msra.mxu0 0
      %1259 = vmatprep.subr.bf16.mxu0 0
      %1260 = vmatpush2.bf16.msra.mxu0 0
      %1261 = vmatprep.subr.bf16.mxu0 0
      %1262 = vmatpush2.bf16.msra.mxu0 0
      %1263 = vmatprep.subr.bf16.mxu0 0
      %1264 = vmatpush2.bf16.msra.mxu0 0
      %1265 = vmatprep.mubr.bf16.mxu0 0
      %1266 = vmatmul.mubr.bf16.gmra.mxu0 %v1161
      %v1267 = vpop.f32.mrf.mxu0
      %v1268 = vadd.f32 %v1183, %v1267
      %v1269 = vpop.f32.mrf.mxu0
      %v1270 = vpop.f32.mrf.mxu0
      %v1271 = vpop.f32.mrf.mxu0
      %1272 = vdwg.mxu0
      %v1273 = vadd.f32 %v1268, %v437
      %v1274 = vld [vmem:[%s5] sm:$0x1]
      %v1275 = vld [vmem:[%s6] sm:$0x1]
      %1276 = vadd.xlane.f32.xlu0 %v1273
      %v1277 = vpop.xlane.xlu0 %1276
      %v1278 = vrcp.pop 128.0
      %v1279 = vmul.f32 %v1277, %v1278
      %v1280 = vsub.f32 %v1273, %v1279
      %v1281 = vmul.f32 %v1280, %v1280
      %1282 = vadd.xlane.f32.xlu0 %v1281
      %v1283 = vpop.xlane.xlu0 %1282
      %v1284 = vmul.f32 %v1283, %v1278
      %v1285 = vadd.f32 %v1284, 1e-12
      %v1286 = vrsqrt.pop %v1285
      %v1287 = vmul.f32 %v1280, %v1286
      %v1289 = vlaneseq
      %v1290 = vshrl.u32 %v1289, 7
      %v1291 = vsub.s32 0, %v1290
      %v1292 = vrot.slane %v1274, %v1291
      %v1294 = vmul.f32 %v1287, %v1292
      %v1296 = vlaneseq
      %v1297 = vshrl.u32 %v1296, 7
      %v1298 = vsub.s32 0, %v1297
      %v1299 = vrot.slane %v1275, %v1298
      %v1301 = vadd.f32 %v1294, %v1299
      %v1302 = vpack.c.bf16 %v1301, %v1301
      %v1303 = vld [vmem:[%s7] sm:$0xff]
      %v1304 = vld [vmem:[%s7 + $0x8] sm:$0xff]
      %v1305 = vld [vmem:[%s7 + $0x10] sm:$0xff]
      %v1306 = vld [vmem:[%s7 + $0x18] sm:$0xff]
      %v1307 = vld [vmem:[%s7 + $0x20] sm:$0xff]
      %v1308 = vld [vmem:[%s7 + $0x28] sm:$0xff]
      %v1309 = vld [vmem:[%s7 + $0x30] sm:$0xff]
      %v1310 = vld [vmem:[%s7 + $0x38] sm:$0xff]
      %v1311 = vld [vmem:[%s7 + $0x40] sm:$0xff]
      %v1312 = vld [vmem:[%s7 + $0x48] sm:$0xff]
      %v1313 = vld [vmem:[%s7 + $0x50] sm:$0xff]
      %v1314 = vld [vmem:[%s7 + $0x58] sm:$0xff]
      %v1315 = vld [vmem:[%s7 + $0x60] sm:$0xff]
      %v1316 = vld [vmem:[%s7 + $0x68] sm:$0xff]
      %v1317 = vld [vmem:[%s7 + $0x70] sm:$0xff]
      %v1318 = vld [vmem:[%s7 + $0x78] sm:$0xff]
      %v1319 = vld [vmem:[%s7 + $0x80] sm:$0xff]
      %v1320 = vld [vmem:[%s7 + $0x88] sm:$0xff]
      %v1321 = vld [vmem:[%s7 + $0x90] sm:$0xff]
      %v1322 = vld [vmem:[%s7 + $0x98] sm:$0xff]
      %v1323 = vld [vmem:[%s7 + $0xa0] sm:$0xff]
      %v1324 = vld [vmem:[%s7 + $0xa8] sm:$0xff]
      %v1325 = vld [vmem:[%s7 + $0xb0] sm:$0xff]
      %v1326 = vld [vmem:[%s7 + $0xb8] sm:$0xff]
      %v1327 = vld [vmem:[%s7 + $0xc0] sm:$0xff]
      %v1328 = vld [vmem:[%s7 + $0xc8] sm:$0xff]
      %v1329 = vld [vmem:[%s7 + $0xd0] sm:$0xff]
      %v1330 = vld [vmem:[%s7 + $0xd8] sm:$0xff]
      %v1331 = vld [vmem:[%s7 + $0xe0] sm:$0xff]
      %v1332 = vld [vmem:[%s7 + $0xe8] sm:$0xff]
      %v1333 = vld [vmem:[%s7 + $0xf0] sm:$0xff]
      %v1334 = vld [vmem:[%s7 + $0xf8] sm:$0xff]
      %v1335 = vld [vmem:[%s8] sm:$0xf]
      %v1337 = vlaneseq
      %v1338 = vshrl.u32 %v1337, 7
      %v1339 = vsub.s32 0, %v1338
      %v1340 = vrot.slane %v1335, %v1339
      %v1341 = vlaneseq
      %v1342 = vshrl.u32 %v1341, 7
      %v1343 = vsub.s32 1, %v1342
      %v1344 = vrot.slane %v1335, %v1343
      %v1345 = vlaneseq
      %v1346 = vshrl.u32 %v1345, 7
      %v1347 = vsub.s32 2, %v1346
      %v1348 = vrot.slane %v1335, %v1347
      %v1349 = vlaneseq
      %v1350 = vshrl.u32 %v1349, 7
      %v1351 = vsub.s32 3, %v1350
      %v1352 = vrot.slane %v1335, %v1351
      %v1389 = vunpack.c.l.b16 %v1303
      %v1390 = vunpack.c.h.b16 %v1303
      %v1391 = vunpack.c.l.b16 %v1304
      %v1392 = vunpack.c.h.b16 %v1304
      %v1393 = vunpack.c.l.b16 %v1305
      %v1394 = vunpack.c.h.b16 %v1305
      %v1395 = vunpack.c.l.b16 %v1306
      %v1396 = vunpack.c.h.b16 %v1306
      %v1397 = vunpack.c.l.b16 %v1307
      %v1398 = vunpack.c.h.b16 %v1307
      %v1399 = vunpack.c.l.b16 %v1308
      %v1400 = vunpack.c.h.b16 %v1308
      %v1401 = vunpack.c.l.b16 %v1309
      %v1402 = vunpack.c.h.b16 %v1309
      %v1403 = vunpack.c.l.b16 %v1310
      %v1404 = vunpack.c.h.b16 %v1310
      %v1405 = vunpack.c.l.b16 %v1311
      %v1406 = vunpack.c.h.b16 %v1311
      %v1407 = vunpack.c.l.b16 %v1312
      %v1408 = vunpack.c.h.b16 %v1312
      %v1409 = vunpack.c.l.b16 %v1313
      %v1410 = vunpack.c.h.b16 %v1313
      %v1411 = vunpack.c.l.b16 %v1314
      %v1412 = vunpack.c.h.b16 %v1314
      %v1413 = vunpack.c.l.b16 %v1315
      %v1414 = vunpack.c.h.b16 %v1315
      %v1415 = vunpack.c.l.b16 %v1316
      %v1416 = vunpack.c.h.b16 %v1316
      %v1417 = vunpack.c.l.b16 %v1317
      %v1418 = vunpack.c.h.b16 %v1317
      %v1419 = vunpack.c.l.b16 %v1318
      %v1420 = vunpack.c.h.b16 %v1318
      %v1421 = vunpack.c.l.b16 %v1319
      %v1422 = vunpack.c.h.b16 %v1319
      %v1423 = vunpack.c.l.b16 %v1320
      %v1424 = vunpack.c.h.b16 %v1320
      %v1425 = vunpack.c.l.b16 %v1321
      %v1426 = vunpack.c.h.b16 %v1321
      %v1427 = vunpack.c.l.b16 %v1322
      %v1428 = vunpack.c.h.b16 %v1322
      %v1429 = vunpack.c.l.b16 %v1323
      %v1430 = vunpack.c.h.b16 %v1323
      %v1431 = vunpack.c.l.b16 %v1324
      %v1432 = vunpack.c.h.b16 %v1324
      %v1433 = vunpack.c.l.b16 %v1325
      %v1434 = vunpack.c.h.b16 %v1325
      %v1435 = vunpack.c.l.b16 %v1326
      %v1436 = vunpack.c.h.b16 %v1326
      %v1437 = vunpack.c.l.b16 %v1327
      %v1438 = vunpack.c.h.b16 %v1327
      %v1439 = vunpack.c.l.b16 %v1328
      %v1440 = vunpack.c.h.b16 %v1328
      %v1441 = vunpack.c.l.b16 %v1329
      %v1442 = vunpack.c.h.b16 %v1329
      %v1443 = vunpack.c.l.b16 %v1330
      %v1444 = vunpack.c.h.b16 %v1330
      %v1445 = vunpack.c.l.b16 %v1331
      %v1446 = vunpack.c.h.b16 %v1331
      %v1447 = vunpack.c.l.b16 %v1332
      %v1448 = vunpack.c.h.b16 %v1332
      %v1449 = vunpack.c.l.b16 %v1333
      %v1450 = vunpack.c.h.b16 %v1333
      %v1451 = vunpack.c.l.b16 %v1334
      %v1452 = vunpack.c.h.b16 %v1334
      %v1453 = vpack.c.b16 %v1393, %v1389
      %v1454 = vpack.c.b16 %v1394, %v1390
      %v1455 = vpack.c.b16 %v1395, %v1391
      %v1456 = vpack.c.b16 %v1396, %v1392
      %v1457 = vpack.c.b16 %v1401, %v1397
      %v1458 = vpack.c.b16 %v1402, %v1398
      %v1459 = vpack.c.b16 %v1403, %v1399
      %v1460 = vpack.c.b16 %v1404, %v1400
      %v1461 = vpack.c.b16 %v1409, %v1405
      %v1462 = vpack.c.b16 %v1410, %v1406
      %v1463 = vpack.c.b16 %v1411, %v1407
      %v1464 = vpack.c.b16 %v1412, %v1408
      %v1465 = vpack.c.b16 %v1417, %v1413
      %v1466 = vpack.c.b16 %v1418, %v1414
      %v1467 = vpack.c.b16 %v1419, %v1415
      %v1468 = vpack.c.b16 %v1420, %v1416
      %v1469 = vpack.c.b16 %v1425, %v1421
      %v1470 = vpack.c.b16 %v1426, %v1422
      %v1471 = vpack.c.b16 %v1427, %v1423
      %v1472 = vpack.c.b16 %v1428, %v1424
      %v1473 = vpack.c.b16 %v1433, %v1429
      %v1474 = vpack.c.b16 %v1434, %v1430
      %v1475 = vpack.c.b16 %v1435, %v1431
      %v1476 = vpack.c.b16 %v1436, %v1432
      %v1477 = vpack.c.b16 %v1441, %v1437
      %v1478 = vpack.c.b16 %v1442, %v1438
      %v1479 = vpack.c.b16 %v1443, %v1439
      %v1480 = vpack.c.b16 %v1444, %v1440
      %v1481 = vpack.c.b16 %v1449, %v1445
      %v1482 = vpack.c.b16 %v1450, %v1446
      %v1483 = vpack.c.b16 %v1451, %v1447
      %v1484 = vpack.c.b16 %v1452, %v1448
      %1517 = vmatprep.subr.bf16.mxu0 %v1482
      %1518 = vmatpush1.bf16.msra.mxu0 %v1481
      %1519 = vmatprep.subr.bf16.mxu0 %v1478
      %1520 = vmatpush1.bf16.msra.mxu0 %v1477
      %1521 = vmatprep.subr.bf16.mxu0 %v1474
      %1522 = vmatpush1.bf16.msra.mxu0 %v1473
      %1523 = vmatprep.subr.bf16.mxu0 %v1470
      %1524 = vmatpush1.bf16.msra.mxu0 %v1469
      %1525 = vmatprep.subr.bf16.mxu0 %v1466
      %1526 = vmatpush1.bf16.msra.mxu0 %v1465
      %1527 = vmatprep.subr.bf16.mxu0 %v1462
      %1528 = vmatpush1.bf16.msra.mxu0 %v1461
      %1529 = vmatprep.subr.bf16.mxu0 %v1458
      %1530 = vmatpush1.bf16.msra.mxu0 %v1457
      %1531 = vmatprep.subr.bf16.mxu0 %v1454
      %1532 = vmatpush1.bf16.msra.mxu0 %v1453
      %1533 = vmatprep.subr.bf16.mxu0 0
      %1534 = vmatpush2.bf16.msra.mxu0 0
      %1535 = vmatprep.subr.bf16.mxu0 0
      %1536 = vmatpush2.bf16.msra.mxu0 0
      %1537 = vmatprep.subr.bf16.mxu0 0
      %1538 = vmatpush2.bf16.msra.mxu0 0
      %1539 = vmatprep.subr.bf16.mxu0 0
      %1540 = vmatpush2.bf16.msra.mxu0 0
      %1541 = vmatprep.subr.bf16.mxu0 0
      %1542 = vmatpush2.bf16.msra.mxu0 0
      %1543 = vmatprep.subr.bf16.mxu0 0
      %1544 = vmatpush2.bf16.msra.mxu0 0
      %1545 = vmatprep.subr.bf16.mxu0 0
      %1546 = vmatpush2.bf16.msra.mxu0 0
      %1547 = vmatprep.subr.bf16.mxu0 0
      %1548 = vmatpush2.bf16.msra.mxu0 0
      %1549 = vmatprep.mubr.bf16.mxu0 0
      %1550 = vmatmul.mubr.bf16.gmra.mxu0 %v1302
      %v1551 = vpop.f32.mrf.mxu0
      %v1552 = vadd.f32 %v1340, %v1551
      %v1553 = vpop.f32.mrf.mxu0
      %v1554 = vadd.f32 %v1344, %v1553
      %v1555 = vpop.f32.mrf.mxu0
      %v1556 = vpop.f32.mrf.mxu0
      %1557 = vdwg.mxu0
      %1558 = vmatprep.subr.bf16.mxu0 %v1484
      %1559 = vmatpush1.bf16.msra.mxu0 %v1483
      %1560 = vmatprep.subr.bf16.mxu0 %v1480
      %1561 = vmatpush1.bf16.msra.mxu0 %v1479
      %1562 = vmatprep.subr.bf16.mxu0 %v1476
      %1563 = vmatpush1.bf16.msra.mxu0 %v1475
      %1564 = vmatprep.subr.bf16.mxu0 %v1472
      %1565 = vmatpush1.bf16.msra.mxu0 %v1471
      %1566 = vmatprep.subr.bf16.mxu0 %v1468
      %1567 = vmatpush1.bf16.msra.mxu0 %v1467
      %1568 = vmatprep.subr.bf16.mxu0 %v1464
      %1569 = vmatpush1.bf16.msra.mxu0 %v1463
      %1570 = vmatprep.subr.bf16.mxu0 %v1460
      %1571 = vmatpush1.bf16.msra.mxu0 %v1459
      %1572 = vmatprep.subr.bf16.mxu0 %v1456
      %1573 = vmatpush1.bf16.msra.mxu0 %v1455
      %1574 = vmatprep.subr.bf16.mxu0 0
      %1575 = vmatpush2.bf16.msra.mxu0 0
      %1576 = vmatprep.subr.bf16.mxu0 0
      %1577 = vmatpush2.bf16.msra.mxu0 0
      %1578 = vmatprep.subr.bf16.mxu0 0
      %1579 = vmatpush2.bf16.msra.mxu0 0
      %1580 = vmatprep.subr.bf16.mxu0 0
      %1581 = vmatpush2.bf16.msra.mxu0 0
      %1582 = vmatprep.subr.bf16.mxu0 0
      %1583 = vmatpush2.bf16.msra.mxu0 0
      %1584 = vmatprep.subr.bf16.mxu0 0
      %1585 = vmatpush2.bf16.msra.mxu0 0
      %1586 = vmatprep.subr.bf16.mxu0 0
      %1587 = vmatpush2.bf16.msra.mxu0 0
      %1588 = vmatprep.subr.bf16.mxu0 0
      %1589 = vmatpush2.bf16.msra.mxu0 0
      %1590 = vmatprep.mubr.bf16.mxu0 0
      %1591 = vmatmul.mubr.bf16.gmra.mxu0 %v1302
      %v1592 = vpop.f32.mrf.mxu0
      %v1593 = vadd.f32 %v1348, %v1592
      %v1594 = vpop.f32.mrf.mxu0
      %v1595 = vadd.f32 %v1352, %v1594
      %v1596 = vpop.f32.mrf.mxu0
      %v1597 = vpop.f32.mrf.mxu0
      %1598 = vdwg.mxu0
      %v1599 = vmul.f32 %v1552, 0.5
      %v1600 = vmul.f32 %v1554, 0.5
      %v1601 = vmul.f32 %v1593, 0.5
      %v1602 = vmul.f32 %v1595, 0.5
      %v1603 = vmul.f32 %v1552, 0.044715
      %v1604 = vmul.f32 %v1554, 0.044715
      %v1605 = vmul.f32 %v1593, 0.044715
      %v1606 = vmul.f32 %v1595, 0.044715
      %v1607 = vmul.f32 %v1603, %v1552
      %v1608 = vmul.f32 %v1604, %v1554
      %v1609 = vmul.f32 %v1605, %v1593
      %v1610 = vmul.f32 %v1606, %v1595
      %v1611 = vmul.f32 %v1607, %v1552
      %v1612 = vmul.f32 %v1608, %v1554
      %v1613 = vmul.f32 %v1609, %v1593
      %v1614 = vmul.f32 %v1610, %v1595
      %v1615 = vadd.f32 %v1552, %v1611
      %v1616 = vadd.f32 %v1554, %v1612
      %v1617 = vadd.f32 %v1593, %v1613
      %v1618 = vadd.f32 %v1595, %v1614
      %v1619 = vmul.f32 %v1615, 0.7978845
      %v1620 = vmul.f32 %v1616, 0.7978845
      %v1621 = vmul.f32 %v1617, 0.7978845
      %v1622 = vmul.f32 %v1618, 0.7978845
      %v1623 = vtanh.pop %v1619
      %v1624 = vtanh.pop %v1620
      %v1625 = vtanh.pop %v1621
      %v1626 = vtanh.pop %v1622
      %v1627 = vadd.f32 %v1623, 1.0
      %v1628 = vadd.f32 %v1624, 1.0
      %v1629 = vadd.f32 %v1625, 1.0
      %v1630 = vadd.f32 %v1626, 1.0
      %v1631 = vmul.f32 %v1599, %v1627
      %v1632 = vmul.f32 %v1600, %v1628
      %v1633 = vmul.f32 %v1601, %v1629
      %v1634 = vmul.f32 %v1602, %v1630
      %v1635 = vpack.c.bf16 %v1631, %v1631
      %v1636 = vpack.c.bf16 %v1632, %v1632
      %v1637 = vpack.c.bf16 %v1633, %v1633
      %v1638 = vpack.c.bf16 %v1634, %v1634
      %v1639 = vld [vmem:[%s9] sm:$0xf]
      %v1640 = vld [vmem:[%s9 + $0x4] sm:$0xf]
      %v1641 = vld [vmem:[%s9 + $0x8] sm:$0xf]
      %v1642 = vld [vmem:[%s9 + $0xc] sm:$0xf]
      %v1643 = vld [vmem:[%s9 + $0x10] sm:$0xf]
      %v1644 = vld [vmem:[%s9 + $0x14] sm:$0xf]
      %v1645 = vld [vmem:[%s9 + $0x18] sm:$0xf]
      %v1646 = vld [vmem:[%s9 + $0x1c] sm:$0xf]
      %v1647 = vld [vmem:[%s9 + $0x20] sm:$0xf]
      %v1648 = vld [vmem:[%s9 + $0x24] sm:$0xf]
      %v1649 = vld [vmem:[%s9 + $0x28] sm:$0xf]
      %v1650 = vld [vmem:[%s9 + $0x2c] sm:$0xf]
      %v1651 = vld [vmem:[%s9 + $0x30] sm:$0xf]
      %v1652 = vld [vmem:[%s9 + $0x34] sm:$0xf]
      %v1653 = vld [vmem:[%s9 + $0x38] sm:$0xf]
      %v1654 = vld [vmem:[%s9 + $0x3c] sm:$0xf]
      %v1655 = vld [vmem:[%s9 + $0x40] sm:$0xf]
      %v1656 = vld [vmem:[%s9 + $0x44] sm:$0xf]
      %v1657 = vld [vmem:[%s9 + $0x48] sm:$0xf]
      %v1658 = vld [vmem:[%s9 + $0x4c] sm:$0xf]
      %v1659 = vld [vmem:[%s9 + $0x50] sm:$0xf]
      %v1660 = vld [vmem:[%s9 + $0x54] sm:$0xf]
      %v1661 = vld [vmem:[%s9 + $0x58] sm:$0xf]
      %v1662 = vld [vmem:[%s9 + $0x5c] sm:$0xf]
      %v1663 = vld [vmem:[%s9 + $0x60] sm:$0xf]
      %v1664 = vld [vmem:[%s9 + $0x64] sm:$0xf]
      %v1665 = vld [vmem:[%s9 + $0x68] sm:$0xf]
      %v1666 = vld [vmem:[%s9 + $0x6c] sm:$0xf]
      %v1667 = vld [vmem:[%s9 + $0x70] sm:$0xf]
      %v1668 = vld [vmem:[%s9 + $0x74] sm:$0xf]
      %v1669 = vld [vmem:[%s9 + $0x78] sm:$0xf]
      %v1670 = vld [vmem:[%s9 + $0x7c] sm:$0xf]
      %v1671 = vld [vmem:[%s9 + $0x80] sm:$0xf]
      %v1672 = vld [vmem:[%s9 + $0x84] sm:$0xf]
      %v1673 = vld [vmem:[%s9 + $0x88] sm:$0xf]
      %v1674 = vld [vmem:[%s9 + $0x8c] sm:$0xf]
      %v1675 = vld [vmem:[%s9 + $0x90] sm:$0xf]
      %v1676 = vld [vmem:[%s9 + $0x94] sm:$0xf]
      %v1677 = vld [vmem:[%s9 + $0x98] sm:$0xf]
      %v1678 = vld [vmem:[%s9 + $0x9c] sm:$0xf]
      %v1679 = vld [vmem:[%s9 + $0xa0] sm:$0xf]
      %v1680 = vld [vmem:[%s9 + $0xa4] sm:$0xf]
      %v1681 = vld [vmem:[%s9 + $0xa8] sm:$0xf]
      %v1682 = vld [vmem:[%s9 + $0xac] sm:$0xf]
      %v1683 = vld [vmem:[%s9 + $0xb0] sm:$0xf]
      %v1684 = vld [vmem:[%s9 + $0xb4] sm:$0xf]
      %v1685 = vld [vmem:[%s9 + $0xb8] sm:$0xf]
      %v1686 = vld [vmem:[%s9 + $0xbc] sm:$0xf]
      %v1687 = vld [vmem:[%s9 + $0xc0] sm:$0xf]
      %v1688 = vld [vmem:[%s9 + $0xc4] sm:$0xf]
      %v1689 = vld [vmem:[%s9 + $0xc8] sm:$0xf]
      %v1690 = vld [vmem:[%s9 + $0xcc] sm:$0xf]
      %v1691 = vld [vmem:[%s9 + $0xd0] sm:$0xf]
      %v1692 = vld [vmem:[%s9 + $0xd4] sm:$0xf]
      %v1693 = vld [vmem:[%s9 + $0xd8] sm:$0xf]
      %v1694 = vld [vmem:[%s9 + $0xdc] sm:$0xf]
      %v1695 = vld [vmem:[%s9 + $0xe0] sm:$0xf]
      %v1696 = vld [vmem:[%s9 + $0xe4] sm:$0xf]
      %v1697 = vld [vmem:[%s9 + $0xe8] sm:$0xf]
      %v1698 = vld [vmem:[%s9 + $0xec] sm:$0xf]
      %v1699 = vld [vmem:[%s9 + $0xf0] sm:$0xf]
      %v1700 = vld [vmem:[%s9 + $0xf4] sm:$0xf]
      %v1701 = vld [vmem:[%s9 + $0xf8] sm:$0xf]
      %v1702 = vld [vmem:[%s9 + $0xfc] sm:$0xf]
      %v1703 = vld [vmem:[%s10] sm:$0x1]
      %v1705 = vlaneseq
      %v1706 = vshrl.u32 %v1705, 7
      %v1707 = vsub.s32 0, %v1706
      %v1708 = vrot.slane %v1703, %v1707
      %v1774 = vunpack.c.l.b16 %v1639
      %v1775 = vunpack.c.l.b16 %v1640
      %v1776 = vunpack.c.l.b16 %v1641
      %v1777 = vunpack.c.l.b16 %v1642
      %v1778 = vunpack.c.l.b16 %v1643
      %v1779 = vunpack.c.l.b16 %v1644
      %v1780 = vunpack.c.l.b16 %v1645
      %v1781 = vunpack.c.l.b16 %v1646
      %v1782 = vunpack.c.l.b16 %v1647
      %v1783 = vunpack.c.l.b16 %v1648
      %v1784 = vunpack.c.l.b16 %v1649
      %v1785 = vunpack.c.l.b16 %v1650
      %v1786 = vunpack.c.l.b16 %v1651
      %v1787 = vunpack.c.l.b16 %v1652
      %v1788 = vunpack.c.l.b16 %v1653
      %v1789 = vunpack.c.l.b16 %v1654
      %v1790 = vunpack.c.l.b16 %v1655
      %v1791 = vunpack.c.l.b16 %v1656
      %v1792 = vunpack.c.l.b16 %v1657
      %v1793 = vunpack.c.l.b16 %v1658
      %v1794 = vunpack.c.l.b16 %v1659
      %v1795 = vunpack.c.l.b16 %v1660
      %v1796 = vunpack.c.l.b16 %v1661
      %v1797 = vunpack.c.l.b16 %v1662
      %v1798 = vunpack.c.l.b16 %v1663
      %v1799 = vunpack.c.l.b16 %v1664
      %v1800 = vunpack.c.l.b16 %v1665
      %v1801 = vunpack.c.l.b16 %v1666
      %v1802 = vunpack.c.l.b16 %v1667
      %v1803 = vunpack.c.l.b16 %v1668
      %v1804 = vunpack.c.l.b16 %v1669
      %v1805 = vunpack.c.l.b16 %v1670
      %v1806 = vunpack.c.l.b16 %v1671
      %v1807 = vunpack.c.l.b16 %v1672
      %v1808 = vunpack.c.l.b16 %v1673
      %v1809 = vunpack.c.l.b16 %v1674
      %v1810 = vunpack.c.l.b16 %v1675
      %v1811 = vunpack.c.l.b16 %v1676
      %v1812 = vunpack.c.l.b16 %v1677
      %v1813 = vunpack.c.l.b16 %v1678
      %v1814 = vunpack.c.l.b16 %v1679
      %v1815 = vunpack.c.l.b16 %v1680
      %v1816 = vunpack.c.l.b16 %v1681
      %v1817 = vunpack.c.l.b16 %v1682
      %v1818 = vunpack.c.l.b16 %v1683
      %v1819 = vunpack.c.l.b16 %v1684
      %v1820 = vunpack.c.l.b16 %v1685
      %v1821 = vunpack.c.l.b16 %v1686
      %v1822 = vunpack.c.l.b16 %v1687
      %v1823 = vunpack.c.l.b16 %v1688
      %v1824 = vunpack.c.l.b16 %v1689
      %v1825 = vunpack.c.l.b16 %v1690
      %v1826 = vunpack.c.l.b16 %v1691
      %v1827 = vunpack.c.l.b16 %v1692
      %v1828 = vunpack.c.l.b16 %v1693
      %v1829 = vunpack.c.l.b16 %v1694
      %v1830 = vunpack.c.l.b16 %v1695
      %v1831 = vunpack.c.l.b16 %v1696
      %v1832 = vunpack.c.l.b16 %v1697
      %v1833 = vunpack.c.l.b16 %v1698
      %v1834 = vunpack.c.l.b16 %v1699
      %v1835 = vunpack.c.l.b16 %v1700
      %v1836 = vunpack.c.l.b16 %v1701
      %v1837 = vunpack.c.l.b16 %v1702
      %v1838 = vpack.c.b16 %v1775, %v1774
      %v1839 = vpack.c.b16 %v1777, %v1776
      %v1840 = vpack.c.b16 %v1779, %v1778
      %v1841 = vpack.c.b16 %v1781, %v1780
      %v1842 = vpack.c.b16 %v1783, %v1782
      %v1843 = vpack.c.b16 %v1785, %v1784
      %v1844 = vpack.c.b16 %v1787, %v1786
      %v1845 = vpack.c.b16 %v1789, %v1788
      %v1846 = vpack.c.b16 %v1791, %v1790
      %v1847 = vpack.c.b16 %v1793, %v1792
      %v1848 = vpack.c.b16 %v1795, %v1794
      %v1849 = vpack.c.b16 %v1797, %v1796
      %v1850 = vpack.c.b16 %v1799, %v1798
      %v1851 = vpack.c.b16 %v1801, %v1800
      %v1852 = vpack.c.b16 %v1803, %v1802
      %v1853 = vpack.c.b16 %v1805, %v1804
      %v1854 = vpack.c.b16 %v1807, %v1806
      %v1855 = vpack.c.b16 %v1809, %v1808
      %v1856 = vpack.c.b16 %v1811, %v1810
      %v1857 = vpack.c.b16 %v1813, %v1812
      %v1858 = vpack.c.b16 %v1815, %v1814
      %v1859 = vpack.c.b16 %v1817, %v1816
      %v1860 = vpack.c.b16 %v1819, %v1818
      %v1861 = vpack.c.b16 %v1821, %v1820
      %v1862 = vpack.c.b16 %v1823, %v1822
      %v1863 = vpack.c.b16 %v1825, %v1824
      %v1864 = vpack.c.b16 %v1827, %v1826
      %v1865 = vpack.c.b16 %v1829, %v1828
      %v1866 = vpack.c.b16 %v1831, %v1830
      %v1867 = vpack.c.b16 %v1833, %v1832
      %v1868 = vpack.c.b16 %v1835, %v1834
      %v1869 = vpack.c.b16 %v1837, %v1836
      %1902 = vmatprep.subr.bf16.mxu0 0
      %1903 = vmatpush1.bf16.msra.mxu0 %v1845
      %1904 = vmatprep.subr.bf16.mxu0 0
      %1905 = vmatpush1.bf16.msra.mxu0 %v1844
      %1906 = vmatprep.subr.bf16.mxu0 0
      %1907 = vmatpush1.bf16.msra.mxu0 %v1843
      %1908 = vmatprep.subr.bf16.mxu0 0
      %1909 = vmatpush1.bf16.msra.mxu0 %v1842
      %1910 = vmatprep.subr.bf16.mxu0 0
      %1911 = vmatpush1.bf16.msra.mxu0 %v1841
      %1912 = vmatprep.subr.bf16.mxu0 0
      %1913 = vmatpush1.bf16.msra.mxu0 %v1840
      %1914 = vmatprep.subr.bf16.mxu0 0
      %1915 = vmatpush1.bf16.msra.mxu0 %v1839
      %1916 = vmatprep.subr.bf16.mxu0 0
      %1917 = vmatpush1.bf16.msra.mxu0 %v1838
      %1918 = vmatprep.subr.bf16.mxu0 0
      %1919 = vmatpush2.bf16.msra.mxu0 %v1853
      %1920 = vmatprep.subr.bf16.mxu0 0
      %1921 = vmatpush2.bf16.msra.mxu0 %v1852
      %1922 = vmatprep.subr.bf16.mxu0 0
      %1923 = vmatpush2.bf16.msra.mxu0 %v1851
      %1924 = vmatprep.subr.bf16.mxu0 0
      %1925 = vmatpush2.bf16.msra.mxu0 %v1850
      %1926 = vmatprep.subr.bf16.mxu0 0
      %1927 = vmatpush2.bf16.msra.mxu0 %v1849
      %1928 = vmatprep.subr.bf16.mxu0 0
      %1929 = vmatpush2.bf16.msra.mxu0 %v1848
      %1930 = vmatprep.subr.bf16.mxu0 0
      %1931 = vmatpush2.bf16.msra.mxu0 %v1847
      %1932 = vmatprep.subr.bf16.mxu0 0
      %1933 = vmatpush2.bf16.msra.mxu0 %v1846
      %1934 = vmatprep.mubr.bf16.mxu0 %v1636
      %1935 = vmatmul.mubr.bf16.gmra.mxu0 %v1635
      %v1936 = vpop.f32.mrf.mxu0
      %v1937 = vadd.f32 %v1708, %v1936
      %v1938 = vpop.f32.mrf.mxu0
      %v1939 = vpop.f32.mrf.mxu0
      %v1940 = vpop.f32.mrf.mxu0
      %1941 = vdwg.mxu0
      %1942 = vmatprep.subr.bf16.mxu0 0
      %1943 = vmatpush1.bf16.msra.mxu0 %v1861
      %1944 = vmatprep.subr.bf16.mxu0 0
      %1945 = vmatpush1.bf16.msra.mxu0 %v1860
      %1946 = vmatprep.subr.bf16.mxu0 0
      %1947 = vmatpush1.bf16.msra.mxu0 %v1859
      %1948 = vmatprep.subr.bf16.mxu0 0
      %1949 = vmatpush1.bf16.msra.mxu0 %v1858
      %1950 = vmatprep.subr.bf16.mxu0 0
      %1951 = vmatpush1.bf16.msra.mxu0 %v1857
      %1952 = vmatprep.subr.bf16.mxu0 0
      %1953 = vmatpush1.bf16.msra.mxu0 %v1856
      %1954 = vmatprep.subr.bf16.mxu0 0
      %1955 = vmatpush1.bf16.msra.mxu0 %v1855
      %1956 = vmatprep.subr.bf16.mxu0 0
      %1957 = vmatpush1.bf16.msra.mxu0 %v1854
      %1958 = vmatprep.subr.bf16.mxu0 0
      %1959 = vmatpush2.bf16.msra.mxu0 %v1869
      %1960 = vmatprep.subr.bf16.mxu0 0
      %1961 = vmatpush2.bf16.msra.mxu0 %v1868
      %1962 = vmatprep.subr.bf16.mxu0 0
      %1963 = vmatpush2.bf16.msra.mxu0 %v1867
      %1964 = vmatprep.subr.bf16.mxu0 0
      %1965 = vmatpush2.bf16.msra.mxu0 %v1866
      %1966 = vmatprep.subr.bf16.mxu0 0
      %1967 = vmatpush2.bf16.msra.mxu0 %v1865
      %1968 = vmatprep.subr.bf16.mxu0 0
      %1969 = vmatpush2.bf16.msra.mxu0 %v1864
      %1970 = vmatprep.subr.bf16.mxu0 0
      %1971 = vmatpush2.bf16.msra.mxu0 %v1863
      %1972 = vmatprep.subr.bf16.mxu0 0
      %1973 = vmatpush2.bf16.msra.mxu0 %v1862
      %1974 = vmatprep.mubr.bf16.mxu0 %v1638
      %1975 = vmatmul.mubr.bf16.gmra.mxu0 %v1637
      %v1976 = vpop.f32.mrf.mxu0
      %v1977 = vadd.f32 %v1937, %v1976
      %v1978 = vpop.f32.mrf.mxu0
      %v1979 = vpop.f32.mrf.mxu0
      %v1980 = vpop.f32.mrf.mxu0
      %1981 = vdwg.mxu0
      %v1982 = vadd.f32 %v1977, %v1301
      %v1983 = vld [vmem:[%s11] sm:$0x1]
      %v1984 = vld [vmem:[%s12] sm:$0x1]
      %1985 = vadd.xlane.f32.xlu0 %v1982
      %v1986 = vpop.xlane.xlu0 %1985
      %v1987 = vmul.f32 %v1986, %v1278
      %v1988 = vsub.f32 %v1982, %v1987
      %v1989 = vmul.f32 %v1988, %v1988
      %1990 = vadd.xlane.f32.xlu0 %v1989
      %v1991 = vpop.xlane.xlu0 %1990
      %v1992 = vmul.f32 %v1991, %v1278
      %v1993 = vadd.f32 %v1992, 1e-12
      %v1994 = vrsqrt.pop %v1993
      %v1995 = vmul.f32 %v1988, %v1994
      %v1997 = vlaneseq
      %v1998 = vshrl.u32 %v1997, 7
      %v1999 = vsub.s32 0, %v1998
      %v2000 = vrot.slane %v1983, %v1999
      %v2002 = vmul.f32 %v1995, %v2000
      %v2004 = vlaneseq
      %v2005 = vshrl.u32 %v2004, 7
      %v2006 = vsub.s32 0, %v2005
      %v2007 = vrot.slane %v1984, %v2006
      %v2009 = vadd.f32 %v2002, %v2007
      %2010 = vst [vmem:[%s435] sm:$0xff] %v2009
      %p2011 = scmp.lt.s32.totalorder %s24, 1
      %s2012 = scalar_select %p2011, %s24, 1
      %s2013 = smul.addr %s2012, 8
      %s2014 = scalar_lea.vmem %s13, %s2013
      // Predicated region
      $region73: #{forward.6} parent=71 // pred_check
        %p2015 = pneg %p320
      $region74: #{forward.6} parent=71 // pred_check_branch
        %2017 = sbr.rel (%p2015) target = $region76
      $region75: #{forward.6} parent=71 // pred_region
        _
      $region76: #{forward.6} parent=71 // pred_fallthru
        _
    $region72: #{forward.6} parent=5 // pred_fallthru
      _
    %p2018 = scmp.le.s32.totalorder 2, %s19
    // Predicated region
    $region77: #{forward.6} parent=5 // pred_check
      %p2019 = pneg %p2018
    $region78: #{forward.6} parent=5 // pred_check_branch
      %2021 = sbr.rel (%p2019) target = $region80
    $region79: #{forward.6} parent=5 // pred_region
      %s2022 = ssub.s32 %s19, 2
      // Predicated region
      $region81: #{forward.6} parent=79 // pred_check
        %p2023 = pneg %p326
      $region82: #{forward.6} parent=79 // pred_check_branch
        %2025 = sbr.rel (%p2023) target = $region84
      $region83: #{forward.6} parent=79 // pred_region
        %p2026 = scmp.lt.s32.totalorder %s25, 1
        %s2027 = scalar_select %p2026, %s25, 1
        %s2028 = smul.addr %s2027, 8
        %s2029 = scalar_lea.vmem %s13, %s2028
      $region84: #{forward.6} parent=79 // pred_fallthru
        _
    $region80: #{forward.6} parent=5 // pred_fallthru
      _
  $region6: #{forward.6} parent=0 // loop_footer
    %s23 = sadd.s32 1, %s19
  $region7: #{forward.6} parent=0 // loop_footer_branch
    %18 = sbr.rel target = $region3
  $region8: #{forward.6} parent=0 // loop_exit
    _

</llo_original>
